<compile_context>
chip_gen: v5e
topology: v5e:2x2
jax: 0.10.0
libtpu: 0.0.40
codegen_flags: <defaults>
</compile_context>

<pallas_src>
import functools

import jax
import jax.numpy as jnp
from jax.experimental import pallas as pl
from jax.experimental.pallas import tpu as pltpu

LEAKY_SLOPE = 0.01   # F.leaky_relu default negative_slope
BN_EPS = 1e-5        # nn.BatchNorm2d default eps


# ---------------------------------------------------------------------------
# Pass A: feature_layer (1x1 conv + bias) + bilinear residual + res_fuse 3x3 conv,
#         emitting per-block BN1 partial statistics.  Grid over batch blocks.
# ---------------------------------------------------------------------------
def _fuse_kernel(Bt, m, n, C,
                 f_ref,      # (Bt, m, n*Cin)    bf16 lane-dense fine feature map
                 c_ref,      # (Bt, Hc, Wc*C)    bf16 lane-dense coarse map
                 bfeat_ref,  # (n*Cin, n*C)      bf16 block-diagonal 1x1 feature conv
                 bfb_ref,    # (1, n*C)          f32 bias, tiled over W
                 rhb_ref,    # (Bt*m, Bt*Hc)     bf16 block-diag bilinear row interp
                 bw_ref,     # (Wc*C, n*C)       bf16 bilinear col interp (channel preserving)
                 w3a_ref,    # (3*n*C, n*C)      bf16 fused row-tap 3x3 conv (res_fuse, no bias)
                 y1_ref,     # out (Bt, m, n*C)  f32 pre-BN conv output
                 sum_ref,    # out (1, 1, n*C)   f32 per-block column sums
                 sq_ref,     # out (1, 1, n*C)   f32 per-block column sums of squares
                 dpad_ref):  # scratch (Bt, m+2, n*C) bf16 row-padded conv input
    nC = n * C
    R = Bt * m
    # re-zero only the tiny top/bottom pad rows (interior fully overwritten each step)
    dpad_ref[:, 0:1, :] = jnp.zeros((Bt, 1, nC), dpad_ref.dtype)
    dpad_ref[:, m + 1:m + 2, :] = jnp.zeros((Bt, 1, nC), dpad_ref.dtype)

    # feature_layer: 1x1 conv (+bias) as one block-diagonal matmul on the batched slab
    f2 = f_ref[...].reshape(R, f_ref.shape[2])
    f1 = jnp.dot(f2, bfeat_ref[...], preferred_element_type=jnp.float32) + bfb_ref[...]

    # bilinear interpolation of c to (m, n): two matmuls (separable kernel)
    c2 = c_ref[...].reshape(Bt * c_ref.shape[1], c_ref.shape[2])
    cw = jnp.dot(c2, bw_ref[...], preferred_element_type=jnp.float32)       # (Bt*Hc, nC)
    ci = jnp.dot(rhb_ref[...], cw.astype(jnp.bfloat16),
                 preferred_element_type=jnp.float32)                        # (R, nC)
    d = f1 - ci

    # 3x3 conv (bias-free) as ONE fused row-tap MXU matmul; column pads baked into w3a
    dpad_ref[:, 1:1 + m, :] = d.reshape(Bt, m, nC).astype(jnp.bfloat16)
    P = dpad_ref[...]
    op = jnp.concatenate([P[:, dy:dy + m, :] for dy in range(3)],
                         axis=-1).reshape(R, 3 * nC)
    acc = jnp.dot(op, w3a_ref[...], preferred_element_type=jnp.float32)     # (R, nC)
    y1_ref[...] = acc.reshape(Bt, m, nC)
    # one-pass BN1 partial statistics (folded across blocks in the wrapper)
    sum_ref[0] = jnp.sum(acc, axis=0, keepdims=True)
    sq_ref[0] = jnp.sum(acc * acc, axis=0, keepdims=True)


# ---------------------------------------------------------------------------
# Pass B: BN1+ReLU, ChannelAttention (fused MLP), SpatialAttention (fused 7x7),
#         gating, CSAM 3x3 conv (+bias), emitting BN2 partial stats.
# ---------------------------------------------------------------------------
def _csam_kernel(Bt, m, n, C,
                 y1_ref,             # (Bt, m, n*C) f32 pre-BN res_fuse conv output
                 a1w_ref, b1w_ref,   # (1, n*C)     f32 BN1 scale/shift tiled over W
                 fc1_ref,            # (C, mid)     f32
                 fc2_ref,            # (mid, C)     f32
                 brep_ref,           # (C, n*C)     f32 channel-attention lane broadcast
                 brept_ref,          # (n*C, C)     f32 per-channel column-sum reduction
                 rmean_ref,          # (n*C, n)     f32 per-position channel mean (1/C baked in)
                 selmax_ref,         # (n*C, n)     f32 group-start lane selector
                 rrep_ref,           # (n, n*C)     f32 spatial-attention lane broadcast
                 saw_ref,            # (14*n, n)    f32 fused row-tap 7x7 SA conv
                 w3b_ref,            # (3*n*C, n*C) bf16 fused row-tap 3x3 conv (CSAM conv1x1[0])
                 b3_ref,             # (1, n*C)     f32 its bias
                 c1_ref,             # out (Bt, m, n*C) f32
                 sum_ref,            # out (1, 1, n*C)  f32
                 sq_ref,             # out (1, 1, n*C)  f32
                 mm_ref,             # scratch (Bt, m+6, 2*n) f32 row-padded [mean | max] maps
                 gpad_ref):          # scratch (Bt, m+2, n*C) bf16 row-padded conv input
    nC = n * C
    R = Bt * m
    # re-zero only the tiny pad border rows
    mm_ref[:, 0:3, :] = jnp.zeros((Bt, 3, 2 * n), jnp.float32)
    mm_ref[:, m + 3:m + 6, :] = jnp.zeros((Bt, 3, 2 * n), jnp.float32)
    gpad_ref[:, 0:1, :] = jnp.zeros((Bt, 1, nC), gpad_ref.dtype)
    gpad_ref[:, m + 1:m + 2, :] = jnp.zeros((Bt, 1, nC), gpad_ref.dtype)

    # BN1 (folded batch-stat scale/shift) + ReLU -> z, the CSAM input x
    z3 = jnp.maximum(y1_ref[...] * a1w_ref[...] + b1w_ref[...], 0.0)        # (Bt, m, nC)
    z2 = z3.reshape(R, nC)

    # -------- channel attention (per sample): fused avg/max MLP --------
    zs = jnp.sum(z3, axis=1)                                                 # (Bt, nC)
    zm = jnp.max(z3, axis=1)                                                 # (Bt, nC)
    avg_c = jnp.dot(zs, brept_ref[...],
                    preferred_element_type=jnp.float32) * (1.0 / (m * n))    # (Bt, C)
    t = zm                    # strided tree-max over the n width groups (XLU rolls)
    s = C
    while s < nC:
        t = jnp.maximum(t, pltpu.roll(t, nC - s, 1))
        s *= 2
    max_c = t[:, 0:C]                                                        # (Bt, C)
    pooled = jnp.concatenate([avg_c, max_c], axis=0)                         # (2*Bt, C)
    h = jnp.dot(pooled, fc1_ref[...], preferred_element_type=jnp.float32)
    h = jnp.where(h > 0, h, LEAKY_SLOPE * h)                                 # leaky_relu
    o = jnp.dot(h, fc2_ref[...], preferred_element_type=jnp.float32)         # (2*Bt, C)
    ca = jax.nn.sigmoid(o[0:Bt, :] + o[Bt:2 * Bt, :])                        # (Bt, C)
    ca_wide = jnp.dot(ca, brep_ref[...], preferred_element_type=jnp.float32)  # (Bt, nC)

    # -------- spatial attention: 7x7 conv as one fused row-tap matmul --------
    ch_mean = jnp.dot(z2, rmean_ref[...], preferred_element_type=jnp.float32)  # (R, n)
    u = z2                    # within-group (C lanes) tree max; valid at group-start lanes
    s = 1
    while s < C:
        u = jnp.maximum(u, pltpu.roll(u, nC - s, 1))
        s *= 2
    ch_max = jnp.dot(u, selmax_ref[...], preferred_element_type=jnp.float32)   # (R, n)
    cm = jnp.concatenate([ch_mean, ch_max], axis=-1).reshape(Bt, m, 2 * n)
    mm_ref[:, 3:3 + m, :] = cm
    Pm = mm_ref[...]
    sa_op = jnp.concatenate([Pm[:, dy:dy + m, :] for dy in range(7)],
                            axis=-1).reshape(R, 14 * n)
    sa = jax.nn.sigmoid(jnp.dot(sa_op, saw_ref[...],
                                preferred_element_type=jnp.float32))            # (R, n)
    sa_wide = jnp.dot(sa, rrep_ref[...],
                      preferred_element_type=jnp.float32).reshape(Bt, m, nC)

    # -------- gate: x + CA*x + SA*x, then fused 3x3 conv (+bias) --------
    g = z3 * (1.0 + ca_wide[:, None, :] + sa_wide)
    gpad_ref[:, 1:1 + m, :] = g.astype(jnp.bfloat16)
    Pg = gpad_ref[...]
    op = jnp.concatenate([Pg[:, dy:dy + m, :] for dy in range(3)],
                         axis=-1).reshape(R, 3 * nC)
    c1 = jnp.dot(op, w3b_ref[...], preferred_element_type=jnp.float32) + b3_ref[...]
    c1_ref[...] = c1.reshape(Bt, m, nC)
    sum_ref[0] = jnp.sum(c1, axis=0, keepdims=True)
    sq_ref[0] = jnp.sum(c1 * c1, axis=0, keepdims=True)


# ---------------------------------------------------------------------------
# Pass C: BN2 + ReLU + final 1x1 conv (no bias).  Grid over lane-dense row strips.
# ---------------------------------------------------------------------------
def _bn_relu_1x1_kernel(c1_ref,          # (TR, n*C)
                        a2_ref, b2_ref,  # (1, n*C)
                        w1_ref,          # (n*C, n*C) bf16 block-diagonal 1x1 conv
                        out_ref):        # (TR, n*C)
    r = jnp.maximum(c1_ref[...] * a2_ref[...] + b2_ref[...], 0.0)
    out_ref[...] = jnp.dot(r.astype(jnp.bfloat16), w1_ref[...],
                           preferred_element_type=jnp.float32)


# ---------------------------------------------------------------------------
# Wrapper-side (tiny) operand construction.
# ---------------------------------------------------------------------------
def _interp_matrix(out_size, in_size):
    """Bilinear (align_corners=False, PyTorch default) interpolation as (out, in) matrix."""
    scale = in_size / out_size
    i = jnp.arange(out_size, dtype=jnp.float32)
    src = jnp.maximum((i + 0.5) * scale - 0.5, 0.0)
    i0 = jnp.clip(jnp.floor(src).astype(jnp.int32), 0, in_size - 1)
    i1 = jnp.minimum(i0 + 1, in_size - 1)
    w1 = src - i0.astype(jnp.float32)
    w0 = 1.0 - w1
    rows = jnp.arange(out_size)
    mat = jnp.zeros((out_size, in_size), jnp.float32)
    mat = mat.at[rows, i0].add(w0)
    mat = mat.at[rows, i1].add(w1)
    return mat


def _conv3_toeplitz_fused(w, n):
    """(Cout, Cin, 3, 3) PyTorch conv -> fused (3*n*Cin, n*Cout) row-tap matmul weight
    for the lane-dense (rows, W*C) layout.  Left/right zero pads are baked into the
    column shifts, so the kernel only needs top/bottom row padding."""
    cout, cin, kh, kw = w.shape
    mats = []
    for dy in range(kh):
        mat = jnp.zeros((n * cin, n * cout), jnp.float32)
        for dx in range(kw):
            shift = jnp.eye(n, n, k=1 - dx, dtype=jnp.float32)   # out x <- in col x+dx-1
            mat = mat + jnp.kron(shift, jnp.transpose(w[:, :, dy, dx]))
        mats.append(mat)
    return jnp.concatenate(mats, axis=0)


def _sa7_toeplitz_fused(w7, n):
    """SpatialAttention 7x7 weights (1, 2, 7, 7) -> fused (7*2*n, n) row-tap matmul
    weight acting on the side-by-side [mean | max] (rows, 2n) maps."""
    mats = []
    for dy in range(7):
        mat = jnp.zeros((2 * n, n), jnp.float32)
        for ch in range(2):
            for dx in range(7):
                mat = mat.at[ch * n:(ch + 1) * n, :].add(
                    w7[0, ch, dy, dx] * jnp.eye(n, n, k=3 - dx, dtype=jnp.float32))
        mats.append(mat)
    return jnp.concatenate(mats, axis=0)


def _bn_fold(sum_rows, sq_rows, count, C, gamma, beta):
    """Fold per-block (·, 1, n*C) partial sums into per-channel BN scale/shift
    (training-mode / biased batch variance, single pass: E[x^2]-mean^2)."""
    s = jnp.sum(sum_rows.reshape(-1, C), axis=0)
    sq = jnp.sum(sq_rows.reshape(-1, C), axis=0)
    mean = s / count
    var = jnp.maximum(sq / count - mean * mean, 0.0)
    a = gamma * jax.lax.rsqrt(var + BN_EPS)
    b = beta - mean * a
    return a, b


def _pick_bt(N, m, target_rows=256):
    """Samples per grid step: raise the MXU M dim, but keep the grid >= 2 (v7x cores)."""
    cap = max(1, N // 2)
    bt = 1
    for cand in range(1, cap + 1):
        if N % cand == 0 and cand * m <= target_rows:
            bt = cand
    return bt


def _pick_tr(total_rows):
    """Row-strip size for pass C: sublane-aligned and grid >= 2 when possible."""
    for cand in range(total_rows // 2, 0, -1):
        if total_rows % cand == 0 and cand % 8 == 0 and cand <= 512:
            return cand
    return total_rows


def make_mscsam_params(key, in_channels, out_channels):
    """Deterministic synthetic parameters matching MSCSAM(in_channels, out_channels)."""
    C, Cin = out_channels, in_channels
    mid = max(64, C // 2)
    ks = jax.random.split(key, 13)

    def rnd(k, shape, scale):
        return jax.random.normal(k, shape, jnp.float32) * scale

    return {
        # MSCSAM.feature_layer: Conv2d(Cin, C, 1) with bias
        "w_feat": rnd(ks[0], (C, Cin), 0.3),
        "b_feat": rnd(ks[1], (C,), 0.1),
        # MSCSAM.res_fuse_layer: conv3x3 + BN + ReLU
        # TODO(synk): conv3x3() helper is not defined in the snippet; assumed the standard
        #             Conv2d(C, C, 3, stride=1, padding=1, bias=False).
        "w3_fuse": rnd(ks[2], (C, C, 3, 3), 0.15),
        "bn1_gamma": 1.0 + rnd(ks[3], (C,), 0.1),
        "bn1_beta": rnd(ks[4], (C,), 0.1),
        # CSAM.ChannelAttention: fc1 Conv2d(C, mid, 1, bias=False), fc2 Conv2d(mid, C, 1, bias=False)
        "w_fc1": rnd(ks[5], (mid, C), 0.2),
        "w_fc2": rnd(ks[6], (C, mid), 0.2),
        # CSAM.SpatialAttention: Conv2d(2, 1, 7, padding=3, bias=False)
        "w_sa": rnd(ks[7], (1, 2, 7, 7), 0.1),
        # CSAM.conv1x1[0]: Conv2d(C, C, 3, padding=1) with bias
        "w3_csam": rnd(ks[8], (C, C, 3, 3), 0.15),
        "b3_csam": rnd(ks[9], (C,), 0.1),
        # CSAM.conv1x1[1]: BatchNorm2d
        "bn2_gamma": 1.0 + rnd(ks[10], (C,), 0.1),
        "bn2_beta": rnd(ks[11], (C,), 0.1),
        # CSAM.conv1x1[3]: Conv2d(C, C, 1, bias=False)
        "w1x1": rnd(ks[12], (C, C), 0.2),
    }


def mscsam_forward(c, f, params):
    """MSCSAM forward.  c: (N, Cout, Hc, Wc), f: (N, Cin, m, n), NCHW float32.
    Returns (N, Cout, m, n)."""
    f = f.astype(jnp.float32)
    c = c.astype(jnp.float32)
    N, Cin, m, n = f.shape
    _, C, Hc, Wc = c.shape
    nC = n * C
    mid = params["w_fc1"].shape[0]
    assert C & (C - 1) == 0, "grouped-roll channel max assumes power-of-two channels"

    Bt = _pick_bt(N, m)
    NB = N // Bt

    # interface layout glue: NCHW -> lane-dense (rows, W*C), cast to bf16 for the MXU
    # TODO(synk): fold these transposes (and the final one) into passes A/C to save the
    #             extra HBM round-trips (mostly relevant on v5e).
    f_ld = jnp.transpose(f, (0, 2, 3, 1)).reshape(N, m, n * Cin).astype(jnp.bfloat16)
    c_ld = jnp.transpose(c, (0, 2, 3, 1)).reshape(N, Hc, Wc * C).astype(jnp.bfloat16)

    # tiny derived matmul operands, built once from the PyTorch-layout parameters
    eye_n = jnp.eye(n, dtype=jnp.float32)
    eye_c = jnp.eye(C, dtype=jnp.float32)
    bfeat = jnp.kron(eye_n, jnp.transpose(params["w_feat"])).astype(jnp.bfloat16)   # (n*Cin, nC)
    bfb = jnp.tile(params["b_feat"], n)[None, :]                                    # (1, nC)
    rhb = jnp.kron(jnp.eye(Bt, dtype=jnp.float32),
                   _interp_matrix(m, Hc)).astype(jnp.bfloat16)                      # (Bt*m, Bt*Hc)
    bw = jnp.kron(jnp.transpose(_interp_matrix(n, Wc)), eye_c).astype(jnp.bfloat16)  # (Wc*C, nC)
    w3a = _conv3_toeplitz_fused(params["w3_fuse"], n).astype(jnp.bfloat16)          # (3nC, nC)
    fc1 = jnp.transpose(params["w_fc1"])                                            # (C, mid)
    fc2 = jnp.transpose(params["w_fc2"])                                            # (mid, C)
    brep = jnp.tile(eye_c, (1, n))                                                  # (C, nC)
    brept = jnp.transpose(brep)                                                     # (nC, C)
    rrep = jnp.kron(eye_n, jnp.ones((1, C), jnp.float32))                           # (n, nC)
    rmean = jnp.transpose(rrep) * (1.0 / C)                                         # (nC, n)
    selmax = jnp.kron(eye_n, jnp.eye(C, 1, dtype=jnp.float32))                      # (nC, n)
    saw = _sa7_toeplitz_fused(params["w_sa"], n)                                    # (14n, n)
    w3b = _conv3_toeplitz_fused(params["w3_csam"], n).astype(jnp.bfloat16)          # (3nC, nC)
    b3 = jnp.tile(params["b3_csam"], n)[None, :]                                    # (1, nC)
    w1k = jnp.kron(eye_n, jnp.transpose(params["w1x1"])).astype(jnp.bfloat16)       # (nC, nC)

    cparams = pltpu.CompilerParams(dimension_semantics=("parallel",),
                                   vmem_limit_bytes=32 * 1024 * 1024)
    full2 = lambda i: (0, 0)
    stat_shape = jax.ShapeDtypeStruct((NB, 1, nC), jnp.float32)
    stat_spec = pl.BlockSpec((1, 1, nC), lambda i: (i, 0, 0))

    # ---- pass A ----
    y1, s1, q1 = pl.pallas_call(
        functools.partial(_fuse_kernel, Bt, m, n, C),
        grid=(NB,),
        in_specs=[
            pl.BlockSpec((Bt, m, n * Cin), lambda i: (i, 0, 0)),
            pl.BlockSpec((Bt, Hc, Wc * C), lambda i: (i, 0, 0)),
            pl.BlockSpec((n * Cin, nC), full2),
            pl.BlockSpec((1, nC), full2),
            pl.BlockSpec((Bt * m, Bt * Hc), full2),
            pl.BlockSpec((Wc * C, nC), full2),
            pl.BlockSpec((3 * nC, nC), full2),
        ],
        out_specs=[pl.BlockSpec((Bt, m, nC), lambda i: (i, 0, 0)), stat_spec, stat_spec],
        out_shape=[jax.ShapeDtypeStruct((N, m, nC), jnp.float32), stat_shape, stat_shape],
        scratch_shapes=[pltpu.VMEM((Bt, m + 2, nC), jnp.bfloat16)],
        compiler_params=cparams,
    )(f_ld, c_ld, bfeat, bfb, rhb, bw, w3a)

    # fold BN1 batch statistics (training mode) into per-channel scale/shift
    a1, b1 = _bn_fold(s1, q1, N * m * n, C, params["bn1_gamma"], params["bn1_beta"])
    a1w, b1w = jnp.tile(a1, n)[None, :], jnp.tile(b1, n)[None, :]

    # ---- pass B ----
    c1, s2, q2 = pl.pallas_call(
        functools.partial(_csam_kernel, Bt, m, n, C),
        grid=(NB,),
        in_specs=[
            pl.BlockSpec((Bt, m, nC), lambda i: (i, 0, 0)),
            pl.BlockSpec((1, nC), full2),
            pl.BlockSpec((1, nC), full2),
            pl.BlockSpec((C, mid), full2),
            pl.BlockSpec((mid, C), full2),
            pl.BlockSpec((C, nC), full2),
            pl.BlockSpec((nC, C), full2),
            pl.BlockSpec((nC, n), full2),
            pl.BlockSpec((nC, n), full2),
            pl.BlockSpec((n, nC), full2),
            pl.BlockSpec((14 * n, n), full2),
            pl.BlockSpec((3 * nC, nC), full2),
            pl.BlockSpec((1, nC), full2),
        ],
        out_specs=[pl.BlockSpec((Bt, m, nC), lambda i: (i, 0, 0)), stat_spec, stat_spec],
        out_shape=[jax.ShapeDtypeStruct((N, m, nC), jnp.float32), stat_shape, stat_shape],
        scratch_shapes=[
            pltpu.VMEM((Bt, m + 6, 2 * n), jnp.float32),
            pltpu.VMEM((Bt, m + 2, nC), jnp.bfloat16),
        ],
        compiler_params=cparams,
    )(y1, a1w, b1w, fc1, fc2, brep, brept, rmean, selmax, rrep, saw, w3b, b3)

    # fold BN2 batch statistics
    a2, b2 = _bn_fold(s2, q2, N * m * n, C, params["bn2_gamma"], params["bn2_beta"])
    a2w, b2w = jnp.tile(a2, n)[None, :], jnp.tile(b2, n)[None, :]

    # ---- pass C: BN2 + ReLU + final 1x1 conv over lane-dense row strips ----
    total_rows = N * m
    tr = _pick_tr(total_rows)
    c1_flat = c1.reshape(total_rows, nC)
    out_flat = pl.pallas_call(
        _bn_relu_1x1_kernel,
        grid=(total_rows // tr,),
        in_specs=[
            pl.BlockSpec((tr, nC), lambda i: (i, 0)),
            pl.BlockSpec((1, nC), full2),
            pl.BlockSpec((1, nC), full2),
            pl.BlockSpec((nC, nC), full2),
        ],
        out_specs=pl.BlockSpec((tr, nC), lambda i: (i, 0)),
        out_shape=jax.ShapeDtypeStruct((total_rows, nC), jnp.float32),
        compiler_params=cparams,
    )(c1_flat, a2w, b2w, w1k)

    # lane-dense slab -> NCHW
    return jnp.transpose(out_flat.reshape(N, m, n, C), (0, 3, 1, 2))


if __name__ == "__main__":
    key = jax.random.PRNGKey(0)
    kc, kf, kp = jax.random.split(key, 3)

    N, Cin, Cout = 2, 4, 8
    m, n = 16, 16            # fine (output) resolution; n*Cout = 128 -> lane-dense slabs
    Hc, Wc = 8, 8            # coarse map, bilinearly upsampled to (m, n) inside pass A

    f = jax.random.normal(kf, (N, Cin, m, n), jnp.float32)
    c = jax.random.normal(kc, (N, Cout, Hc, Wc), jnp.float32)
    params = make_mscsam_params(kp, Cin, Cout)

    fwd = jax.jit(mscsam_forward)
    y = fwd(c, f, params)
    jax.block_until_ready(y)
    assert y.shape == (N, Cout, m, n) and y.dtype == jnp.float32
    print("KERNEL_OK")
</pallas_src>

<mosaic_0001>
module attributes {stable_mosaic.version = 11 : i64} {
  func.func @_fuse_kernel(%arg0: i32, %arg1: memref<1x16x64xbf16, #tpu.memory_space<vmem>>, %arg2: memref<1x8x64xbf16, #tpu.memory_space<vmem>>, %arg3: memref<64x128xbf16, #tpu.memory_space<vmem>>, %arg4: memref<1x128xf32, #tpu.memory_space<vmem>>, %arg5: memref<16x8xbf16, #tpu.memory_space<vmem>>, %arg6: memref<64x128xbf16, #tpu.memory_space<vmem>>, %arg7: memref<384x128xbf16, #tpu.memory_space<vmem>>, %arg8: memref<1x16x128xf32, #tpu.memory_space<vmem>>, %arg9: memref<1x1x128xf32, #tpu.memory_space<vmem>>, %arg10: memref<1x1x128xf32, #tpu.memory_space<vmem>>, %arg11: memref<1x18x128xbf16, #tpu.memory_space<vmem>>) attributes {dimension_semantics = [#tpu.dimension_semantics<parallel>], iteration_bounds = array<i64: 2>, scalar_prefetch = 0 : i64, scratch_operands = 1 : i64, tpu.core_type = #tpu.core_type<tc>, window_params = [{transform_indices = @transform_0, window_bounds = array<i64: 1, 16, 64>}, {transform_indices = @transform_1, window_bounds = array<i64: 1, 8, 64>}, {pipeline_mode = #tpu.pipeline_mode<synchronous>, transform_indices = @transform_2, window_bounds = array<i64: 64, 128>}, {pipeline_mode = #tpu.pipeline_mode<synchronous>, transform_indices = @transform_3, window_bounds = array<i64: 1, 128>}, {pipeline_mode = #tpu.pipeline_mode<synchronous>, transform_indices = @transform_4, window_bounds = array<i64: 16, 8>}, {pipeline_mode = #tpu.pipeline_mode<synchronous>, transform_indices = @transform_5, window_bounds = array<i64: 64, 128>}, {pipeline_mode = #tpu.pipeline_mode<synchronous>, transform_indices = @transform_6, window_bounds = array<i64: 384, 128>}, {transform_indices = @transform_7, window_bounds = array<i64: 1, 16, 128>}, {transform_indices = @transform_8, window_bounds = array<i64: 1, 1, 128>}, {transform_indices = @transform_9, window_bounds = array<i64: 1, 1, 128>}]} {
    %cst = arith.constant 0.000000e+00 : bf16
    %0 = vector.broadcast %cst : bf16 to vector<1x1x128xbf16>
    %c0 = arith.constant 0 : index
    %c0_0 = arith.constant 0 : index
    %c0_1 = arith.constant 0 : index
    %1 = vector.load %arg11[%c0, %c0_0, %c0_1] : memref<1x18x128xbf16, #tpu.memory_space<vmem>>, vector<1x1x128xbf16>
    tpu.vector_store %arg11[%c0, %c0_0, %c0_1], %0 {strides = array<i32>} : memref<1x18x128xbf16, #tpu.memory_space<vmem>>, vector<1x1x128xbf16>,
    %cst_2 = arith.constant 0.000000e+00 : bf16
    %2 = vector.broadcast %cst_2 : bf16 to vector<1x1x128xbf16>
    %c0_3 = arith.constant 0 : index
    %c17 = arith.constant 17 : index
    %c0_4 = arith.constant 0 : index
    %3 = vector.load %arg11[%c0_3, %c17, %c0_4] : memref<1x18x128xbf16, #tpu.memory_space<vmem>>, vector<1x1x128xbf16>
    tpu.vector_store %arg11[%c0_3, %c17, %c0_4], %2 {strides = array<i32>} : memref<1x18x128xbf16, #tpu.memory_space<vmem>>, vector<1x1x128xbf16>,
    %c0_5 = arith.constant 0 : index
    %c0_6 = arith.constant 0 : index
    %c0_7 = arith.constant 0 : index
    %4 = vector.load %arg1[%c0_5, %c0_6, %c0_7] : memref<1x16x64xbf16, #tpu.memory_space<vmem>>, vector<1x16x64xbf16>
    %5 = vector.shape_cast %4 : vector<1x16x64xbf16> to vector<16x64xbf16>
    %c0_8 = arith.constant 0 : index
    %c0_9 = arith.constant 0 : index
    %6 = vector.load %arg3[%c0_8, %c0_9] : memref<64x128xbf16, #tpu.memory_space<vmem>>, vector<64x128xbf16>
    %cst_10 = arith.constant dense<0.000000e+00> : vector<16x128xf32>
    %7 = tpu.matmul %5, %6, %cst_10 {dimension_numbers = #tpu.dot_dimension_numbers<[1], [0], [0], [1], [0, 0, 1, 1], [], []>} : vector<16x64xbf16>, vector<64x128xbf16>, vector<16x128xf32> -> vector<16x128xf32>
    %c0_11 = arith.constant 0 : index
    %c0_12 = arith.constant 0 : index
    %8 = vector.load %arg4[%c0_11, %c0_12] : memref<1x128xf32, #tpu.memory_space<vmem>>, vector<1x128xf32>
    %9 = vector.broadcast %8 : vector<1x128xf32> to vector<16x128xf32>
    %10 = arith.addf %7, %9 : vector<16x128xf32>
    %c0_13 = arith.constant 0 : index
    %c0_14 = arith.constant 0 : index
    %c0_15 = arith.constant 0 : index
    %11 = vector.load %arg2[%c0_13, %c0_14, %c0_15] : memref<1x8x64xbf16, #tpu.memory_space<vmem>>, vector<1x8x64xbf16>
    %12 = vector.shape_cast %11 : vector<1x8x64xbf16> to vector<8x64xbf16>
    %c0_16 = arith.constant 0 : index
    %c0_17 = arith.constant 0 : index
    %13 = vector.load %arg6[%c0_16, %c0_17] : memref<64x128xbf16, #tpu.memory_space<vmem>>, vector<64x128xbf16>
    %cst_18 = arith.constant dense<0.000000e+00> : vector<8x128xf32>
    %14 = tpu.matmul %12, %13, %cst_18 {dimension_numbers = #tpu.dot_dimension_numbers<[1], [0], [0], [1], [0, 0, 1, 1], [], []>} : vector<8x64xbf16>, vector<64x128xbf16>, vector<8x128xf32> -> vector<8x128xf32>
    %c0_19 = arith.constant 0 : index
    %c0_20 = arith.constant 0 : index
    %15 = vector.load %arg5[%c0_19, %c0_20] : memref<16x8xbf16, #tpu.memory_space<vmem>>, vector<16x8xbf16>
    %16 = arith.truncf %14 : vector<8x128xf32> to vector<8x128xbf16>
    %cst_21 = arith.constant dense<0.000000e+00> : vector<16x128xf32>
    %17 = tpu.matmul %15, %16, %cst_21 {dimension_numbers = #tpu.dot_dimension_numbers<[1], [0], [0], [1], [0, 0, 1, 1], [], []>} : vector<16x8xbf16>, vector<8x128xbf16>, vector<16x128xf32> -> vector<16x128xf32>
    %18 = arith.subf %10, %17 : vector<16x128xf32>
    %19 = vector.shape_cast %18 : vector<16x128xf32> to vector<1x16x128xf32>
    %20 = arith.truncf %19 : vector<1x16x128xf32> to vector<1x16x128xbf16>
    %c0_22 = arith.constant 0 : index
    %c1 = arith.constant 1 : index
    %c0_23 = arith.constant 0 : index
    %21 = vector.load %arg11[%c0_22, %c1, %c0_23] : memref<1x18x128xbf16, #tpu.memory_space<vmem>>, vector<1x16x128xbf16>
    tpu.vector_store %arg11[%c0_22, %c1, %c0_23], %20 {strides = array<i32>} : memref<1x18x128xbf16, #tpu.memory_space<vmem>>, vector<1x16x128xbf16>,
    %c0_24 = arith.constant 0 : index
    %c0_25 = arith.constant 0 : index
    %c0_26 = arith.constant 0 : index
    %22 = vector.load %arg11[%c0_24, %c0_25, %c0_26] : memref<1x18x128xbf16, #tpu.memory_space<vmem>>, vector<1x18x128xbf16>
    %23 = vector.extract_strided_slice %22 {offsets = [0, 0, 0], sizes = [1, 16, 128], strides = [1, 1, 1]} : vector<1x18x128xbf16> to vector<1x16x128xbf16>
    %24 = vector.extract_strided_slice %22 {offsets = [0, 1, 0], sizes = [1, 16, 128], strides = [1, 1, 1]} : vector<1x18x128xbf16> to vector<1x16x128xbf16>
    %25 = vector.extract_strided_slice %22 {offsets = [0, 2, 0], sizes = [1, 16, 128], strides = [1, 1, 1]} : vector<1x18x128xbf16> to vector<1x16x128xbf16>
    %26 = tpu.concatenate %23, %24, %25 in 2 : vector<1x16x128xbf16>, vector<1x16x128xbf16>, vector<1x16x128xbf16> -> vector<1x16x384xbf16>
    %27 = vector.shape_cast %26 : vector<1x16x384xbf16> to vector<16x384xbf16>
    %c0_27 = arith.constant 0 : index
    %c0_28 = arith.constant 0 : index
    %28 = vector.load %arg7[%c0_27, %c0_28] : memref<384x128xbf16, #tpu.memory_space<vmem>>, vector<384x128xbf16>
    %cst_29 = arith.constant dense<0.000000e+00> : vector<16x128xf32>
    %29 = tpu.matmul %27, %28, %cst_29 {dimension_numbers = #tpu.dot_dimension_numbers<[1], [0], [0], [1], [0, 0, 1, 1], [], []>} : vector<16x384xbf16>, vector<384x128xbf16>, vector<16x128xf32> -> vector<16x128xf32>
    %30 = vector.shape_cast %29 : vector<16x128xf32> to vector<1x16x128xf32>
    %c0_30 = arith.constant 0 : index
    %c0_31 = arith.constant 0 : index
    %c0_32 = arith.constant 0 : index
    %31 = vector.load %arg8[%c0_30, %c0_31, %c0_32] : memref<1x16x128xf32, #tpu.memory_space<vmem>>, vector<1x16x128xf32>
    tpu.vector_store %arg8[%c0_30, %c0_31, %c0_32], %30 {strides = array<i32>} : memref<1x16x128xf32, #tpu.memory_space<vmem>>, vector<1x16x128xf32>,
    %cst_33 = arith.constant dense<0.000000e+00> : vector<128xf32>
    %32 = vector.multi_reduction <add>, %29, %cst_33 [0] : vector<16x128xf32> to vector<128xf32>
    %33 = vector.shape_cast %32 : vector<128xf32> to vector<1x128xf32>
    %c0_34 = arith.constant 0 : index
    %c0_35 = arith.constant 0 : index
    %c0_36 = arith.constant 0 : index
    %34 = vector.load %arg9[%c0_34, %c0_35, %c0_36] : memref<1x1x128xf32, #tpu.memory_space<vmem>>, vector<1x1x128xf32>
    %35 = vector.shape_cast %34 : vector<1x1x128xf32> to vector<1x128xf32>
    %36 = vector.shape_cast %33 : vector<1x128xf32> to vector<1x1x128xf32>
    tpu.vector_store %arg9[%c0_34, %c0_35, %c0_36], %36 {strides = array<i32>} : memref<1x1x128xf32, #tpu.memory_space<vmem>>, vector<1x1x128xf32>,
    %37 = arith.mulf %29, %29 : vector<16x128xf32>
    %cst_37 = arith.constant dense<0.000000e+00> : vector<128xf32>
    %38 = vector.multi_reduction <add>, %37, %cst_37 [0] : vector<16x128xf32> to vector<128xf32>
    %39 = vector.shape_cast %38 : vector<128xf32> to vector<1x128xf32>
    %c0_38 = arith.constant 0 : index
    %c0_39 = arith.constant 0 : index
    %c0_40 = arith.constant 0 : index
    %40 = vector.load %arg10[%c0_38, %c0_39, %c0_40] : memref<1x1x128xf32, #tpu.memory_space<vmem>>, vector<1x1x128xf32>
    %41 = vector.shape_cast %40 : vector<1x1x128xf32> to vector<1x128xf32>
    %42 = vector.shape_cast %39 : vector<1x128xf32> to vector<1x1x128xf32>
    tpu.vector_store %arg10[%c0_38, %c0_39, %c0_40], %42 {strides = array<i32>} : memref<1x1x128xf32, #tpu.memory_space<vmem>>, vector<1x1x128xf32>,
    return
  }
  func.func @transform_0(%arg0: i32) -> (i32, i32, i32) {
    %c0_i32 = arith.constant 0 : i32
    %c0_i32_0 = arith.constant 0 : i32
    %c0_i32_1 = arith.constant 0 : i32
    return %arg0, %c0_i32, %c0_i32_0 : i32, i32, i32
  }
  func.func @transform_1(%arg0: i32) -> (i32, i32, i32) {
    %c0_i32 = arith.constant 0 : i32
    %c0_i32_0 = arith.constant 0 : i32
    %c0_i32_1 = arith.constant 0 : i32
    return %arg0, %c0_i32, %c0_i32_0 : i32, i32, i32
  }
  func.func @transform_2(%arg0: i32) -> (i32, i32) {
    %c0_i32 = arith.constant 0 : i32
    %c0_i32_0 = arith.constant 0 : i32
    %c0_i32_1 = arith.constant 0 : i32
    return %c0_i32, %c0_i32_0 : i32, i32
  }
  func.func @transform_3(%arg0: i32) -> (i32, i32) {
    %c0_i32 = arith.constant 0 : i32
    %c0_i32_0 = arith.constant 0 : i32
    %c0_i32_1 = arith.constant 0 : i32
    return %c0_i32, %c0_i32_0 : i32, i32
  }
  func.func @transform_4(%arg0: i32) -> (i32, i32) {
    %c0_i32 = arith.constant 0 : i32
    %c0_i32_0 = arith.constant 0 : i32
    %c0_i32_1 = arith.constant 0 : i32
    return %c0_i32, %c0_i32_0 : i32, i32
  }
  func.func @transform_5(%arg0: i32) -> (i32, i32) {
    %c0_i32 = arith.constant 0 : i32
    %c0_i32_0 = arith.constant 0 : i32
    %c0_i32_1 = arith.constant 0 : i32
    return %c0_i32, %c0_i32_0 : i32, i32
  }
  func.func @transform_6(%arg0: i32) -> (i32, i32) {
    %c0_i32 = arith.constant 0 : i32
    %c0_i32_0 = arith.constant 0 : i32
    %c0_i32_1 = arith.constant 0 : i32
    return %c0_i32, %c0_i32_0 : i32, i32
  }
  func.func @transform_7(%arg0: i32) -> (i32, i32, i32) {
    %c0_i32 = arith.constant 0 : i32
    %c0_i32_0 = arith.constant 0 : i32
    %c0_i32_1 = arith.constant 0 : i32
    return %arg0, %c0_i32, %c0_i32_0 : i32, i32, i32
  }
  func.func @transform_8(%arg0: i32) -> (i32, i32, i32) {
    %c0_i32 = arith.constant 0 : i32
    %c0_i32_0 = arith.constant 0 : i32
    %c0_i32_1 = arith.constant 0 : i32
    return %arg0, %c0_i32, %c0_i32_0 : i32, i32, i32
  }
  func.func @transform_9(%arg0: i32) -> (i32, i32, i32) {
    %c0_i32 = arith.constant 0 : i32
    %c0_i32_0 = arith.constant 0 : i32
    %c0_i32_1 = arith.constant 0 : i32
    return %arg0, %c0_i32, %c0_i32_0 : i32, i32, i32
  }
}

module attributes {stable_mosaic.version = 11 : i64} {
  func.func @_csam_kernel(%arg0: i32, %arg1: memref<1x16x128xf32, #tpu.memory_space<vmem>>, %arg2: memref<1x128xf32, #tpu.memory_space<vmem>>, %arg3: memref<1x128xf32, #tpu.memory_space<vmem>>, %arg4: memref<8x64xf32, #tpu.memory_space<vmem>>, %arg5: memref<64x8xf32, #tpu.memory_space<vmem>>, %arg6: memref<8x128xf32, #tpu.memory_space<vmem>>, %arg7: memref<128x8xf32, #tpu.memory_space<vmem>>, %arg8: memref<128x16xf32, #tpu.memory_space<vmem>>, %arg9: memref<128x16xf32, #tpu.memory_space<vmem>>, %arg10: memref<16x128xf32, #tpu.memory_space<vmem>>, %arg11: memref<224x16xf32, #tpu.memory_space<vmem>>, %arg12: memref<384x128xbf16, #tpu.memory_space<vmem>>, %arg13: memref<1x128xf32, #tpu.memory_space<vmem>>, %arg14: memref<1x16x128xf32, #tpu.memory_space<vmem>>, %arg15: memref<1x1x128xf32, #tpu.memory_space<vmem>>, %arg16: memref<1x1x128xf32, #tpu.memory_space<vmem>>, %arg17: memref<1x22x32xf32, #tpu.memory_space<vmem>>, %arg18: memref<1x18x128xbf16, #tpu.memory_space<vmem>>) attributes {dimension_semantics = [#tpu.dimension_semantics<parallel>], iteration_bounds = array<i64: 2>, scalar_prefetch = 0 : i64, scratch_operands = 2 : i64, tpu.core_type = #tpu.core_type<tc>, window_params = [{transform_indices = @transform_0, window_bounds = array<i64: 1, 16, 128>}, {pipeline_mode = #tpu.pipeline_mode<synchronous>, transform_indices = @transform_1, window_bounds = array<i64: 1, 128>}, {pipeline_mode = #tpu.pipeline_mode<synchronous>, transform_indices = @transform_2, window_bounds = array<i64: 1, 128>}, {pipeline_mode = #tpu.pipeline_mode<synchronous>, transform_indices = @transform_3, window_bounds = array<i64: 8, 64>}, {pipeline_mode = #tpu.pipeline_mode<synchronous>, transform_indices = @transform_4, window_bounds = array<i64: 64, 8>}, {pipeline_mode = #tpu.pipeline_mode<synchronous>, transform_indices = @transform_5, window_bounds = array<i64: 8, 128>}, {pipeline_mode = #tpu.pipeline_mode<synchronous>, transform_indices = @transform_6, window_bounds = array<i64: 128, 8>}, {pipeline_mode = #tpu.pipeline_mode<synchronous>, transform_indices = @transform_7, window_bounds = array<i64: 128, 16>}, {pipeline_mode = #tpu.pipeline_mode<synchronous>, transform_indices = @transform_8, window_bounds = array<i64: 128, 16>}, {pipeline_mode = #tpu.pipeline_mode<synchronous>, transform_indices = @transform_9, window_bounds = array<i64: 16, 128>}, {pipeline_mode = #tpu.pipeline_mode<synchronous>, transform_indices = @transform_10, window_bounds = array<i64: 224, 16>}, {pipeline_mode = #tpu.pipeline_mode<synchronous>, transform_indices = @transform_11, window_bounds = array<i64: 384, 128>}, {pipeline_mode = #tpu.pipeline_mode<synchronous>, transform_indices = @transform_12, window_bounds = array<i64: 1, 128>}, {transform_indices = @transform_13, window_bounds = array<i64: 1, 16, 128>}, {transform_indices = @transform_14, window_bounds = array<i64: 1, 1, 128>}, {transform_indices = @transform_15, window_bounds = array<i64: 1, 1, 128>}]} {
    %cst = arith.constant 0.000000e+00 : f32
    %0 = vector.broadcast %cst : f32 to vector<1x3x32xf32>
    %c0 = arith.constant 0 : index
    %c0_0 = arith.constant 0 : index
    %c0_1 = arith.constant 0 : index
    %1 = vector.load %arg17[%c0, %c0_0, %c0_1] : memref<1x22x32xf32, #tpu.memory_space<vmem>>, vector<1x3x32xf32>
    tpu.vector_store %arg17[%c0, %c0_0, %c0_1], %0 {strides = array<i32>} : memref<1x22x32xf32, #tpu.memory_space<vmem>>, vector<1x3x32xf32>,
    %cst_2 = arith.constant 0.000000e+00 : f32
    %2 = vector.broadcast %cst_2 : f32 to vector<1x3x32xf32>
    %c0_3 = arith.constant 0 : index
    %c19 = arith.constant 19 : index
    %c0_4 = arith.constant 0 : index
    %3 = vector.load %arg17[%c0_3, %c19, %c0_4] : memref<1x22x32xf32, #tpu.memory_space<vmem>>, vector<1x3x32xf32>
    tpu.vector_store %arg17[%c0_3, %c19, %c0_4], %2 {strides = array<i32>} : memref<1x22x32xf32, #tpu.memory_space<vmem>>, vector<1x3x32xf32>,
    %cst_5 = arith.constant 0.000000e+00 : bf16
    %4 = vector.broadcast %cst_5 : bf16 to vector<1x1x128xbf16>
    %c0_6 = arith.constant 0 : index
    %c0_7 = arith.constant 0 : index
    %c0_8 = arith.constant 0 : index
    %5 = vector.load %arg18[%c0_6, %c0_7, %c0_8] : memref<1x18x128xbf16, #tpu.memory_space<vmem>>, vector<1x1x128xbf16>
    tpu.vector_store %arg18[%c0_6, %c0_7, %c0_8], %4 {strides = array<i32>} : memref<1x18x128xbf16, #tpu.memory_space<vmem>>, vector<1x1x128xbf16>,
    %cst_9 = arith.constant 0.000000e+00 : bf16
    %6 = vector.broadcast %cst_9 : bf16 to vector<1x1x128xbf16>
    %c0_10 = arith.constant 0 : index
    %c17 = arith.constant 17 : index
    %c0_11 = arith.constant 0 : index
    %7 = vector.load %arg18[%c0_10, %c17, %c0_11] : memref<1x18x128xbf16, #tpu.memory_space<vmem>>, vector<1x1x128xbf16>
    tpu.vector_store %arg18[%c0_10, %c17, %c0_11], %6 {strides = array<i32>} : memref<1x18x128xbf16, #tpu.memory_space<vmem>>, vector<1x1x128xbf16>,
    %c0_12 = arith.constant 0 : index
    %c0_13 = arith.constant 0 : index
    %c0_14 = arith.constant 0 : index
    %8 = vector.load %arg1[%c0_12, %c0_13, %c0_14] : memref<1x16x128xf32, #tpu.memory_space<vmem>>, vector<1x16x128xf32>
    %c0_15 = arith.constant 0 : index
    %c0_16 = arith.constant 0 : index
    %9 = vector.load %arg2[%c0_15, %c0_16] : memref<1x128xf32, #tpu.memory_space<vmem>>, vector<1x128xf32>
    %10 = vector.shape_cast %9 : vector<1x128xf32> to vector<1x1x128xf32>
    %11 = vector.broadcast %10 : vector<1x1x128xf32> to vector<1x16x128xf32>
    %12 = arith.mulf %8, %11 : vector<1x16x128xf32>
    %c0_17 = arith.constant 0 : index
    %c0_18 = arith.constant 0 : index
    %13 = vector.load %arg3[%c0_17, %c0_18] : memref<1x128xf32, #tpu.memory_space<vmem>>, vector<1x128xf32>
    %14 = vector.shape_cast %13 : vector<1x128xf32> to vector<1x1x128xf32>
    %15 = vector.broadcast %14 : vector<1x1x128xf32> to vector<1x16x128xf32>
    %16 = arith.addf %12, %15 : vector<1x16x128xf32>
    %cst_19 = arith.constant 0.000000e+00 : f32
    %17 = vector.broadcast %cst_19 : f32 to vector<1x16x128xf32>
    %18 = arith.maximumf %16, %17 : vector<1x16x128xf32>
    %19 = vector.shape_cast %18 : vector<1x16x128xf32> to vector<16x128xf32>
    %cst_20 = arith.constant dense<0.000000e+00> : vector<1x128xf32>
    %20 = vector.multi_reduction <add>, %18, %cst_20 [1] : vector<1x16x128xf32> to vector<1x128xf32>
    %cst_21 = arith.constant dense<0xFF800000> : vector<1x128xf32>
    %21 = vector.multi_reduction <maximumf>, %18, %cst_21 [1] : vector<1x16x128xf32> to vector<1x128xf32>
    %c0_22 = arith.constant 0 : index
    %c0_23 = arith.constant 0 : index
    %22 = vector.load %arg7[%c0_22, %c0_23] : memref<128x8xf32, #tpu.memory_space<vmem>>, vector<128x8xf32>
    %cst_24 = arith.constant dense<0.000000e+00> : vector<1x8xf32>
    %23 = tpu.matmul %20, %22, %cst_24 {dimension_numbers = #tpu.dot_dimension_numbers<[1], [0], [0], [1], [0, 0, 1, 1], [], []>} : vector<1x128xf32>, vector<128x8xf32>, vector<1x8xf32> -> vector<1x8xf32>
    %cst_25 = arith.constant 3.906250e-03 : f32
    %24 = vector.broadcast %cst_25 : f32 to vector<1x8xf32>
    %25 = arith.mulf %23, %24 : vector<1x8xf32>
    %c120_i32 = arith.constant 120 : i32
    %26 = tpu.dynamic_rotate %21 by %c120_i32 dim 1 : vector<1x128xf32>, i32 -> vector<1x128xf32>
    %27 = arith.maximumf %21, %26 : vector<1x128xf32>
    %c112_i32 = arith.constant 112 : i32
    %28 = tpu.dynamic_rotate %27 by %c112_i32 dim 1 : vector<1x128xf32>, i32 -> vector<1x128xf32>
    %29 = arith.maximumf %27, %28 : vector<1x128xf32>
    %c96_i32 = arith.constant 96 : i32
    %30 = tpu.dynamic_rotate %29 by %c96_i32 dim 1 : vector<1x128xf32>, i32 -> vector<1x128xf32>
    %31 = arith.maximumf %29, %30 : vector<1x128xf32>
    %c64_i32 = arith.constant 64 : i32
    %32 = tpu.dynamic_rotate %31 by %c64_i32 dim 1 : vector<1x128xf32>, i32 -> vector<1x128xf32>
    %33 = arith.maximumf %31, %32 : vector<1x128xf32>
    %34 = vector.extract_strided_slice %33 {offsets = [0, 0], sizes = [1, 8], strides = [1, 1]} : vector<1x128xf32> to vector<1x8xf32>
    %35 = tpu.concatenate %25, %34 in 0 : vector<1x8xf32>, vector<1x8xf32> -> vector<2x8xf32>
    %c0_26 = arith.constant 0 : index
    %c0_27 = arith.constant 0 : index
    %36 = vector.load %arg4[%c0_26, %c0_27] : memref<8x64xf32, #tpu.memory_space<vmem>>, vector<8x64xf32>
    %cst_28 = arith.constant dense<0.000000e+00> : vector<2x64xf32>
    %37 = tpu.matmul %35, %36, %cst_28 {dimension_numbers = #tpu.dot_dimension_numbers<[1], [0], [0], [1], [0, 0, 1, 1], [], []>} : vector<2x8xf32>, vector<8x64xf32>, vector<2x64xf32> -> vector<2x64xf32>
    %cst_29 = arith.constant 0.000000e+00 : f32
    %38 = vector.broadcast %cst_29 : f32 to vector<2x64xf32>
    %39 = arith.cmpf ogt, %37, %38 : vector<2x64xf32>
    %cst_30 = arith.constant 0.00999999977 : f32
    %40 = vector.broadcast %cst_30 : f32 to vector<2x64xf32>
    %41 = arith.mulf %40, %37 : vector<2x64xf32>
    %42 = arith.select %39, %37, %41 : vector<2x64xi1>, vector<2x64xf32>
    %c0_31 = arith.constant 0 : index
    %c0_32 = arith.constant 0 : index
    %43 = vector.load %arg5[%c0_31, %c0_32] : memref<64x8xf32, #tpu.memory_space<vmem>>, vector<64x8xf32>
    %cst_33 = arith.constant dense<0.000000e+00> : vector<2x8xf32>
    %44 = tpu.matmul %42, %43, %cst_33 {dimension_numbers = #tpu.dot_dimension_numbers<[1], [0], [0], [1], [0, 0, 1, 1], [], []>} : vector<2x64xf32>, vector<64x8xf32>, vector<2x8xf32> -> vector<2x8xf32>
    %45 = vector.extract_strided_slice %44 {offsets = [0, 0], sizes = [1, 8], strides = [1, 1]} : vector<2x8xf32> to vector<1x8xf32>
    %46 = vector.extract_strided_slice %44 {offsets = [1, 0], sizes = [1, 8], strides = [1, 1]} : vector<2x8xf32> to vector<1x8xf32>
    %47 = arith.addf %45, %46 : vector<1x8xf32>
    %48 = arith.negf %47 : vector<1x8xf32>
    %49 = math.exp %48 : vector<1x8xf32>
    %cst_34 = arith.constant 1.000000e+00 : f32
    %50 = vector.broadcast %cst_34 : f32 to vector<1x8xf32>
    %51 = arith.addf %50, %49 : vector<1x8xf32>
    %52 = arith.divf %50, %51 : vector<1x8xf32>
    %c0_35 = arith.constant 0 : index
    %c0_36 = arith.constant 0 : index
    %53 = vector.load %arg6[%c0_35, %c0_36] : memref<8x128xf32, #tpu.memory_space<vmem>>, vector<8x128xf32>
    %cst_37 = arith.constant dense<0.000000e+00> : vector<1x128xf32>
    %54 = tpu.matmul %52, %53, %cst_37 {dimension_numbers = #tpu.dot_dimension_numbers<[1], [0], [0], [1], [0, 0, 1, 1], [], []>} : vector<1x8xf32>, vector<8x128xf32>, vector<1x128xf32> -> vector<1x128xf32>
    %c0_38 = arith.constant 0 : index
    %c0_39 = arith.constant 0 : index
    %55 = vector.load %arg8[%c0_38, %c0_39] : memref<128x16xf32, #tpu.memory_space<vmem>>, vector<128x16xf32>
    %cst_40 = arith.constant dense<0.000000e+00> : vector<16x16xf32>
    %56 = tpu.matmul %19, %55, %cst_40 {dimension_numbers = #tpu.dot_dimension_numbers<[1], [0], [0], [1], [0, 0, 1, 1], [], []>} : vector<16x128xf32>, vector<128x16xf32>, vector<16x16xf32> -> vector<16x16xf32>
    %c127_i32 = arith.constant 127 : i32
    %57 = tpu.dynamic_rotate %19 by %c127_i32 dim 1 : vector<16x128xf32>, i32 -> vector<16x128xf32>
    %58 = arith.maximumf %19, %57 : vector<16x128xf32>
    %c126_i32 = arith.constant 126 : i32
    %59 = tpu.dynamic_rotate %58 by %c126_i32 dim 1 : vector<16x128xf32>, i32 -> vector<16x128xf32>
    %60 = arith.maximumf %58, %59 : vector<16x128xf32>
    %c124_i32 = arith.constant 124 : i32
    %61 = tpu.dynamic_rotate %60 by %c124_i32 dim 1 : vector<16x128xf32>, i32 -> vector<16x128xf32>
    %62 = arith.maximumf %60, %61 : vector<16x128xf32>
    %c0_41 = arith.constant 0 : index
    %c0_42 = arith.constant 0 : index
    %63 = vector.load %arg9[%c0_41, %c0_42] : memref<128x16xf32, #tpu.memory_space<vmem>>, vector<128x16xf32>
    %cst_43 = arith.constant dense<0.000000e+00> : vector<16x16xf32>
    %64 = tpu.matmul %62, %63, %cst_43 {dimension_numbers = #tpu.dot_dimension_numbers<[1], [0], [0], [1], [0, 0, 1, 1], [], []>} : vector<16x128xf32>, vector<128x16xf32>, vector<16x16xf32> -> vector<16x16xf32>
    %65 = tpu.concatenate %56, %64 in 1 : vector<16x16xf32>, vector<16x16xf32> -> vector<16x32xf32>
    %66 = vector.shape_cast %65 : vector<16x32xf32> to vector<1x16x32xf32>
    %c0_44 = arith.constant 0 : index
    %c3 = arith.constant 3 : index
    %c0_45 = arith.constant 0 : index
    %67 = vector.load %arg17[%c0_44, %c3, %c0_45] : memref<1x22x32xf32, #tpu.memory_space<vmem>>, vector<1x16x32xf32>
    tpu.vector_store %arg17[%c0_44, %c3, %c0_45], %66 {strides = array<i32>} : memref<1x22x32xf32, #tpu.memory_space<vmem>>, vector<1x16x32xf32>,
    %c0_46 = arith.constant 0 : index
    %c0_47 = arith.constant 0 : index
    %c0_48 = arith.constant 0 : index
    %68 = vector.load %arg17[%c0_46, %c0_47, %c0_48] : memref<1x22x32xf32, #tpu.memory_space<vmem>>, vector<1x22x32xf32>
    %69 = vector.extract_strided_slice %68 {offsets = [0, 0, 0], sizes = [1, 16, 32], strides = [1, 1, 1]} : vector<1x22x32xf32> to vector<1x16x32xf32>
    %70 = vector.extract_strided_slice %68 {offsets = [0, 1, 0], sizes = [1, 16, 32], strides = [1, 1, 1]} : vector<1x22x32xf32> to vector<1x16x32xf32>
    %71 = vector.extract_strided_slice %68 {offsets = [0, 2, 0], sizes = [1, 16, 32], strides = [1, 1, 1]} : vector<1x22x32xf32> to vector<1x16x32xf32>
    %72 = vector.extract_strided_slice %68 {offsets = [0, 3, 0], sizes = [1, 16, 32], strides = [1, 1, 1]} : vector<1x22x32xf32> to vector<1x16x32xf32>
    %73 = vector.extract_strided_slice %68 {offsets = [0, 4, 0], sizes = [1, 16, 32], strides = [1, 1, 1]} : vector<1x22x32xf32> to vector<1x16x32xf32>
    %74 = vector.extract_strided_slice %68 {offsets = [0, 5, 0], sizes = [1, 16, 32], strides = [1, 1, 1]} : vector<1x22x32xf32> to vector<1x16x32xf32>
    %75 = vector.extract_strided_slice %68 {offsets = [0, 6, 0], sizes = [1, 16, 32], strides = [1, 1, 1]} : vector<1x22x32xf32> to vector<1x16x32xf32>
    %76 = tpu.concatenate %69, %70, %71, %72, %73, %74, %75 in 2 : vector<1x16x32xf32>, vector<1x16x32xf32>, vector<1x16x32xf32>, vector<1x16x32xf32>, vector<1x16x32xf32>, vector<1x16x32xf32>, vector<1x16x32xf32> -> vector<1x16x224xf32>
    %77 = vector.shape_cast %76 : vector<1x16x224xf32> to vector<16x224xf32>
    %c0_49 = arith.constant 0 : index
    %c0_50 = arith.constant 0 : index
    %78 = vector.load %arg11[%c0_49, %c0_50] : memref<224x16xf32, #tpu.memory_space<vmem>>, vector<224x16xf32>
    %cst_51 = arith.constant dense<0.000000e+00> : vector<16x16xf32>
    %79 = tpu.matmul %77, %78, %cst_51 {dimension_numbers = #tpu.dot_dimension_numbers<[1], [0], [0], [1], [0, 0, 1, 1], [], []>} : vector<16x224xf32>, vector<224x16xf32>, vector<16x16xf32> -> vector<16x16xf32>
    %80 = arith.negf %79 : vector<16x16xf32>
    %81 = math.exp %80 : vector<16x16xf32>
    %cst_52 = arith.constant 1.000000e+00 : f32
    %82 = vector.broadcast %cst_52 : f32 to vector<16x16xf32>
    %83 = arith.addf %82, %81 : vector<16x16xf32>
    %84 = arith.divf %82, %83 : vector<16x16xf32>
    %c0_53 = arith.constant 0 : index
    %c0_54 = arith.constant 0 : index
    %85 = vector.load %arg10[%c0_53, %c0_54] : memref<16x128xf32, #tpu.memory_space<vmem>>, vector<16x128xf32>
    %cst_55 = arith.constant dense<0.000000e+00> : vector<16x128xf32>
    %86 = tpu.matmul %84, %85, %cst_55 {dimension_numbers = #tpu.dot_dimension_numbers<[1], [0], [0], [1], [0, 0, 1, 1], [], []>} : vector<16x16xf32>, vector<16x128xf32>, vector<16x128xf32> -> vector<16x128xf32>
    %87 = vector.shape_cast %86 : vector<16x128xf32> to vector<1x16x128xf32>
    %88 = vector.shape_cast %54 : vector<1x128xf32> to vector<1x1x128xf32>
    %cst_56 = arith.constant 1.000000e+00 : f32
    %89 = vector.broadcast %cst_56 : f32 to vector<1x1x128xf32>
    %90 = arith.addf %89, %88 : vector<1x1x128xf32>
    %91 = vector.broadcast %90 : vector<1x1x128xf32> to vector<1x16x128xf32>
    %92 = arith.addf %91, %87 : vector<1x16x128xf32>
    %93 = arith.mulf %18, %92 : vector<1x16x128xf32>
    %94 = arith.truncf %93 : vector<1x16x128xf32> to vector<1x16x128xbf16>
    %c0_57 = arith.constant 0 : index
    %c1 = arith.constant 1 : index
    %c0_58 = arith.constant 0 : index
    %95 = vector.load %arg18[%c0_57, %c1, %c0_58] : memref<1x18x128xbf16, #tpu.memory_space<vmem>>, vector<1x16x128xbf16>
    tpu.vector_store %arg18[%c0_57, %c1, %c0_58], %94 {strides = array<i32>} : memref<1x18x128xbf16, #tpu.memory_space<vmem>>, vector<1x16x128xbf16>,
    %c0_59 = arith.constant 0 : index
    %c0_60 = arith.constant 0 : index
    %c0_61 = arith.constant 0 : index
    %96 = vector.load %arg18[%c0_59, %c0_60, %c0_61] : memref<1x18x128xbf16, #tpu.memory_space<vmem>>, vector<1x18x128xbf16>
    %97 = vector.extract_strided_slice %96 {offsets = [0, 0, 0], sizes = [1, 16, 128], strides = [1, 1, 1]} : vector<1x18x128xbf16> to vector<1x16x128xbf16>
    %98 = vector.extract_strided_slice %96 {offsets = [0, 1, 0], sizes = [1, 16, 128], strides = [1, 1, 1]} : vector<1x18x128xbf16> to vector<1x16x128xbf16>
    %99 = vector.extract_strided_slice %96 {offsets = [0, 2, 0], sizes = [1, 16, 128], strides = [1, 1, 1]} : vector<1x18x128xbf16> to vector<1x16x128xbf16>
    %100 = tpu.concatenate %97, %98, %99 in 2 : vector<1x16x128xbf16>, vector<1x16x128xbf16>, vector<1x16x128xbf16> -> vector<1x16x384xbf16>
    %101 = vector.shape_cast %100 : vector<1x16x384xbf16> to vector<16x384xbf16>
    %c0_62 = arith.constant 0 : index
    %c0_63 = arith.constant 0 : index
    %102 = vector.load %arg12[%c0_62, %c0_63] : memref<384x128xbf16, #tpu.memory_space<vmem>>, vector<384x128xbf16>
    %cst_64 = arith.constant dense<0.000000e+00> : vector<16x128xf32>
    %103 = tpu.matmul %101, %102, %cst_64 {dimension_numbers = #tpu.dot_dimension_numbers<[1], [0], [0], [1], [0, 0, 1, 1], [], []>} : vector<16x384xbf16>, vector<384x128xbf16>, vector<16x128xf32> -> vector<16x128xf32>
    %c0_65 = arith.constant 0 : index
    %c0_66 = arith.constant 0 : index
    %104 = vector.load %arg13[%c0_65, %c0_66] : memref<1x128xf32, #tpu.memory_space<vmem>>, vector<1x128xf32>
    %105 = vector.broadcast %104 : vector<1x128xf32> to vector<16x128xf32>
    %106 = arith.addf %103, %105 : vector<16x128xf32>
    %107 = vector.shape_cast %106 : vector<16x128xf32> to vector<1x16x128xf32>
    %c0_67 = arith.constant 0 : index
    %c0_68 = arith.constant 0 : index
    %c0_69 = arith.constant 0 : index
    %108 = vector.load %arg14[%c0_67, %c0_68, %c0_69] : memref<1x16x128xf32, #tpu.memory_space<vmem>>, vector<1x16x128xf32>
    tpu.vector_store %arg14[%c0_67, %c0_68, %c0_69], %107 {strides = array<i32>} : memref<1x16x128xf32, #tpu.memory_space<vmem>>, vector<1x16x128xf32>,
    %cst_70 = arith.constant dense<0.000000e+00> : vector<128xf32>
    %109 = vector.multi_reduction <add>, %106, %cst_70 [0] : vector<16x128xf32> to vector<128xf32>
    %110 = vector.shape_cast %109 : vector<128xf32> to vector<1x128xf32>
    %c0_71 = arith.constant 0 : index
    %c0_72 = arith.constant 0 : index
    %c0_73 = arith.constant 0 : index
    %111 = vector.load %arg15[%c0_71, %c0_72, %c0_73] : memref<1x1x128xf32, #tpu.memory_space<vmem>>, vector<1x1x128xf32>
    %112 = vector.shape_cast %111 : vector<1x1x128xf32> to vector<1x128xf32>
    %113 = vector.shape_cast %110 : vector<1x128xf32> to vector<1x1x128xf32>
    tpu.vector_store %arg15[%c0_71, %c0_72, %c0_73], %113 {strides = array<i32>} : memref<1x1x128xf32, #tpu.memory_space<vmem>>, vector<1x1x128xf32>,
    %114 = arith.mulf %106, %106 : vector<16x128xf32>
    %cst_74 = arith.constant dense<0.000000e+00> : vector<128xf32>
    %115 = vector.multi_reduction <add>, %114, %cst_74 [0] : vector<16x128xf32> to vector<128xf32>
    %116 = vector.shape_cast %115 : vector<128xf32> to vector<1x128xf32>
    %c0_75 = arith.constant 0 : index
    %c0_76 = arith.constant 0 : index
    %c0_77 = arith.constant 0 : index
    %117 = vector.load %arg16[%c0_75, %c0_76, %c0_77] : memref<1x1x128xf32, #tpu.memory_space<vmem>>, vector<1x1x128xf32>
    %118 = vector.shape_cast %117 : vector<1x1x128xf32> to vector<1x128xf32>
    %119 = vector.shape_cast %116 : vector<1x128xf32> to vector<1x1x128xf32>
    tpu.vector_store %arg16[%c0_75, %c0_76, %c0_77], %119 {strides = array<i32>} : memref<1x1x128xf32, #tpu.memory_space<vmem>>, vector<1x1x128xf32>,
    return
  }
  func.func @transform_0(%arg0: i32) -> (i32, i32, i32) {
    %c0_i32 = arith.constant 0 : i32
    %c0_i32_0 = arith.constant 0 : i32
    %c0_i32_1 = arith.constant 0 : i32
    return %arg0, %c0_i32, %c0_i32_0 : i32, i32, i32
  }
  func.func @transform_1(%arg0: i32) -> (i32, i32) {
    %c0_i32 = arith.constant 0 : i32
    %c0_i32_0 = arith.constant 0 : i32
    %c0_i32_1 = arith.constant 0 : i32
    return %c0_i32, %c0_i32_0 : i32, i32
  }
  func.func @transform_2(%arg0: i32) -> (i32, i32) {
    %c0_i32 = arith.constant 0 : i32
    %c0_i32_0 = arith.constant 0 : i32
    %c0_i32_1 = arith.constant 0 : i32
    return %c0_i32, %c0_i32_0 : i32, i32
  }
  func.func @transform_3(%arg0: i32) -> (i32, i32) {
    %c0_i32 = arith.constant 0 : i32
    %c0_i32_0 = arith.constant 0 : i32
    %c0_i32_1 = arith.constant 0 : i32
    return %c0_i32, %c0_i32_0 : i32, i32
  }
  func.func @transform_4(%arg0: i32) -> (i32, i32) {
    %c0_i32 = arith.constant 0 : i32
    %c0_i32_0 = arith.constant 0 : i32
    %c0_i32_1 = arith.constant 0 : i32
    return %c0_i32, %c0_i32_0 : i32, i32
  }
  func.func @transform_5(%arg0: i32) -> (i32, i32) {
    %c0_i32 = arith.constant 0 : i32
    %c0_i32_0 = arith.constant 0 : i32
    %c0_i32_1 = arith.constant 0 : i32
    return %c0_i32, %c0_i32_0 : i32, i32
  }
  func.func @transform_6(%arg0: i32) -> (i32, i32) {
    %c0_i32 = arith.constant 0 : i32
    %c0_i32_0 = arith.constant 0 : i32
    %c0_i32_1 = arith.constant 0 : i32
    return %c0_i32, %c0_i32_0 : i32, i32
  }
  func.func @transform_7(%arg0: i32) -> (i32, i32) {
    %c0_i32 = arith.constant 0 : i32
    %c0_i32_0 = arith.constant 0 : i32
    %c0_i32_1 = arith.constant 0 : i32
    return %c0_i32, %c0_i32_0 : i32, i32
  }
  func.func @transform_8(%arg0: i32) -> (i32, i32) {
    %c0_i32 = arith.constant 0 : i32
    %c0_i32_0 = arith.constant 0 : i32
    %c0_i32_1 = arith.constant 0 : i32
    return %c0_i32, %c0_i32_0 : i32, i32
  }
  func.func @transform_9(%arg0: i32) -> (i32, i32) {
    %c0_i32 = arith.constant 0 : i32
    %c0_i32_0 = arith.constant 0 : i32
    %c0_i32_1 = arith.constant 0 : i32
    return %c0_i32, %c0_i32_0 : i32, i32
  }
  func.func @transform_10(%arg0: i32) -> (i32, i32) {
    %c0_i32 = arith.constant 0 : i32
    %c0_i32_0 = arith.constant 0 : i32
    %c0_i32_1 = arith.constant 0 : i32
    return %c0_i32, %c0_i32_0 : i32, i32
  }
  func.func @transform_11(%arg0: i32) -> (i32, i32) {
    %c0_i32 = arith.constant 0 : i32
    %c0_i32_0 = arith.constant 0 : i32
    %c0_i32_1 = arith.constant 0 : i32
    return %c0_i32, %c0_i32_0 : i32, i32
  }
  func.func @transform_12(%arg0: i32) -> (i32, i32) {
    %c0_i32 = arith.constant 0 : i32
    %c0_i32_0 = arith.constant 0 : i32
    %c0_i32_1 = arith.constant 0 : i32
    return %c0_i32, %c0_i32_0 : i32, i32
  }
  func.func @transform_13(%arg0: i32) -> (i32, i32, i32) {
    %c0_i32 = arith.constant 0 : i32
    %c0_i32_0 = arith.constant 0 : i32
    %c0_i32_1 = arith.constant 0 : i32
    return %arg0, %c0_i32, %c0_i32_0 : i32, i32, i32
  }
  func.func @transform_14(%arg0: i32) -> (i32, i32, i32) {
    %c0_i32 = arith.constant 0 : i32
    %c0_i32_0 = arith.constant 0 : i32
    %c0_i32_1 = arith.constant 0 : i32
    return %arg0, %c0_i32, %c0_i32_0 : i32, i32, i32
  }
  func.func @transform_15(%arg0: i32) -> (i32, i32, i32) {
    %c0_i32 = arith.constant 0 : i32
    %c0_i32_0 = arith.constant 0 : i32
    %c0_i32_1 = arith.constant 0 : i32
    return %arg0, %c0_i32, %c0_i32_0 : i32, i32, i32
  }
}

module attributes {stable_mosaic.version = 11 : i64} {
  func.func @_bn_relu_1x1_kernel(%arg0: i32, %arg1: memref<16x128xf32, #tpu.memory_space<vmem>>, %arg2: memref<1x128xf32, #tpu.memory_space<vmem>>, %arg3: memref<1x128xf32, #tpu.memory_space<vmem>>, %arg4: memref<128x128xbf16, #tpu.memory_space<vmem>>, %arg5: memref<16x128xf32, #tpu.memory_space<vmem>>) attributes {dimension_semantics = [#tpu.dimension_semantics<parallel>], iteration_bounds = array<i64: 2>, scalar_prefetch = 0 : i64, scratch_operands = 0 : i64, tpu.core_type = #tpu.core_type<tc>, window_params = [{transform_indices = @transform_0, window_bounds = array<i64: 16, 128>}, {pipeline_mode = #tpu.pipeline_mode<synchronous>, transform_indices = @transform_1, window_bounds = array<i64: 1, 128>}, {pipeline_mode = #tpu.pipeline_mode<synchronous>, transform_indices = @transform_2, window_bounds = array<i64: 1, 128>}, {pipeline_mode = #tpu.pipeline_mode<synchronous>, transform_indices = @transform_3, window_bounds = array<i64: 128, 128>}, {transform_indices = @transform_4, window_bounds = array<i64: 16, 128>}]} {
    %c0 = arith.constant 0 : index
    %c0_0 = arith.constant 0 : index
    %0 = vector.load %arg1[%c0, %c0_0] : memref<16x128xf32, #tpu.memory_space<vmem>>, vector<16x128xf32>
    %c0_1 = arith.constant 0 : index
    %c0_2 = arith.constant 0 : index
    %1 = vector.load %arg2[%c0_1, %c0_2] : memref<1x128xf32, #tpu.memory_space<vmem>>, vector<1x128xf32>
    %2 = vector.broadcast %1 : vector<1x128xf32> to vector<16x128xf32>
    %3 = arith.mulf %0, %2 : vector<16x128xf32>
    %c0_3 = arith.constant 0 : index
    %c0_4 = arith.constant 0 : index
    %4 = vector.load %arg3[%c0_3, %c0_4] : memref<1x128xf32, #tpu.memory_space<vmem>>, vector<1x128xf32>
    %5 = vector.broadcast %4 : vector<1x128xf32> to vector<16x128xf32>
    %6 = arith.addf %3, %5 : vector<16x128xf32>
    %cst = arith.constant 0.000000e+00 : f32
    %7 = vector.broadcast %cst : f32 to vector<16x128xf32>
    %8 = arith.maximumf %6, %7 : vector<16x128xf32>
    %9 = arith.truncf %8 : vector<16x128xf32> to vector<16x128xbf16>
    %c0_5 = arith.constant 0 : index
    %c0_6 = arith.constant 0 : index
    %10 = vector.load %arg4[%c0_5, %c0_6] : memref<128x128xbf16, #tpu.memory_space<vmem>>, vector<128x128xbf16>
    %cst_7 = arith.constant dense<0.000000e+00> : vector<16x128xf32>
    %11 = tpu.matmul %9, %10, %cst_7 {dimension_numbers = #tpu.dot_dimension_numbers<[1], [0], [0], [1], [0, 0, 1, 1], [], []>} : vector<16x128xbf16>, vector<128x128xbf16>, vector<16x128xf32> -> vector<16x128xf32>
    %c0_8 = arith.constant 0 : index
    %c0_9 = arith.constant 0 : index
    %12 = vector.load %arg5[%c0_8, %c0_9] : memref<16x128xf32, #tpu.memory_space<vmem>>, vector<16x128xf32>
    tpu.vector_store %arg5[%c0_8, %c0_9], %11 {strides = array<i32>} : memref<16x128xf32, #tpu.memory_space<vmem>>, vector<16x128xf32>,
    return
  }
  func.func @transform_0(%arg0: i32) -> (i32, i32) {
    %c0_i32 = arith.constant 0 : i32
    %c0_i32_0 = arith.constant 0 : i32
    return %arg0, %c0_i32 : i32, i32
  }
  func.func @transform_1(%arg0: i32) -> (i32, i32) {
    %c0_i32 = arith.constant 0 : i32
    %c0_i32_0 = arith.constant 0 : i32
    %c0_i32_1 = arith.constant 0 : i32
    return %c0_i32, %c0_i32_0 : i32, i32
  }
  func.func @transform_2(%arg0: i32) -> (i32, i32) {
    %c0_i32 = arith.constant 0 : i32
    %c0_i32_0 = arith.constant 0 : i32
    %c0_i32_1 = arith.constant 0 : i32
    return %c0_i32, %c0_i32_0 : i32, i32
  }
  func.func @transform_3(%arg0: i32) -> (i32, i32) {
    %c0_i32 = arith.constant 0 : i32
    %c0_i32_0 = arith.constant 0 : i32
    %c0_i32_1 = arith.constant 0 : i32
    return %c0_i32, %c0_i32_0 : i32, i32
  }
  func.func @transform_4(%arg0: i32) -> (i32, i32) {
    %c0_i32 = arith.constant 0 : i32
    %c0_i32_0 = arith.constant 0 : i32
    return %arg0, %c0_i32 : i32, i32
  }
}

</mosaic_0001>

<llo_original>
// kernel: tile.38
$region0: #{tile.38}
  #allocation0 [shape = 's32[1]{0}', space=sflag, size = 0x4, scoped, tag = 'scoped memory for tile.38']
  %s0 = inlined_call_operand.vmem [shape: f32[8], index: 0, kind: input, shape index: {}]
  %s1 = inlined_call_operand.vmem [shape: f32[16,8], index: 1, kind: output, shape index: {}]
  // Predicated region
  $region2: #{tile.38} parent=0 // pred_check
    _
  $region3: #{tile.38} parent=0 // pred_check_branch
    %3 = sbr.rel (0) target = $region5
  $region4: #{tile.38} parent=0 // pred_region
    _
  $region5: #{tile.38} parent=0 // pred_fallthru
    _
  %v4 = vld [vmem:[%s0] ss:$0 sm:$0xff]
  %5 = vst [vmem:[%s1] sm:$0xff] %v4
  %s6 = scalar_lea.vmem %s1, 8
  %7 = vst [vmem:[%s6] sm:$0xff] %v4

// kernel: tile.39
$region0: #{tile.39}
  %s0 = inlined_call_operand.vmem [shape: f32[16,8], index: 0, kind: input, shape index: {}]
  %s1 = inlined_call_operand.vmem [shape: f32[1,128], index: 1, kind: output, shape index: {}]
  $region1: #{tile.39} parent=0
    #allocation0 [shape = 'u8[4096]{0}', space=vmem, size = 0x1000, scoped, tag = 'scoped mem for output reshape']
    %v2 = vld [vmem:[%s0] sm:$0x1]
    %vm3 = vcmask 64512
    %4 = vst.msk [vmem:[#allocation0] sm:$0x1] %vm3, %v2
    %s5 = scalar_lea.vmem %s0, 15
    %v6 = vld [vmem:[%s5] sm:$0x1]
    %7 = vrot.lane.b32.xlu0 %v6, 120
    %v8 = vpop.permute.xlu0 %7
    %vm9 = vcmask 1048512
    %10 = vst.msk [vmem:[#allocation0] sm:$0x1] %vm9, %v8
    %s11 = scalar_lea.vmem %s0, 14
    %v12 = vld [vmem:[%s11] sm:$0x1]
    %13 = vrot.lane.b32.xlu0 %v12, 112
    %v14 = vpop.permute.xlu0 %13
    %vm15 = vcmask 982912
    %16 = vst.msk [vmem:[#allocation0] sm:$0x1] %vm15, %v14
    %s17 = scalar_lea.vmem %s0, 13
    %v18 = vld [vmem:[%s17] sm:$0x1]
    %19 = vrot.lane.b32.xlu0 %v18, 104
    %v20 = vpop.permute.xlu0 %19
    %vm21 = vcmask 917312
    %22 = vst.msk [vmem:[#allocation0] sm:$0x1] %vm21, %v20
    %s23 = scalar_lea.vmem %s0, 12
    %v24 = vld [vmem:[%s23] sm:$0x1]
    %25 = vrot.lane.b32.xlu0 %v24, 96
    %v26 = vpop.permute.xlu0 %25
    %vm27 = vcmask 851712
    %28 = vst.msk [vmem:[#allocation0] sm:$0x1] %vm27, %v26
    %s29 = scalar_lea.vmem %s0, 11
    %v30 = vld [vmem:[%s29] sm:$0x1]
    %31 = vrot.lane.b32.xlu0 %v30, 88
    %v32 = vpop.permute.xlu0 %31
    %vm33 = vcmask 786112
    %34 = vst.msk [vmem:[#allocation0] sm:$0x1] %vm33, %v32
    %s35 = scalar_lea.vmem %s0, 10
    %v36 = vld [vmem:[%s35] sm:$0x1]
    %37 = vrot.lane.b32.xlu0 %v36, 80
    %v38 = vpop.permute.xlu0 %37
    %vm39 = vcmask 720512
    %40 = vst.msk [vmem:[#allocation0] sm:$0x1] %vm39, %v38
    %s41 = scalar_lea.vmem %s0, 9
    %v42 = vld [vmem:[%s41] sm:$0x1]
    %43 = vrot.lane.b32.xlu0 %v42, 72
    %v44 = vpop.permute.xlu0 %43
    %vm45 = vcmask 654912
    %46 = vst.msk [vmem:[#allocation0] sm:$0x1] %vm45, %v44
    %s47 = scalar_lea.vmem %s0, 8
    %v48 = vld [vmem:[%s47] sm:$0x1]
    %49 = vrot.lane.b32.xlu0 %v48, 64
    %v50 = vpop.permute.xlu0 %49
    %vm51 = vcmask 589312
    %52 = vst.msk [vmem:[#allocation0] sm:$0x1] %vm51, %v50
    %s53 = scalar_lea.vmem %s0, 7
    %v54 = vld [vmem:[%s53] sm:$0x1]
    %55 = vrot.lane.b32.xlu0 %v54, 56
    %v56 = vpop.permute.xlu0 %55
    %vm57 = vcmask 523712
    %58 = vst.msk [vmem:[#allocation0] sm:$0x1] %vm57, %v56
    %s59 = scalar_lea.vmem %s0, 6
    %v60 = vld [vmem:[%s59] sm:$0x1]
    %61 = vrot.lane.b32.xlu0 %v60, 48
    %v62 = vpop.permute.xlu0 %61
    %vm63 = vcmask 458112
    %64 = vst.msk [vmem:[#allocation0] sm:$0x1] %vm63, %v62
    %s65 = scalar_lea.vmem %s0, 5
    %v66 = vld [vmem:[%s65] sm:$0x1]
    %67 = vrot.lane.b32.xlu0 %v66, 40
    %v68 = vpop.permute.xlu0 %67
    %vm69 = vcmask 392512
    %70 = vst.msk [vmem:[#allocation0] sm:$0x1] %vm69, %v68
    %s71 = scalar_lea.vmem %s0, 4
    %v72 = vld [vmem:[%s71] sm:$0x1]
    %73 = vrot.lane.b32.xlu0 %v72, 32
    %v74 = vpop.permute.xlu0 %73
    %vm75 = vcmask 326912
    %76 = vst.msk [vmem:[#allocation0] sm:$0x1] %vm75, %v74
    %s77 = scalar_lea.vmem %s0, 3
    %v78 = vld [vmem:[%s77] sm:$0x1]
    %79 = vrot.lane.b32.xlu0 %v78, 24
    %v80 = vpop.permute.xlu0 %79
    %vm81 = vcmask 261312
    %82 = vst.msk [vmem:[#allocation0] sm:$0x1] %vm81, %v80
    %s83 = scalar_lea.vmem %s0, 2
    %v84 = vld [vmem:[%s83] sm:$0x1]
    %85 = vrot.lane.b32.xlu0 %v84, 16
    %v86 = vpop.permute.xlu0 %85
    %vm87 = vcmask 195712
    %88 = vst.msk [vmem:[#allocation0] sm:$0x1] %vm87, %v86
    %s89 = scalar_lea.vmem %s0, 1
    %v90 = vld [vmem:[%s89] sm:$0x1]
    %91 = vrot.lane.b32.xlu0 %v90, 8
    %v92 = vpop.permute.xlu0 %91
    %vm93 = vcmask 130112
    %94 = vst.msk [vmem:[#allocation0] sm:$0x1] %vm93, %v92
    %s96 = ssub.s32 2, 1
    %v97 = vld [vmem:[#allocation0] sm:%s96]
    %s99 = ssub.s32 2, 1
    %100 = vst [vmem:[%s1] sm:%s99] %v97

// kernel: mscsam_forward.3
$region0: #{mscsam_forward.3}
  #allocation0 [shape = 'u32[]', space=smem, size = 0x4, offset = 0x4, fixed_abs, tag = 'smem constant byte address 0x4 - core index']
  #allocation1 [shape = 'u32[72,128]{1,0:T(1,128)}', space=vmem, size = 0x9000, scoped, tag = 'internal scratch']
  #allocation2 [shape = 'bf16[1,18,128]{2,1,0:T(8,128)(2,1)}', space=vmem, size = 0x1800, scoped, tag = 'scratch operand']
  %s0 = inlined_call_operand.vmem [shape: bf16[2,16,64], index: 0, kind: input, shape index: {}]
  %s1 = inlined_call_operand.vmem [shape: bf16[2,8,64], index: 1, kind: input, shape index: {}]
  %s2 = inlined_call_operand.vmem [shape: bf16[64,128], index: 2, kind: input, shape index: {}]
  %s3 = inlined_call_operand.vmem [shape: f32[1,128], index: 3, kind: input, shape index: {}]
  %s4 = inlined_call_operand.vmem [shape: bf16[16,8], index: 4, kind: input, shape index: {}]
  %s5 = inlined_call_operand.vmem [shape: bf16[64,128], index: 5, kind: input, shape index: {}]
  %s6 = inlined_call_operand.vmem [shape: bf16[384,128], index: 6, kind: input, shape index: {}]
  %s7 = inlined_call_operand.vmem [shape: f32[2,16,128], index: 7, kind: output, shape index: {0}]
  %s8 = inlined_call_operand.vmem [shape: f32[2,1,128], index: 8, kind: output, shape index: {1}]
  %s9 = inlined_call_operand.vmem [shape: f32[2,1,128], index: 9, kind: output, shape index: {2}]
  %10 = xla_tuple %s7, %s8, %s9
  %s11 = sld [smem:[#allocation0]]
  $region77: #{mscsam_forward.3} parent=0
    _
  %s13 = ssub.s32 1, %s11
  %s14 = scalar_select 0, %s13, %s11
  loop: start=0, step=1, limit=4
  $region2: #{mscsam_forward.3} parent=0 // loop_pre_header
    _
  $region3: #{mscsam_forward.3} parent=0 // loop_header
    %s16 = sphi 0, %s20
    %p17 = scmp.ge.s32.totalorder %s16, 4
    %s26 = sphi 0, %s28
    %s29 = sphi 0, %s26
    %s30 = sphi 0, %s29
    %s46 = sphi 0, %s30
    %s52 = sphi 0, %s54
    %s55 = sphi 0, %s52
    %s56 = sphi 0, %s55
    %s72 = sphi 0, %s56
    %s76 = sphi 0, %s76
    %s78 = sphi 0, %s76
    %s79 = sphi 0, %s78
    %s93 = sphi 0, %s79
    %s97 = sphi 0, %s97
    %s99 = sphi 0, %s97
    %s100 = sphi 0, %s99
    %s114 = sphi 0, %s100
    %s118 = sphi 0, %s118
    %s120 = sphi 0, %s118
    %s121 = sphi 0, %s120
    %s135 = sphi 0, %s121
    %s139 = sphi 0, %s139
    %s141 = sphi 0, %s139
    %s142 = sphi 0, %s141
    %s156 = sphi 0, %s142
    %s160 = sphi 0, %s160
    %s162 = sphi 0, %s160
    %s163 = sphi 0, %s162
    %s177 = sphi 0, %s163
    %s183 = sphi 0, %s185
    %s186 = sphi 0, %s183
    %s187 = sphi 0, %s186
    %s203 = sphi 0, %s187
    %s209 = sphi 0, %s211
    %s212 = sphi 0, %s209
    %s213 = sphi 0, %s212
    %s229 = sphi 0, %s213
    %s235 = sphi 0, %s237
    %s238 = sphi 0, %s235
    %s239 = sphi 0, %s238
    %s255 = sphi 0, %s239
  $region4: #{mscsam_forward.3} parent=0 // loop_header_branch
    %19 = sbr.rel (%p17) target = $region8
  $region5: #{mscsam_forward.3} parent=0 // loop_body
    %s21 = ssub.s32 %s16, 1
    %s22 = ssub.s32 %s16, 2
    %s23 = sadd.s32 %s16, 1
    %s24 = ssub.s32 %s16, %s23
    %p25 = scmp.eq.s32.totalorder %s24, 0
    %s27 = sadd.s32 %s26, 1
    %s28 = scalar_select %p25, %s26, %s27
    %p31 = pneg %p25
    %p32 = scmp.eq.s32.totalorder %s16, 1
    %p33 = por %p31, %p32
    %p34 = scmp.ne.s32.totalorder %s26, %s29
    %p35 = scmp.eq.s32.totalorder %s16, 0
    %p36 = por %p34, %p35
    %p37 = scmp.ne.s32.totalorder %s26, %s29
    %p38 = scmp.eq.s32.totalorder %s21, 1
    %p39 = por %p37, %p38
    %p40 = scmp.ne.s32.totalorder %s29, %s30
    %p41 = scmp.eq.s32.totalorder %s21, 0
    %p42 = por %p40, %p41
    %p43 = scmp.ne.s32.totalorder %s29, %s30
    %p44 = scmp.eq.s32.totalorder %s22, 1
    %p45 = por %p43, %p44
    %p47 = scmp.ne.s32.totalorder %s30, %s46
    %p48 = scmp.eq.s32.totalorder %s22, 0
    %p49 = por %p47, %p48
    %s50 = ssub.s32 %s16, %s23
    %p51 = scmp.eq.s32.totalorder %s50, 0
    %s53 = sadd.s32 %s52, 1
    %s54 = scalar_select %p51, %s52, %s53
    %p57 = pneg %p51
    %p58 = scmp.eq.s32.totalorder %s16, 1
    %p59 = por %p57, %p58
    %p60 = scmp.ne.s32.totalorder %s52, %s55
    %p61 = scmp.eq.s32.totalorder %s16, 0
    %p62 = por %p60, %p61
    %p63 = scmp.ne.s32.totalorder %s52, %s55
    %p64 = scmp.eq.s32.totalorder %s21, 1
    %p65 = por %p63, %p64
    %p66 = scmp.ne.s32.totalorder %s55, %s56
    %p67 = scmp.eq.s32.totalorder %s21, 0
    %p68 = por %p66, %p67
    %p69 = scmp.ne.s32.totalorder %s55, %s56
    %p70 = scmp.eq.s32.totalorder %s22, 1
    %p71 = por %p69, %p70
    %p73 = scmp.ne.s32.totalorder %s56, %s72
    %p74 = scmp.eq.s32.totalorder %s22, 0
    %p75 = por %p73, %p74
    %s77 = sadd.s32 %s76, 1
    %p80 = scmp.eq.s32.totalorder %s16, 1
    %p81 = scmp.ne.s32.totalorder %s76, %s78
    %p82 = scmp.eq.s32.totalorder %s16, 0
    %p83 = por %p81, %p82
    %p84 = scmp.ne.s32.totalorder %s76, %s78
    %p85 = scmp.eq.s32.totalorder %s21, 1
    %p86 = por %p84, %p85
    %p87 = scmp.ne.s32.totalorder %s78, %s79
    %p88 = scmp.eq.s32.totalorder %s21, 0
    %p89 = por %p87, %p88
    %p90 = scmp.ne.s32.totalorder %s78, %s79
    %p91 = scmp.eq.s32.totalorder %s22, 1
    %p92 = por %p90, %p91
    %p94 = scmp.ne.s32.totalorder %s79, %s93
    %p95 = scmp.eq.s32.totalorder %s22, 0
    %p96 = por %p94, %p95
    %s98 = sadd.s32 %s97, 1
    %p101 = scmp.eq.s32.totalorder %s16, 1
    %p102 = scmp.ne.s32.totalorder %s97, %s99
    %p103 = scmp.eq.s32.totalorder %s16, 0
    %p104 = por %p102, %p103
    %p105 = scmp.ne.s32.totalorder %s97, %s99
    %p106 = scmp.eq.s32.totalorder %s21, 1
    %p107 = por %p105, %p106
    %p108 = scmp.ne.s32.totalorder %s99, %s100
    %p109 = scmp.eq.s32.totalorder %s21, 0
    %p110 = por %p108, %p109
    %p111 = scmp.ne.s32.totalorder %s99, %s100
    %p112 = scmp.eq.s32.totalorder %s22, 1
    %p113 = por %p111, %p112
    %p115 = scmp.ne.s32.totalorder %s100, %s114
    %p116 = scmp.eq.s32.totalorder %s22, 0
    %p117 = por %p115, %p116
    %s119 = sadd.s32 %s118, 1
    %p122 = scmp.eq.s32.totalorder %s16, 1
    %p123 = scmp.ne.s32.totalorder %s118, %s120
    %p124 = scmp.eq.s32.totalorder %s16, 0
    %p125 = por %p123, %p124
    %p126 = scmp.ne.s32.totalorder %s118, %s120
    %p127 = scmp.eq.s32.totalorder %s21, 1
    %p128 = por %p126, %p127
    %p129 = scmp.ne.s32.totalorder %s120, %s121
    %p130 = scmp.eq.s32.totalorder %s21, 0
    %p131 = por %p129, %p130
    %p132 = scmp.ne.s32.totalorder %s120, %s121
    %p133 = scmp.eq.s32.totalorder %s22, 1
    %p134 = por %p132, %p133
    %p136 = scmp.ne.s32.totalorder %s121, %s135
    %p137 = scmp.eq.s32.totalorder %s22, 0
    %p138 = por %p136, %p137
    %s140 = sadd.s32 %s139, 1
    %p143 = scmp.eq.s32.totalorder %s16, 1
    %p144 = scmp.ne.s32.totalorder %s139, %s141
    %p145 = scmp.eq.s32.totalorder %s16, 0
    %p146 = por %p144, %p145
    %p147 = scmp.ne.s32.totalorder %s139, %s141
    %p148 = scmp.eq.s32.totalorder %s21, 1
    %p149 = por %p147, %p148
    %p150 = scmp.ne.s32.totalorder %s141, %s142
    %p151 = scmp.eq.s32.totalorder %s21, 0
    %p152 = por %p150, %p151
    %p153 = scmp.ne.s32.totalorder %s141, %s142
    %p154 = scmp.eq.s32.totalorder %s22, 1
    %p155 = por %p153, %p154
    %p157 = scmp.ne.s32.totalorder %s142, %s156
    %p158 = scmp.eq.s32.totalorder %s22, 0
    %p159 = por %p157, %p158
    %s161 = sadd.s32 %s160, 1
    %p164 = scmp.eq.s32.totalorder %s16, 1
    %p165 = scmp.ne.s32.totalorder %s160, %s162
    %p166 = scmp.eq.s32.totalorder %s16, 0
    %p167 = por %p165, %p166
    %p168 = scmp.ne.s32.totalorder %s160, %s162
    %p169 = scmp.eq.s32.totalorder %s21, 1
    %p170 = por %p168, %p169
    %p171 = scmp.ne.s32.totalorder %s162, %s163
    %p172 = scmp.eq.s32.totalorder %s21, 0
    %p173 = por %p171, %p172
    %p174 = scmp.ne.s32.totalorder %s162, %s163
    %p175 = scmp.eq.s32.totalorder %s22, 1
    %p176 = por %p174, %p175
    %p178 = scmp.ne.s32.totalorder %s163, %s177
    %p179 = scmp.eq.s32.totalorder %s22, 0
    %p180 = por %p178, %p179
    %s181 = ssub.s32 %s16, %s23
    %p182 = scmp.eq.s32.totalorder %s181, 0
    %s184 = sadd.s32 %s183, 1
    %s185 = scalar_select %p182, %s183, %s184
    %p188 = pneg %p182
    %p189 = scmp.eq.s32.totalorder %s16, 1
    %p190 = por %p188, %p189
    %p191 = scmp.ne.s32.totalorder %s183, %s186
    %p192 = scmp.eq.s32.totalorder %s16, 0
    %p193 = por %p191, %p192
    %p194 = scmp.ne.s32.totalorder %s183, %s186
    %p195 = scmp.eq.s32.totalorder %s21, 1
    %p196 = por %p194, %p195
    %p197 = scmp.ne.s32.totalorder %s186, %s187
    %p198 = scmp.eq.s32.totalorder %s21, 0
    %p199 = por %p197, %p198
    %p200 = scmp.ne.s32.totalorder %s186, %s187
    %p201 = scmp.eq.s32.totalorder %s22, 1
    %p202 = por %p200, %p201
    %p204 = scmp.ne.s32.totalorder %s187, %s203
    %p205 = scmp.eq.s32.totalorder %s22, 0
    %p206 = por %p204, %p205
    %s207 = ssub.s32 %s16, %s23
    %p208 = scmp.eq.s32.totalorder %s207, 0
    %s210 = sadd.s32 %s209, 1
    %s211 = scalar_select %p208, %s209, %s210
    %p214 = pneg %p208
    %p215 = scmp.eq.s32.totalorder %s16, 1
    %p216 = por %p214, %p215
    %p217 = scmp.ne.s32.totalorder %s209, %s212
    %p218 = scmp.eq.s32.totalorder %s16, 0
    %p219 = por %p217, %p218
    %p220 = scmp.ne.s32.totalorder %s209, %s212
    %p221 = scmp.eq.s32.totalorder %s21, 1
    %p222 = por %p220, %p221
    %p223 = scmp.ne.s32.totalorder %s212, %s213
    %p224 = scmp.eq.s32.totalorder %s21, 0
    %p225 = por %p223, %p224
    %p226 = scmp.ne.s32.totalorder %s212, %s213
    %p227 = scmp.eq.s32.totalorder %s22, 1
    %p228 = por %p226, %p227
    %p230 = scmp.ne.s32.totalorder %s213, %s229
    %p231 = scmp.eq.s32.totalorder %s22, 0
    %p232 = por %p230, %p231
    %s233 = ssub.s32 %s16, %s23
    %p234 = scmp.eq.s32.totalorder %s233, 0
    %s236 = sadd.s32 %s235, 1
    %s237 = scalar_select %p234, %s235, %s236
    %p240 = pneg %p234
    %p241 = scmp.eq.s32.totalorder %s16, 1
    %p242 = por %p240, %p241
    %p243 = scmp.ne.s32.totalorder %s235, %s238
    %p244 = scmp.eq.s32.totalorder %s16, 0
    %p245 = por %p243, %p244
    %p246 = scmp.ne.s32.totalorder %s235, %s238
    %p247 = scmp.eq.s32.totalorder %s21, 1
    %p248 = por %p246, %p247
    %p249 = scmp.ne.s32.totalorder %s238, %s239
    %p250 = scmp.eq.s32.totalorder %s21, 0
    %p251 = por %p249, %p250
    %p252 = scmp.ne.s32.totalorder %s238, %s239
    %p253 = scmp.eq.s32.totalorder %s22, 1
    %p254 = por %p252, %p253
    %p256 = scmp.ne.s32.totalorder %s239, %s255
    %p257 = scmp.eq.s32.totalorder %s22, 0
    %p258 = por %p256, %p257
    %p259 = scmp.le.s32.totalorder 1, %s16
    %p260 = scmp.lt.s32.totalorder %s16, 3
    %p261 = pnand %p259, %p260
    %p262 = pneg %p261
    // Predicated region
    $region9: #{mscsam_forward.3} parent=5 // pred_check
      _
    $region10: #{mscsam_forward.3} parent=5 // pred_check_branch
      %264 = sbr.rel (%p261) target = $region12
    $region11: #{mscsam_forward.3} parent=5 // pred_region
      %s265 = ssub.s32 %s16, 1
      // Predicated region
      $region13: #{mscsam_forward.3} parent=11 // pred_check
        %p266 = pneg %p89
      $region14: #{mscsam_forward.3} parent=11 // pred_check_branch
        %268 = sbr.rel (%p266) target = $region16
      $region15: #{mscsam_forward.3} parent=11 // pred_region
        _
      $region16: #{mscsam_forward.3} parent=11 // pred_fallthru
        _
      // Predicated region
      $region17: #{mscsam_forward.3} parent=11 // pred_check
        %p269 = pneg %p110
      $region18: #{mscsam_forward.3} parent=11 // pred_check_branch
        %271 = sbr.rel (%p269) target = $region20
      $region19: #{mscsam_forward.3} parent=11 // pred_region
        _
      $region20: #{mscsam_forward.3} parent=11 // pred_fallthru
        _
      // Predicated region
      $region21: #{mscsam_forward.3} parent=11 // pred_check
        %p272 = pneg %p131
      $region22: #{mscsam_forward.3} parent=11 // pred_check_branch
        %274 = sbr.rel (%p272) target = $region24
      $region23: #{mscsam_forward.3} parent=11 // pred_region
        _
      $region24: #{mscsam_forward.3} parent=11 // pred_fallthru
        _
      // Predicated region
      $region25: #{mscsam_forward.3} parent=11 // pred_check
        %p275 = pneg %p152
      $region26: #{mscsam_forward.3} parent=11 // pred_check_branch
        %277 = sbr.rel (%p275) target = $region28
      $region27: #{mscsam_forward.3} parent=11 // pred_region
        _
      $region28: #{mscsam_forward.3} parent=11 // pred_fallthru
        _
      // Predicated region
      $region29: #{mscsam_forward.3} parent=11 // pred_check
        %p278 = pneg %p173
      $region30: #{mscsam_forward.3} parent=11 // pred_check_branch
        %280 = sbr.rel (%p278) target = $region32
      $region31: #{mscsam_forward.3} parent=11 // pred_region
        _
      $region32: #{mscsam_forward.3} parent=11 // pred_fallthru
        _
    $region12: #{mscsam_forward.3} parent=5 // pred_fallthru
      _
    %p281 = scmp.lt.s32.totalorder %s16, 2
    // Predicated region
    $region33: #{mscsam_forward.3} parent=5 // pred_check
      %p282 = pneg %p281
    $region34: #{mscsam_forward.3} parent=5 // pred_check_branch
      %284 = sbr.rel (%p282) target = $region36
    $region35: #{mscsam_forward.3} parent=5 // pred_region
      // Predicated region
      $region37: #{mscsam_forward.3} parent=35 // pred_check
        %p285 = pneg %p36
      $region38: #{mscsam_forward.3} parent=35 // pred_check_branch
        %287 = sbr.rel (%p285) target = $region40
      $region39: #{mscsam_forward.3} parent=35 // pred_region
        %p288 = scmp.lt.s32.totalorder %s16, 1
        %s289 = scalar_select %p288, %s16, 1
        %s290 = smul.addr %s289, 2
        %s291 = smul.addr %s290, 4
        %s292 = scalar_lea.vmem %s0, %s291
      $region40: #{mscsam_forward.3} parent=35 // pred_fallthru
        _
      // Predicated region
      $region41: #{mscsam_forward.3} parent=35 // pred_check
        %p293 = pneg %p62
      $region42: #{mscsam_forward.3} parent=35 // pred_check_branch
        %295 = sbr.rel (%p293) target = $region44
      $region43: #{mscsam_forward.3} parent=35 // pred_region
        %p296 = scmp.lt.s32.totalorder %s16, 1
        %s297 = scalar_select %p296, %s16, 1
        %s298 = smul.addr %s297, 4
        %s299 = scalar_lea.vmem %s1, %s298
      $region44: #{mscsam_forward.3} parent=35 // pred_fallthru
        _
    $region36: #{mscsam_forward.3} parent=5 // pred_fallthru
      _
    %p300 = scmp.le.s32.totalorder 1, %s16
    %p301 = scmp.lt.s32.totalorder %s16, 3
    %p302 = pnand %p300, %p301
    %p303 = pneg %p302
    // Predicated region
    $region45: #{mscsam_forward.3} parent=5 // pred_check
      _
    $region46: #{mscsam_forward.3} parent=5 // pred_check_branch
      %305 = sbr.rel (%p302) target = $region48
    $region47: #{mscsam_forward.3} parent=5 // pred_region
      %s306 = ssub.s32 %s16, 1
      %p307 = scmp.lt.s32.totalorder %s21, 1
      %s308 = scalar_select %p307, %s21, 1
      %s309 = smul.addr %s308, 2
      %s310 = smul.addr %s309, 4
      %s311 = scalar_lea.vmem %s0, %s310
      %p312 = pneg %p42
      %p313 = pneg %p39
      %p314 = scmp.lt.s32.totalorder %s21, 1
      %s315 = scalar_select %p314, %s21, 1
      %s316 = smul.addr %s315, 4
      %s317 = scalar_lea.vmem %s1, %s316
      %p318 = pneg %p68
      %p319 = pneg %p65
      %p320 = pneg %p89
      %p321 = pneg %p86
      %p322 = pneg %p110
      %p323 = pneg %p107
      %p324 = pneg %p131
      %p325 = pneg %p128
      %p326 = pneg %p152
      %p327 = pneg %p149
      %p328 = pneg %p173
      %p329 = pneg %p170
      %p330 = pneg %p199
      %p331 = pneg %p196
      %p332 = scmp.lt.s32.totalorder %s21, 1
      %s333 = scalar_select %p332, %s21, 1
      %s334 = smul.addr %s333, 2
      %s335 = smul.addr %s334, 8
      %s336 = scalar_lea.vmem %s7, %s335
      %p337 = pneg %p225
      %p338 = pneg %p222
      %p339 = scmp.lt.s32.totalorder %s21, 1
      %s340 = scalar_select %p339, %s21, 1
      %s341 = scalar_lea.vmem %s8, %s340
      %p342 = pneg %p251
      %p343 = pneg %p248
      %p344 = scmp.lt.s32.totalorder %s21, 1
      %s345 = scalar_select %p344, %s21, 1
      %s346 = scalar_lea.vmem %s9, %s345
      %p347 = scmp.lt.s32.totalorder %s21, 1
      %s348 = scalar_select %p347, %s21, 1
      %s349 = smul.addr %s348, 2
      %s350 = smul.addr %s349, 4
      %s351 = scalar_lea.vmem %s0, %s350
      %p352 = scmp.lt.s32.totalorder %s21, 1
      %s353 = scalar_select %p352, %s21, 1
      %s354 = smul.addr %s353, 4
      %s355 = scalar_lea.vmem %s1, %s354
      %p356 = scmp.lt.s32.totalorder %s21, 1
      %s357 = scalar_select %p356, %s21, 1
      %s358 = smul.addr %s357, 2
      %s359 = smul.addr %s358, 8
      %s360 = scalar_lea.vmem %s7, %s359
      %p361 = scmp.lt.s32.totalorder %s21, 1
      %s362 = scalar_select %p361, %s21, 1
      %s363 = scalar_lea.vmem %s8, %s362
      %p364 = scmp.lt.s32.totalorder %s21, 1
      %s365 = scalar_select %p364, %s21, 1
      %s366 = scalar_lea.vmem %s9, %s365
      %vm368 = vcmask 1040384
      %vm369 = vsmask.f32 256
      %vm370 = vmand %vm368, %vm369
      %v371 = vld [vmem:[#allocation2] sm:$0x1]
      %v372 = vsel %vm370, 0, %v371
      %373 = vst [vmem:[#allocation2] sm:$0x1] %v372
      %vm374 = vsmask.f32 7938
      %vm375 = vmand %vm368, %vm374
      %v376 = vld [vmem:[#allocation2 + $0x8] sm:$0x1]
      %v377 = vsel %vm375, 0, %v376
      %378 = vst [vmem:[#allocation2 + $0x8] sm:$0x1] %v377
      %v379 = vld [vmem:[%s351] sm:$0xf]
      %v380 = vld [vmem:[%s351 + $0x4] sm:$0xf]
      %v381 = vld [vmem:[%s2] sm:$0xf]
      %v382 = vld [vmem:[%s2 + $0x4] sm:$0xf]
      %v383 = vld [vmem:[%s2 + $0x8] sm:$0xf]
      %v384 = vld [vmem:[%s2 + $0xc] sm:$0xf]
      %v385 = vld [vmem:[%s2 + $0x10] sm:$0xf]
      %v386 = vld [vmem:[%s2 + $0x14] sm:$0xf]
      %v387 = vld [vmem:[%s2 + $0x18] sm:$0xf]
      %v388 = vld [vmem:[%s2 + $0x1c] sm:$0xf]
      %v389 = vld [vmem:[%s3] sm:$0x1]
      %v391 = vperm.slane %v389, 0
      %v395 = vunpack.c.l.b16 %v379
      %v396 = vunpack.c.l.b16 %v380
      %v397 = vpack.c.b16 %v396, %v395
      %v406 = vunpack.c.l.b16 %v381
      %v407 = vunpack.c.l.b16 %v382
      %v408 = vunpack.c.l.b16 %v383
      %v409 = vunpack.c.l.b16 %v384
      %v410 = vunpack.c.l.b16 %v385
      %v411 = vunpack.c.l.b16 %v386
      %v412 = vunpack.c.l.b16 %v387
      %v413 = vunpack.c.l.b16 %v388
      %v414 = vpack.c.b16 %v407, %v406
      %v415 = vpack.c.b16 %v409, %v408
      %v416 = vpack.c.b16 %v411, %v410
      %v417 = vpack.c.b16 %v413, %v412
      %vm422 = vcmask 523264
      %v424 = vsel %vm422, %v397, 0
      %426 = vmatpush.bf16.msra.mxu0 0
      %427 = vmatpush.bf16.msra.mxu0 0
      %428 = vmatpush.bf16.msra.mxu0 0
      %429 = vmatpush.bf16.msra.mxu0 0
      %430 = vmatpush.bf16.msra.mxu0 %v417
      %431 = vmatpush.bf16.msra.mxu0 %v416
      %432 = vmatpush.bf16.msra.mxu0 %v415
      %433 = vmatpush.bf16.msra.mxu0 %v414
      %434 = vmatmul.bf16.gmra.mxu0 %v424
      %v435 = vpop.f32.mrf.mxu0
      %v436 = vadd.f32 %v391, %v435
      %v437 = vpop.f32.mrf.mxu0
      %v438 = vadd.f32 %v391, %v437
      %439 = vdwg.mxu0
      %v440 = vld [vmem:[%s355] sm:$0xf]
      %v441 = vld [vmem:[%s5] sm:$0xf]
      %v442 = vld [vmem:[%s5 + $0x4] sm:$0xf]
      %v443 = vld [vmem:[%s5 + $0x8] sm:$0xf]
      %v444 = vld [vmem:[%s5 + $0xc] sm:$0xf]
      %v445 = vld [vmem:[%s5 + $0x10] sm:$0xf]
      %v446 = vld [vmem:[%s5 + $0x14] sm:$0xf]
      %v447 = vld [vmem:[%s5 + $0x18] sm:$0xf]
      %v448 = vld [vmem:[%s5 + $0x1c] sm:$0xf]
      %v457 = vunpack.c.l.b16 %v441
      %v458 = vunpack.c.l.b16 %v442
      %v459 = vunpack.c.l.b16 %v443
      %v460 = vunpack.c.l.b16 %v444
      %v461 = vunpack.c.l.b16 %v445
      %v462 = vunpack.c.l.b16 %v446
      %v463 = vunpack.c.l.b16 %v447
      %v464 = vunpack.c.l.b16 %v448
      %v465 = vpack.c.b16 %v458, %v457
      %v466 = vpack.c.b16 %v460, %v459
      %v467 = vpack.c.b16 %v462, %v461
      %v468 = vpack.c.b16 %v464, %v463
      %v474 = vsel %vm422, %v440, 0
      %476 = vmatpush.bf16.msra.mxu0 0
      %477 = vmatpush.bf16.msra.mxu0 0
      %478 = vmatpush.bf16.msra.mxu0 0
      %479 = vmatpush.bf16.msra.mxu0 0
      %480 = vmatpush.bf16.msra.mxu0 %v468
      %481 = vmatpush.bf16.msra.mxu0 %v467
      %482 = vmatpush.bf16.msra.mxu0 %v466
      %483 = vmatpush.bf16.msra.mxu0 %v465
      %484 = vmatmul.bf16.gmra.mxu0 %v474
      %v485 = vpop.f32.mrf.mxu0
      %v486 = vadd.f32 0.0, %v485
      %v487 = vpop.f32.mrf.mxu0
      %488 = vdwg.mxu0
      %v489 = vld [vmem:[%s4] sm:$0xf]
      %v490 = vld [vmem:[%s4 + $0x4] sm:$0xf]
      %v491 = vpack.c.bf16 %v486, %v486
      %v494 = vunpack.c.l.b16 %v489
      %v495 = vunpack.c.l.b16 %v490
      %v496 = vpack.c.b16 %v495, %v494
      %vm497 = vcmask 64512
      %v499 = vsel %vm497, %v496, 0
      %vm501 = vcmask 1043456
      %v503 = vsel %vm501, %v491, 0
      %505 = vmatpush.bf16.msra.mxu0 0
      %506 = vmatpush.bf16.msra.mxu0 0
      %507 = vmatpush.bf16.msra.mxu0 0
      %508 = vmatpush.bf16.msra.mxu0 0
      %509 = vmatpush.bf16.msra.mxu0 0
      %510 = vmatpush.bf16.msra.mxu0 0
      %511 = vmatpush.bf16.msra.mxu0 0
      %512 = vmatpush.bf16.msra.mxu0 %v503
      %513 = vmatmul.bf16.gmra.mxu0 %v499
      %v514 = vpop.f32.mrf.mxu0
      %v515 = vadd.f32 0.0, %v514
      %v516 = vpop.f32.mrf.mxu0
      %v517 = vadd.f32 0.0, %v516
      %518 = vdwg.mxu0
      %v519 = vsub.f32 %v436, %v515
      %v520 = vsub.f32 %v438, %v517
      %v521 = vpack.c.bf16 %v519, %v519
      %v522 = vpack.c.bf16 %v520, %v520
      %vm523 = vsmask.f32 4368
      %vm524 = vmor %vm369, %vm523
      %v526 = vshrl.u32 %v521, 16
      %v528 = vrot.slane %v526, 7
      %v529 = vshll.u32 %v521, 16
      %v531 = vor.u32 %v528, %v529
      %v532 = vrot.slane %v528, 4
      %v534 = vshrl.u32 %v522, 16
      %v536 = vrot.slane %v534, 7
      %v537 = vshll.u32 %v522, 16
      %v539 = vor.u32 %v536, %v537
      %v540 = vsel %vm524, %v532, %v539
      %v541 = vrot.slane %v536, 4
      %vm545 = vcmask 1043456
      %vm546 = vmand %vm545, %vm374
      %v547 = vld [vmem:[#allocation2] sm:$0xf]
      %v548 = vsel %vm546, %v531, %v547
      %549 = vst [vmem:[#allocation2] sm:$0xf] %v548
      %550 = vst [vmem:[#allocation2 + $0x4] sm:$0xf] %v540
      %v551 = vld [vmem:[#allocation2 + $0x8] sm:$0x1]
      %v552 = vsel %vm370, %v541, %v551
      %553 = vst [vmem:[#allocation2 + $0x8] sm:$0x1] %v552
      %v554 = vld [vmem:[#allocation2] sm:$0xf]
      %v555 = vld [vmem:[#allocation2 + $0x4] sm:$0xf]
      %v556 = vld [vmem:[#allocation2 + $0x8] sm:$0x1]
      %v559 = vunpack.c.l.b16 %v554
      %v560 = vunpack.c.l.b16 %v555
      %v561 = vpack.c.b16 %v560, %v559
      %v564 = vunpack.c.l.b16 %v556
      %v565 = vpack.c.b16 %v564, %v564
      %vm566 = vsmask.f32 7424
      %v568 = vshrl.u32 %v561, 16
      %v570 = vshll.u32 %v561, 16
      %v572 = vrot.slane %v570, 1
      %v573 = vor.u32 %v568, %v572
      %v575 = vshll.u32 %v565, 16
      %v577 = vrot.slane %v575, 1
      %v578 = vsel %vm566, %v573, %v577
      %vm580 = vcmask 1046528
      %v581 = vrot.slane %v561, 1
      %v582 = vrot.slane %v565, 1
      %v583 = vsel %vm580, %v581, %v582
      %v585 = vld [vmem:[%s6] sm:$0xf]
      %v586 = vld [vmem:[%s6 + $0x4] sm:$0xf]
      %v587 = vld [vmem:[%s6 + $0x8] sm:$0xf]
      %v588 = vld [vmem:[%s6 + $0xc] sm:$0xf]
      %v589 = vld [vmem:[%s6 + $0x10] sm:$0xf]
      %v590 = vld [vmem:[%s6 + $0x14] sm:$0xf]
      %v591 = vld [vmem:[%s6 + $0x18] sm:$0xf]
      %v592 = vld [vmem:[%s6 + $0x1c] sm:$0xf]
      %v593 = vld [vmem:[%s6 + $0x20] sm:$0xf]
      %v594 = vld [vmem:[%s6 + $0x24] sm:$0xf]
      %v595 = vld [vmem:[%s6 + $0x28] sm:$0xf]
      %v596 = vld [vmem:[%s6 + $0x2c] sm:$0xf]
      %v597 = vld [vmem:[%s6 + $0x30] sm:$0xf]
      %v598 = vld [vmem:[%s6 + $0x34] sm:$0xf]
      %v599 = vld [vmem:[%s6 + $0x38] sm:$0xf]
      %v600 = vld [vmem:[%s6 + $0x3c] sm:$0xf]
      %v601 = vld [vmem:[%s6 + $0x40] sm:$0xf]
      %v602 = vld [vmem:[%s6 + $0x44] sm:$0xf]
      %v603 = vld [vmem:[%s6 + $0x48] sm:$0xf]
      %v604 = vld [vmem:[%s6 + $0x4c] sm:$0xf]
      %v605 = vld [vmem:[%s6 + $0x50] sm:$0xf]
      %v606 = vld [vmem:[%s6 + $0x54] sm:$0xf]
      %v607 = vld [vmem:[%s6 + $0x58] sm:$0xf]
      %v608 = vld [vmem:[%s6 + $0x5c] sm:$0xf]
      %v609 = vld [vmem:[%s6 + $0x60] sm:$0xf]
      %v610 = vld [vmem:[%s6 + $0x64] sm:$0xf]
      %v611 = vld [vmem:[%s6 + $0x68] sm:$0xf]
      %v612 = vld [vmem:[%s6 + $0x6c] sm:$0xf]
      %v613 = vld [vmem:[%s6 + $0x70] sm:$0xf]
      %v614 = vld [vmem:[%s6 + $0x74] sm:$0xf]
      %v615 = vld [vmem:[%s6 + $0x78] sm:$0xf]
      %v616 = vld [vmem:[%s6 + $0x7c] sm:$0xf]
      %v617 = vld [vmem:[%s6 + $0x80] sm:$0xf]
      %v618 = vld [vmem:[%s6 + $0x84] sm:$0xf]
      %v619 = vld [vmem:[%s6 + $0x88] sm:$0xf]
      %v620 = vld [vmem:[%s6 + $0x8c] sm:$0xf]
      %v621 = vld [vmem:[%s6 + $0x90] sm:$0xf]
      %v622 = vld [vmem:[%s6 + $0x94] sm:$0xf]
      %v623 = vld [vmem:[%s6 + $0x98] sm:$0xf]
      %v624 = vld [vmem:[%s6 + $0x9c] sm:$0xf]
      %v625 = vld [vmem:[%s6 + $0xa0] sm:$0xf]
      %v626 = vld [vmem:[%s6 + $0xa4] sm:$0xf]
      %v627 = vld [vmem:[%s6 + $0xa8] sm:$0xf]
      %v628 = vld [vmem:[%s6 + $0xac] sm:$0xf]
      %v629 = vld [vmem:[%s6 + $0xb0] sm:$0xf]
      %v630 = vld [vmem:[%s6 + $0xb4] sm:$0xf]
      %v631 = vld [vmem:[%s6 + $0xb8] sm:$0xf]
      %v632 = vld [vmem:[%s6 + $0xbc] sm:$0xf]
      %v681 = vunpack.c.l.b16 %v585
      %v682 = vunpack.c.l.b16 %v586
      %v683 = vunpack.c.l.b16 %v587
      %v684 = vunpack.c.l.b16 %v588
      %v685 = vunpack.c.l.b16 %v589
      %v686 = vunpack.c.l.b16 %v590
      %v687 = vunpack.c.l.b16 %v591
      %v688 = vunpack.c.l.b16 %v592
      %v689 = vunpack.c.l.b16 %v593
      %v690 = vunpack.c.l.b16 %v594
      %v691 = vunpack.c.l.b16 %v595
      %v692 = vunpack.c.l.b16 %v596
      %v693 = vunpack.c.l.b16 %v597
      %v694 = vunpack.c.l.b16 %v598
      %v695 = vunpack.c.l.b16 %v599
      %v696 = vunpack.c.l.b16 %v600
      %v697 = vunpack.c.l.b16 %v601
      %v698 = vunpack.c.l.b16 %v602
      %v699 = vunpack.c.l.b16 %v603
      %v700 = vunpack.c.l.b16 %v604
      %v701 = vunpack.c.l.b16 %v605
      %v702 = vunpack.c.l.b16 %v606
      %v703 = vunpack.c.l.b16 %v607
      %v704 = vunpack.c.l.b16 %v608
      %v705 = vunpack.c.l.b16 %v609
      %v706 = vunpack.c.l.b16 %v610
      %v707 = vunpack.c.l.b16 %v611
      %v708 = vunpack.c.l.b16 %v612
      %v709 = vunpack.c.l.b16 %v613
      %v710 = vunpack.c.l.b16 %v614
      %v711 = vunpack.c.l.b16 %v615
      %v712 = vunpack.c.l.b16 %v616
      %v713 = vunpack.c.l.b16 %v617
      %v714 = vunpack.c.l.b16 %v618
      %v715 = vunpack.c.l.b16 %v619
      %v716 = vunpack.c.l.b16 %v620
      %v717 = vunpack.c.l.b16 %v621
      %v718 = vunpack.c.l.b16 %v622
      %v719 = vunpack.c.l.b16 %v623
      %v720 = vunpack.c.l.b16 %v624
      %v721 = vunpack.c.l.b16 %v625
      %v722 = vunpack.c.l.b16 %v626
      %v723 = vunpack.c.l.b16 %v627
      %v724 = vunpack.c.l.b16 %v628
      %v725 = vunpack.c.l.b16 %v629
      %v726 = vunpack.c.l.b16 %v630
      %v727 = vunpack.c.l.b16 %v631
      %v728 = vunpack.c.l.b16 %v632
      %v729 = vpack.c.b16 %v682, %v681
      %v730 = vpack.c.b16 %v684, %v683
      %v731 = vpack.c.b16 %v686, %v685
      %v732 = vpack.c.b16 %v688, %v687
      %v733 = vpack.c.b16 %v690, %v689
      %v734 = vpack.c.b16 %v692, %v691
      %v735 = vpack.c.b16 %v694, %v693
      %v736 = vpack.c.b16 %v696, %v695
      %v737 = vpack.c.b16 %v698, %v697
      %v738 = vpack.c.b16 %v700, %v699
      %v739 = vpack.c.b16 %v702, %v701
      %v740 = vpack.c.b16 %v704, %v703
      %v741 = vpack.c.b16 %v706, %v705
      %v742 = vpack.c.b16 %v708, %v707
      %v743 = vpack.c.b16 %v710, %v709
      %v744 = vpack.c.b16 %v712, %v711
      %v745 = vpack.c.b16 %v714, %v713
      %v746 = vpack.c.b16 %v716, %v715
      %v747 = vpack.c.b16 %v718, %v717
      %v748 = vpack.c.b16 %v720, %v719
      %v749 = vpack.c.b16 %v722, %v721
      %v750 = vpack.c.b16 %v724, %v723
      %v751 = vpack.c.b16 %v726, %v725
      %v752 = vpack.c.b16 %v728, %v727
      %777 = vmatpush.bf16.msra.mxu0 %v736
      %778 = vmatpush.bf16.msra.mxu0 %v735
      %779 = vmatpush.bf16.msra.mxu0 %v734
      %780 = vmatpush.bf16.msra.mxu0 %v733
      %781 = vmatpush.bf16.msra.mxu0 %v732
      %782 = vmatpush.bf16.msra.mxu0 %v731
      %783 = vmatpush.bf16.msra.mxu0 %v730
      %784 = vmatpush.bf16.msra.mxu0 %v729
      %785 = vmatmul.bf16.gmra.mxu0 %v561
      %v786 = vpop.f32.mrf.mxu0
      %v787 = vadd.f32 0.0, %v786
      %v788 = vpop.f32.mrf.mxu0
      %v789 = vadd.f32 0.0, %v788
      %790 = vdwg.mxu0
      %791 = vmatpush.bf16.msra.mxu0 %v744
      %792 = vmatpush.bf16.msra.mxu0 %v743
      %793 = vmatpush.bf16.msra.mxu0 %v742
      %794 = vmatpush.bf16.msra.mxu0 %v741
      %795 = vmatpush.bf16.msra.mxu0 %v740
      %796 = vmatpush.bf16.msra.mxu0 %v739
      %797 = vmatpush.bf16.msra.mxu0 %v738
      %798 = vmatpush.bf16.msra.mxu0 %v737
      %799 = vmatmul.bf16.gmra.mxu0 %v578
      %v800 = vpop.f32.mrf.mxu0
      %v801 = vadd.f32 %v787, %v800
      %v802 = vpop.f32.mrf.mxu0
      %v803 = vadd.f32 %v789, %v802
      %804 = vdwg.mxu0
      %805 = vmatpush.bf16.msra.mxu0 %v752
      %806 = vmatpush.bf16.msra.mxu0 %v751
      %807 = vmatpush.bf16.msra.mxu0 %v750
      %808 = vmatpush.bf16.msra.mxu0 %v749
      %809 = vmatpush.bf16.msra.mxu0 %v748
      %810 = vmatpush.bf16.msra.mxu0 %v747
      %811 = vmatpush.bf16.msra.mxu0 %v746
      %812 = vmatpush.bf16.msra.mxu0 %v745
      %813 = vmatmul.bf16.gmra.mxu0 %v583
      %v814 = vpop.f32.mrf.mxu0
      %v815 = vadd.f32 %v801, %v814
      %v816 = vpop.f32.mrf.mxu0
      %v817 = vadd.f32 %v803, %v816
      %818 = vdwg.mxu0
      %819 = vst [vmem:[%s360] sm:$0xff] %v815
      %820 = vst [vmem:[%s360 + $0x8] sm:$0xff] %v817
      %v821 = vadd.f32 %v815, %v817
      %v822 = vrot.slane %v821, 4
      %v823 = vadd.f32 %v821, %v822
      %v824 = vrot.slane %v823, 2
      %v825 = vadd.f32 %v823, %v824
      %v826 = vrot.slane %v825, 1
      %v827 = vadd.f32 %v825, %v826
      %828 = vst [vmem:[%s363] sm:$0x1] %v827
      %v829 = vmul.f32 %v815, %v815
      %v830 = vmul.f32 %v817, %v817
      %v831 = vadd.f32 %v829, %v830
      %v832 = vrot.slane %v831, 4
      %v833 = vadd.f32 %v831, %v832
      %v834 = vrot.slane %v833, 2
      %v835 = vadd.f32 %v833, %v834
      %v836 = vrot.slane %v835, 1
      %v837 = vadd.f32 %v835, %v836
      %838 = vst [vmem:[%s366] sm:$0x1] %v837
      %p839 = scmp.lt.s32.totalorder %s21, 1
      %s840 = scalar_select %p839, %s21, 1
      %s841 = smul.addr %s840, 2
      %s842 = smul.addr %s841, 8
      %s843 = scalar_lea.vmem %s7, %s842
      %p844 = scmp.lt.s32.totalorder %s21, 1
      %s845 = scalar_select %p844, %s21, 1
      %s846 = scalar_lea.vmem %s8, %s845
      %p847 = scmp.lt.s32.totalorder %s21, 1
      %s848 = scalar_select %p847, %s21, 1
      %s849 = scalar_lea.vmem %s9, %s848
      // Predicated region
      $region49: #{mscsam_forward.3} parent=47 // pred_check
        %p850 = pneg %p196
      $region50: #{mscsam_forward.3} parent=47 // pred_check_branch
        %852 = sbr.rel (%p850) target = $region52
      $region51: #{mscsam_forward.3} parent=47 // pred_region
        _
      $region52: #{mscsam_forward.3} parent=47 // pred_fallthru
        _
      // Predicated region
      $region53: #{mscsam_forward.3} parent=47 // pred_check
        %p853 = pneg %p222
      $region54: #{mscsam_forward.3} parent=47 // pred_check_branch
        %855 = sbr.rel (%p853) target = $region56
      $region55: #{mscsam_forward.3} parent=47 // pred_region
        _
      $region56: #{mscsam_forward.3} parent=47 // pred_fallthru
        _
      // Predicated region
      $region57: #{mscsam_forward.3} parent=47 // pred_check
        %p856 = pneg %p248
      $region58: #{mscsam_forward.3} parent=47 // pred_check_branch
        %858 = sbr.rel (%p856) target = $region60
      $region59: #{mscsam_forward.3} parent=47 // pred_region
        _
      $region60: #{mscsam_forward.3} parent=47 // pred_fallthru
        _
    $region48: #{mscsam_forward.3} parent=5 // pred_fallthru
      _
    %p859 = scmp.le.s32.totalorder 2, %s16
    // Predicated region
    $region61: #{mscsam_forward.3} parent=5 // pred_check
      %p860 = pneg %p859
    $region62: #{mscsam_forward.3} parent=5 // pred_check_branch
      %862 = sbr.rel (%p860) target = $region64
    $region63: #{mscsam_forward.3} parent=5 // pred_region
      %s863 = ssub.s32 %s16, 2
      // Predicated region
      $region65: #{mscsam_forward.3} parent=63 // pred_check
        %p864 = pneg %p202
      $region66: #{mscsam_forward.3} parent=63 // pred_check_branch
        %866 = sbr.rel (%p864) target = $region68
      $region67: #{mscsam_forward.3} parent=63 // pred_region
        %p867 = scmp.lt.s32.totalorder %s22, 1
        %s868 = scalar_select %p867, %s22, 1
        %s869 = smul.addr %s868, 2
        %s870 = smul.addr %s869, 8
        %s871 = scalar_lea.vmem %s7, %s870
      $region68: #{mscsam_forward.3} parent=63 // pred_fallthru
        _
      // Predicated region
      $region69: #{mscsam_forward.3} parent=63 // pred_check
        %p872 = pneg %p228
      $region70: #{mscsam_forward.3} parent=63 // pred_check_branch
        %874 = sbr.rel (%p872) target = $region72
      $region71: #{mscsam_forward.3} parent=63 // pred_region
        %p875 = scmp.lt.s32.totalorder %s22, 1
        %s876 = scalar_select %p875, %s22, 1
        %s877 = scalar_lea.vmem %s8, %s876
      $region72: #{mscsam_forward.3} parent=63 // pred_fallthru
        _
      // Predicated region
      $region73: #{mscsam_forward.3} parent=63 // pred_check
        %p878 = pneg %p254
      $region74: #{mscsam_forward.3} parent=63 // pred_check_branch
        %880 = sbr.rel (%p878) target = $region76
      $region75: #{mscsam_forward.3} parent=63 // pred_region
        %p881 = scmp.lt.s32.totalorder %s22, 1
        %s882 = scalar_select %p881, %s22, 1
        %s883 = scalar_lea.vmem %s9, %s882
      $region76: #{mscsam_forward.3} parent=63 // pred_fallthru
        _
    $region64: #{mscsam_forward.3} parent=5 // pred_fallthru
      _
  $region6: #{mscsam_forward.3} parent=0 // loop_footer
    %s20 = sadd.s32 1, %s16
  $region7: #{mscsam_forward.3} parent=0 // loop_footer_branch
    %15 = sbr.rel target = $region3
  $region8: #{mscsam_forward.3} parent=0 // loop_exit
    _

// kernel: mscsam_forward.5
$region0: #{mscsam_forward.5}
  #allocation0 [shape = 'u32[]', space=smem, size = 0x4, offset = 0x4, fixed_abs, tag = 'smem constant byte address 0x4 - core index']
  #allocation1 [shape = 'u32[72,128]{1,0:T(1,128)}', space=vmem, size = 0x9000, scoped, tag = 'internal scratch']
  %s0 = inlined_call_operand.vmem [shape: f32[32,128], index: 0, kind: input, shape index: {}]
  %s1 = inlined_call_operand.vmem [shape: f32[1,128], index: 1, kind: input, shape index: {}]
  %s2 = inlined_call_operand.vmem [shape: f32[1,128], index: 2, kind: input, shape index: {}]
  %s3 = inlined_call_operand.vmem [shape: bf16[128,128], index: 3, kind: input, shape index: {}]
  %s4 = inlined_call_operand.vmem [shape: f32[32,128], index: 4, kind: output, shape index: {}]
  %s5 = sld [smem:[#allocation0]]
  $region49: #{mscsam_forward.5} parent=0
    _
  %s7 = ssub.s32 1, %s5
  %s8 = scalar_select 0, %s7, %s5
  loop: start=0, step=1, limit=4
  $region2: #{mscsam_forward.5} parent=0 // loop_pre_header
    _
  $region3: #{mscsam_forward.5} parent=0 // loop_header
    %s10 = sphi 0, %s14
    %p11 = scmp.ge.s32.totalorder %s10, 4
    %s20 = sphi 0, %s22
    %s23 = sphi 0, %s20
    %s24 = sphi 0, %s23
    %s40 = sphi 0, %s24
    %s44 = sphi 0, %s44
    %s46 = sphi 0, %s44
    %s47 = sphi 0, %s46
    %s61 = sphi 0, %s47
    %s65 = sphi 0, %s65
    %s67 = sphi 0, %s65
    %s68 = sphi 0, %s67
    %s82 = sphi 0, %s68
    %s86 = sphi 0, %s86
    %s88 = sphi 0, %s86
    %s89 = sphi 0, %s88
    %s103 = sphi 0, %s89
    %s109 = sphi 0, %s111
    %s112 = sphi 0, %s109
    %s113 = sphi 0, %s112
    %s129 = sphi 0, %s113
  $region4: #{mscsam_forward.5} parent=0 // loop_header_branch
    %13 = sbr.rel (%p11) target = $region8
  $region5: #{mscsam_forward.5} parent=0 // loop_body
    %s15 = ssub.s32 %s10, 1
    %s16 = ssub.s32 %s10, 2
    %s17 = sadd.s32 %s10, 1
    %s18 = ssub.s32 %s10, %s17
    %p19 = scmp.eq.s32.totalorder %s18, 0
    %s21 = sadd.s32 %s20, 1
    %s22 = scalar_select %p19, %s20, %s21
    %p25 = pneg %p19
    %p26 = scmp.eq.s32.totalorder %s10, 1
    %p27 = por %p25, %p26
    %p28 = scmp.ne.s32.totalorder %s20, %s23
    %p29 = scmp.eq.s32.totalorder %s10, 0
    %p30 = por %p28, %p29
    %p31 = scmp.ne.s32.totalorder %s20, %s23
    %p32 = scmp.eq.s32.totalorder %s15, 1
    %p33 = por %p31, %p32
    %p34 = scmp.ne.s32.totalorder %s23, %s24
    %p35 = scmp.eq.s32.totalorder %s15, 0
    %p36 = por %p34, %p35
    %p37 = scmp.ne.s32.totalorder %s23, %s24
    %p38 = scmp.eq.s32.totalorder %s16, 1
    %p39 = por %p37, %p38
    %p41 = scmp.ne.s32.totalorder %s24, %s40
    %p42 = scmp.eq.s32.totalorder %s16, 0
    %p43 = por %p41, %p42
    %s45 = sadd.s32 %s44, 1
    %p48 = scmp.eq.s32.totalorder %s10, 1
    %p49 = scmp.ne.s32.totalorder %s44, %s46
    %p50 = scmp.eq.s32.totalorder %s10, 0
    %p51 = por %p49, %p50
    %p52 = scmp.ne.s32.totalorder %s44, %s46
    %p53 = scmp.eq.s32.totalorder %s15, 1
    %p54 = por %p52, %p53
    %p55 = scmp.ne.s32.totalorder %s46, %s47
    %p56 = scmp.eq.s32.totalorder %s15, 0
    %p57 = por %p55, %p56
    %p58 = scmp.ne.s32.totalorder %s46, %s47
    %p59 = scmp.eq.s32.totalorder %s16, 1
    %p60 = por %p58, %p59
    %p62 = scmp.ne.s32.totalorder %s47, %s61
    %p63 = scmp.eq.s32.totalorder %s16, 0
    %p64 = por %p62, %p63
    %s66 = sadd.s32 %s65, 1
    %p69 = scmp.eq.s32.totalorder %s10, 1
    %p70 = scmp.ne.s32.totalorder %s65, %s67
    %p71 = scmp.eq.s32.totalorder %s10, 0
    %p72 = por %p70, %p71
    %p73 = scmp.ne.s32.totalorder %s65, %s67
    %p74 = scmp.eq.s32.totalorder %s15, 1
    %p75 = por %p73, %p74
    %p76 = scmp.ne.s32.totalorder %s67, %s68
    %p77 = scmp.eq.s32.totalorder %s15, 0
    %p78 = por %p76, %p77
    %p79 = scmp.ne.s32.totalorder %s67, %s68
    %p80 = scmp.eq.s32.totalorder %s16, 1
    %p81 = por %p79, %p80
    %p83 = scmp.ne.s32.totalorder %s68, %s82
    %p84 = scmp.eq.s32.totalorder %s16, 0
    %p85 = por %p83, %p84
    %s87 = sadd.s32 %s86, 1
    %p90 = scmp.eq.s32.totalorder %s10, 1
    %p91 = scmp.ne.s32.totalorder %s86, %s88
    %p92 = scmp.eq.s32.totalorder %s10, 0
    %p93 = por %p91, %p92
    %p94 = scmp.ne.s32.totalorder %s86, %s88
    %p95 = scmp.eq.s32.totalorder %s15, 1
    %p96 = por %p94, %p95
    %p97 = scmp.ne.s32.totalorder %s88, %s89
    %p98 = scmp.eq.s32.totalorder %s15, 0
    %p99 = por %p97, %p98
    %p100 = scmp.ne.s32.totalorder %s88, %s89
    %p101 = scmp.eq.s32.totalorder %s16, 1
    %p102 = por %p100, %p101
    %p104 = scmp.ne.s32.totalorder %s89, %s103
    %p105 = scmp.eq.s32.totalorder %s16, 0
    %p106 = por %p104, %p105
    %s107 = ssub.s32 %s10, %s17
    %p108 = scmp.eq.s32.totalorder %s107, 0
    %s110 = sadd.s32 %s109, 1
    %s111 = scalar_select %p108, %s109, %s110
    %p114 = pneg %p108
    %p115 = scmp.eq.s32.totalorder %s10, 1
    %p116 = por %p114, %p115
    %p117 = scmp.ne.s32.totalorder %s109, %s112
    %p118 = scmp.eq.s32.totalorder %s10, 0
    %p119 = por %p117, %p118
    %p120 = scmp.ne.s32.totalorder %s109, %s112
    %p121 = scmp.eq.s32.totalorder %s15, 1
    %p122 = por %p120, %p121
    %p123 = scmp.ne.s32.totalorder %s112, %s113
    %p124 = scmp.eq.s32.totalorder %s15, 0
    %p125 = por %p123, %p124
    %p126 = scmp.ne.s32.totalorder %s112, %s113
    %p127 = scmp.eq.s32.totalorder %s16, 1
    %p128 = por %p126, %p127
    %p130 = scmp.ne.s32.totalorder %s113, %s129
    %p131 = scmp.eq.s32.totalorder %s16, 0
    %p132 = por %p130, %p131
    %p133 = scmp.le.s32.totalorder 1, %s10
    %p134 = scmp.lt.s32.totalorder %s10, 3
    %p135 = pnand %p133, %p134
    %p136 = pneg %p135
    // Predicated region
    $region9: #{mscsam_forward.5} parent=5 // pred_check
      _
    $region10: #{mscsam_forward.5} parent=5 // pred_check_branch
      %138 = sbr.rel (%p135) target = $region12
    $region11: #{mscsam_forward.5} parent=5 // pred_region
      %s139 = ssub.s32 %s10, 1
      // Predicated region
      $region13: #{mscsam_forward.5} parent=11 // pred_check
        %p140 = pneg %p57
      $region14: #{mscsam_forward.5} parent=11 // pred_check_branch
        %142 = sbr.rel (%p140) target = $region16
      $region15: #{mscsam_forward.5} parent=11 // pred_region
        _
      $region16: #{mscsam_forward.5} parent=11 // pred_fallthru
        _
      // Predicated region
      $region17: #{mscsam_forward.5} parent=11 // pred_check
        %p143 = pneg %p78
      $region18: #{mscsam_forward.5} parent=11 // pred_check_branch
        %145 = sbr.rel (%p143) target = $region20
      $region19: #{mscsam_forward.5} parent=11 // pred_region
        _
      $region20: #{mscsam_forward.5} parent=11 // pred_fallthru
        _
      // Predicated region
      $region21: #{mscsam_forward.5} parent=11 // pred_check
        %p146 = pneg %p99
      $region22: #{mscsam_forward.5} parent=11 // pred_check_branch
        %148 = sbr.rel (%p146) target = $region24
      $region23: #{mscsam_forward.5} parent=11 // pred_region
        _
      $region24: #{mscsam_forward.5} parent=11 // pred_fallthru
        _
    $region12: #{mscsam_forward.5} parent=5 // pred_fallthru
      _
    %p149 = scmp.lt.s32.totalorder %s10, 2
    // Predicated region
    $region25: #{mscsam_forward.5} parent=5 // pred_check
      %p150 = pneg %p149
    $region26: #{mscsam_forward.5} parent=5 // pred_check_branch
      %152 = sbr.rel (%p150) target = $region28
    $region27: #{mscsam_forward.5} parent=5 // pred_region
      // Predicated region
      $region29: #{mscsam_forward.5} parent=27 // pred_check
        %p153 = pneg %p30
      $region30: #{mscsam_forward.5} parent=27 // pred_check_branch
        %155 = sbr.rel (%p153) target = $region32
      $region31: #{mscsam_forward.5} parent=27 // pred_region
        %s156 = smul.u32 2, %s10
        %p157 = scmp.lt.s32.totalorder %s156, 3
        %s158 = scalar_select %p157, %s156, 3
        %s159 = smul.addr %s158, 8
        %s160 = scalar_lea.vmem %s0, %s159
        %s161 = smul.u32 2, %s10
      $region32: #{mscsam_forward.5} parent=27 // pred_fallthru
        _
    $region28: #{mscsam_forward.5} parent=5 // pred_fallthru
      _
    %p162 = scmp.le.s32.totalorder 1, %s10
    %p163 = scmp.lt.s32.totalorder %s10, 3
    %p164 = pnand %p162, %p163
    %p165 = pneg %p164
    // Predicated region
    $region33: #{mscsam_forward.5} parent=5 // pred_check
      _
    $region34: #{mscsam_forward.5} parent=5 // pred_check_branch
      %167 = sbr.rel (%p164) target = $region36
    $region35: #{mscsam_forward.5} parent=5 // pred_region
      %s168 = ssub.s32 %s10, 1
      %s169 = smul.u32 2, %s15
      %p170 = scmp.lt.s32.totalorder %s169, 3
      %s171 = scalar_select %p170, %s169, 3
      %s172 = smul.addr %s171, 8
      %s173 = scalar_lea.vmem %s0, %s172
      %p174 = pneg %p36
      %p175 = pneg %p33
      %p176 = pneg %p57
      %p177 = pneg %p54
      %p178 = pneg %p78
      %p179 = pneg %p75
      %p180 = pneg %p99
      %p181 = pneg %p96
      %p182 = pneg %p125
      %p183 = pneg %p122
      %s184 = smul.u32 2, %s15
      %p185 = scmp.lt.s32.totalorder %s184, 3
      %s186 = scalar_select %p185, %s184, 3
      %s187 = smul.addr %s186, 8
      %s188 = scalar_lea.vmem %s4, %s187
      %s189 = smul.u32 2, %s15
      %p190 = scmp.lt.s32.totalorder %s189, 3
      %s191 = scalar_select %p190, %s189, 3
      %s192 = smul.addr %s191, 8
      %s193 = scalar_lea.vmem %s0, %s192
      %s194 = smul.u32 2, %s15
      %s195 = smul.u32 2, %s15
      %p196 = scmp.lt.s32.totalorder %s195, 3
      %s197 = scalar_select %p196, %s195, 3
      %s198 = smul.addr %s197, 8
      %s199 = scalar_lea.vmem %s4, %s198
      %s200 = smul.u32 2, %s15
      %v201 = vld [vmem:[%s193] sm:$0xff]
      %v202 = vld [vmem:[%s193 + $0x8] sm:$0xff]
      %v203 = vld [vmem:[%s1] sm:$0x1]
      %v205 = vperm.slane %v203, 0
      %v207 = vmul.f32 %v201, %v205
      %v208 = vmul.f32 %v202, %v205
      %v209 = vld [vmem:[%s2] sm:$0x1]
      %v211 = vperm.slane %v209, 0
      %v213 = vadd.f32 %v207, %v211
      %v214 = vadd.f32 %v208, %v211
      %v215 = vmax.f32 %v213, 0.0
      %v216 = vmax.f32 %v214, 0.0
      %v217 = vpack.c.bf16 %v216, %v215
      %v218 = vld [vmem:[%s3] sm:$0xf]
      %v219 = vld [vmem:[%s3 + $0x4] sm:$0xf]
      %v220 = vld [vmem:[%s3 + $0x8] sm:$0xf]
      %v221 = vld [vmem:[%s3 + $0xc] sm:$0xf]
      %v222 = vld [vmem:[%s3 + $0x10] sm:$0xf]
      %v223 = vld [vmem:[%s3 + $0x14] sm:$0xf]
      %v224 = vld [vmem:[%s3 + $0x18] sm:$0xf]
      %v225 = vld [vmem:[%s3 + $0x1c] sm:$0xf]
      %v226 = vld [vmem:[%s3 + $0x20] sm:$0xf]
      %v227 = vld [vmem:[%s3 + $0x24] sm:$0xf]
      %v228 = vld [vmem:[%s3 + $0x28] sm:$0xf]
      %v229 = vld [vmem:[%s3 + $0x2c] sm:$0xf]
      %v230 = vld [vmem:[%s3 + $0x30] sm:$0xf]
      %v231 = vld [vmem:[%s3 + $0x34] sm:$0xf]
      %v232 = vld [vmem:[%s3 + $0x38] sm:$0xf]
      %v233 = vld [vmem:[%s3 + $0x3c] sm:$0xf]
      %v250 = vunpack.c.l.b16 %v218
      %v251 = vunpack.c.l.b16 %v219
      %v252 = vunpack.c.l.b16 %v220
      %v253 = vunpack.c.l.b16 %v221
      %v254 = vunpack.c.l.b16 %v222
      %v255 = vunpack.c.l.b16 %v223
      %v256 = vunpack.c.l.b16 %v224
      %v257 = vunpack.c.l.b16 %v225
      %v258 = vunpack.c.l.b16 %v226
      %v259 = vunpack.c.l.b16 %v227
      %v260 = vunpack.c.l.b16 %v228
      %v261 = vunpack.c.l.b16 %v229
      %v262 = vunpack.c.l.b16 %v230
      %v263 = vunpack.c.l.b16 %v231
      %v264 = vunpack.c.l.b16 %v232
      %v265 = vunpack.c.l.b16 %v233
      %v266 = vpack.c.b16 %v251, %v250
      %v267 = vpack.c.b16 %v253, %v252
      %v268 = vpack.c.b16 %v255, %v254
      %v269 = vpack.c.b16 %v257, %v256
      %v270 = vpack.c.b16 %v259, %v258
      %v271 = vpack.c.b16 %v261, %v260
      %v272 = vpack.c.b16 %v263, %v262
      %v273 = vpack.c.b16 %v265, %v264
      %282 = vmatpush.bf16.msra.mxu0 %v273
      %283 = vmatpush.bf16.msra.mxu0 %v272
      %284 = vmatpush.bf16.msra.mxu0 %v271
      %285 = vmatpush.bf16.msra.mxu0 %v270
      %286 = vmatpush.bf16.msra.mxu0 %v269
      %287 = vmatpush.bf16.msra.mxu0 %v268
      %288 = vmatpush.bf16.msra.mxu0 %v267
      %289 = vmatpush.bf16.msra.mxu0 %v266
      %290 = vmatmul.bf16.gmra.mxu0 %v217
      %v291 = vpop.f32.mrf.mxu0
      %v292 = vadd.f32 0.0, %v291
      %v293 = vpop.f32.mrf.mxu0
      %v294 = vadd.f32 0.0, %v293
      %295 = vdwg.mxu0
      %296 = vst [vmem:[%s199] sm:$0xff] %v292
      %297 = vst [vmem:[%s199 + $0x8] sm:$0xff] %v294
      %s298 = smul.u32 2, %s15
      %p299 = scmp.lt.s32.totalorder %s298, 3
      %s300 = scalar_select %p299, %s298, 3
      %s301 = smul.addr %s300, 8
      %s302 = scalar_lea.vmem %s4, %s301
      // Predicated region
      $region37: #{mscsam_forward.5} parent=35 // pred_check
        %p303 = pneg %p122
      $region38: #{mscsam_forward.5} parent=35 // pred_check_branch
        %305 = sbr.rel (%p303) target = $region40
      $region39: #{mscsam_forward.5} parent=35 // pred_region
        %s306 = smul.u32 2, %s15
      $region40: #{mscsam_forward.5} parent=35 // pred_fallthru
        _
    $region36: #{mscsam_forward.5} parent=5 // pred_fallthru
      _
    %p307 = scmp.le.s32.totalorder 2, %s10
    // Predicated region
    $region41: #{mscsam_forward.5} parent=5 // pred_check
      %p308 = pneg %p307
    $region42: #{mscsam_forward.5} parent=5 // pred_check_branch
      %310 = sbr.rel (%p308) target = $region44
    $region43: #{mscsam_forward.5} parent=5 // pred_region
      %s311 = ssub.s32 %s10, 2
      // Predicated region
      $region45: #{mscsam_forward.5} parent=43 // pred_check
        %p312 = pneg %p128
      $region46: #{mscsam_forward.5} parent=43 // pred_check_branch
        %314 = sbr.rel (%p312) target = $region48
      $region47: #{mscsam_forward.5} parent=43 // pred_region
        %s315 = smul.u32 2, %s16
        %p316 = scmp.lt.s32.totalorder %s315, 3
        %s317 = scalar_select %p316, %s315, 3
        %s318 = smul.addr %s317, 8
        %s319 = scalar_lea.vmem %s4, %s318
      $region48: #{mscsam_forward.5} parent=43 // pred_fallthru
        _
    $region44: #{mscsam_forward.5} parent=5 // pred_fallthru
      _
  $region6: #{mscsam_forward.5} parent=0 // loop_footer
    %s14 = sadd.s32 1, %s10
  $region7: #{mscsam_forward.5} parent=0 // loop_footer_branch
    %9 = sbr.rel target = $region3
  $region8: #{mscsam_forward.5} parent=0 // loop_exit
    _

// kernel: mscsam_forward.4
$region0: #{mscsam_forward.4}
  #allocation0 [shape = 'u32[]', space=smem, size = 0x4, offset = 0x4, fixed_abs, tag = 'smem constant byte address 0x4 - core index']
  #allocation1 [shape = 'u32[72,128]{1,0:T(1,128)}', space=vmem, size = 0x9000, scoped, tag = 'internal scratch']
  #allocation2 [shape = 'f32[1,22,32]{2,1,0:T(8,128)}', space=vmem, size = 0x3000, scoped, tag = 'scratch operand']
  #allocation3 [shape = 'bf16[1,18,128]{2,1,0:T(8,128)(2,1)}', space=vmem, size = 0x1800, scoped, tag = 'scratch operand']
  %s0 = inlined_call_operand.vmem [shape: f32[2,16,128], index: 0, kind: input, shape index: {}]
  %s1 = inlined_call_operand.vmem [shape: f32[1,128], index: 1, kind: input, shape index: {}]
  %s2 = inlined_call_operand.vmem [shape: f32[1,128], index: 2, kind: input, shape index: {}]
  %s3 = inlined_call_operand.vmem [shape: f32[8,64], index: 3, kind: input, shape index: {}]
  %s4 = inlined_call_operand.vmem [shape: f32[64,8], index: 4, kind: input, shape index: {}]
  %s5 = inlined_call_operand.vmem [shape: f32[8,128], index: 5, kind: input, shape index: {}]
  %s6 = inlined_call_operand.vmem [shape: f32[128,8], index: 6, kind: input, shape index: {}]
  %s7 = inlined_call_operand.vmem [shape: f32[128,16], index: 7, kind: input, shape index: {}]
  %s8 = inlined_call_operand.vmem [shape: f32[128,16], index: 8, kind: input, shape index: {}]
  %s9 = inlined_call_operand.vmem [shape: f32[16,128], index: 9, kind: input, shape index: {}]
  %s10 = inlined_call_operand.vmem [shape: f32[224,16], index: 10, kind: input, shape index: {}]
  %s11 = inlined_call_operand.vmem [shape: bf16[384,128], index: 11, kind: input, shape index: {}]
  %s12 = inlined_call_operand.vmem [shape: f32[1,128], index: 12, kind: input, shape index: {}]
  %s13 = inlined_call_operand.vmem [shape: f32[2,16,128], index: 13, kind: output, shape index: {0}]
  %s14 = inlined_call_operand.vmem [shape: f32[2,1,128], index: 14, kind: output, shape index: {1}]
  %s15 = inlined_call_operand.vmem [shape: f32[2,1,128], index: 15, kind: output, shape index: {2}]
  %16 = xla_tuple %s13, %s14, %s15
  %s17 = sld [smem:[#allocation0]]
  $region101: #{mscsam_forward.4} parent=0
    _
  %s19 = ssub.s32 1, %s17
  %s20 = scalar_select 0, %s19, %s17
  loop: start=0, step=1, limit=4
  $region2: #{mscsam_forward.4} parent=0 // loop_pre_header
    _
  $region3: #{mscsam_forward.4} parent=0 // loop_header
    %s22 = sphi 0, %s26
    %p23 = scmp.ge.s32.totalorder %s22, 4
    %s32 = sphi 0, %s34
    %s35 = sphi 0, %s32
    %s36 = sphi 0, %s35
    %s52 = sphi 0, %s36
    %s56 = sphi 0, %s56
    %s58 = sphi 0, %s56
    %s59 = sphi 0, %s58
    %s73 = sphi 0, %s59
    %s77 = sphi 0, %s77
    %s79 = sphi 0, %s77
    %s80 = sphi 0, %s79
    %s94 = sphi 0, %s80
    %s98 = sphi 0, %s98
    %s100 = sphi 0, %s98
    %s101 = sphi 0, %s100
    %s115 = sphi 0, %s101
    %s119 = sphi 0, %s119
    %s121 = sphi 0, %s119
    %s122 = sphi 0, %s121
    %s136 = sphi 0, %s122
    %s140 = sphi 0, %s140
    %s142 = sphi 0, %s140
    %s143 = sphi 0, %s142
    %s157 = sphi 0, %s143
    %s161 = sphi 0, %s161
    %s163 = sphi 0, %s161
    %s164 = sphi 0, %s163
    %s178 = sphi 0, %s164
    %s182 = sphi 0, %s182
    %s184 = sphi 0, %s182
    %s185 = sphi 0, %s184
    %s199 = sphi 0, %s185
    %s203 = sphi 0, %s203
    %s205 = sphi 0, %s203
    %s206 = sphi 0, %s205
    %s220 = sphi 0, %s206
    %s224 = sphi 0, %s224
    %s226 = sphi 0, %s224
    %s227 = sphi 0, %s226
    %s241 = sphi 0, %s227
    %s245 = sphi 0, %s245
    %s247 = sphi 0, %s245
    %s248 = sphi 0, %s247
    %s262 = sphi 0, %s248
    %s266 = sphi 0, %s266
    %s268 = sphi 0, %s266
    %s269 = sphi 0, %s268
    %s283 = sphi 0, %s269
    %s287 = sphi 0, %s287
    %s289 = sphi 0, %s287
    %s290 = sphi 0, %s289
    %s304 = sphi 0, %s290
    %s310 = sphi 0, %s312
    %s313 = sphi 0, %s310
    %s314 = sphi 0, %s313
    %s330 = sphi 0, %s314
    %s336 = sphi 0, %s338
    %s339 = sphi 0, %s336
    %s340 = sphi 0, %s339
    %s356 = sphi 0, %s340
    %s362 = sphi 0, %s364
    %s365 = sphi 0, %s362
    %s366 = sphi 0, %s365
    %s382 = sphi 0, %s366
  $region4: #{mscsam_forward.4} parent=0 // loop_header_branch
    %25 = sbr.rel (%p23) target = $region8
  $region5: #{mscsam_forward.4} parent=0 // loop_body
    %s27 = ssub.s32 %s22, 1
    %s28 = ssub.s32 %s22, 2
    %s29 = sadd.s32 %s22, 1
    %s30 = ssub.s32 %s22, %s29
    %p31 = scmp.eq.s32.totalorder %s30, 0
    %s33 = sadd.s32 %s32, 1
    %s34 = scalar_select %p31, %s32, %s33
    %p37 = pneg %p31
    %p38 = scmp.eq.s32.totalorder %s22, 1
    %p39 = por %p37, %p38
    %p40 = scmp.ne.s32.totalorder %s32, %s35
    %p41 = scmp.eq.s32.totalorder %s22, 0
    %p42 = por %p40, %p41
    %p43 = scmp.ne.s32.totalorder %s32, %s35
    %p44 = scmp.eq.s32.totalorder %s27, 1
    %p45 = por %p43, %p44
    %p46 = scmp.ne.s32.totalorder %s35, %s36
    %p47 = scmp.eq.s32.totalorder %s27, 0
    %p48 = por %p46, %p47
    %p49 = scmp.ne.s32.totalorder %s35, %s36
    %p50 = scmp.eq.s32.totalorder %s28, 1
    %p51 = por %p49, %p50
    %p53 = scmp.ne.s32.totalorder %s36, %s52
    %p54 = scmp.eq.s32.totalorder %s28, 0
    %p55 = por %p53, %p54
    %s57 = sadd.s32 %s56, 1
    %p60 = scmp.eq.s32.totalorder %s22, 1
    %p61 = scmp.ne.s32.totalorder %s56, %s58
    %p62 = scmp.eq.s32.totalorder %s22, 0
    %p63 = por %p61, %p62
    %p64 = scmp.ne.s32.totalorder %s56, %s58
    %p65 = scmp.eq.s32.totalorder %s27, 1
    %p66 = por %p64, %p65
    %p67 = scmp.ne.s32.totalorder %s58, %s59
    %p68 = scmp.eq.s32.totalorder %s27, 0
    %p69 = por %p67, %p68
    %p70 = scmp.ne.s32.totalorder %s58, %s59
    %p71 = scmp.eq.s32.totalorder %s28, 1
    %p72 = por %p70, %p71
    %p74 = scmp.ne.s32.totalorder %s59, %s73
    %p75 = scmp.eq.s32.totalorder %s28, 0
    %p76 = por %p74, %p75
    %s78 = sadd.s32 %s77, 1
    %p81 = scmp.eq.s32.totalorder %s22, 1
    %p82 = scmp.ne.s32.totalorder %s77, %s79
    %p83 = scmp.eq.s32.totalorder %s22, 0
    %p84 = por %p82, %p83
    %p85 = scmp.ne.s32.totalorder %s77, %s79
    %p86 = scmp.eq.s32.totalorder %s27, 1
    %p87 = por %p85, %p86
    %p88 = scmp.ne.s32.totalorder %s79, %s80
    %p89 = scmp.eq.s32.totalorder %s27, 0
    %p90 = por %p88, %p89
    %p91 = scmp.ne.s32.totalorder %s79, %s80
    %p92 = scmp.eq.s32.totalorder %s28, 1
    %p93 = por %p91, %p92
    %p95 = scmp.ne.s32.totalorder %s80, %s94
    %p96 = scmp.eq.s32.totalorder %s28, 0
    %p97 = por %p95, %p96
    %s99 = sadd.s32 %s98, 1
    %p102 = scmp.eq.s32.totalorder %s22, 1
    %p103 = scmp.ne.s32.totalorder %s98, %s100
    %p104 = scmp.eq.s32.totalorder %s22, 0
    %p105 = por %p103, %p104
    %p106 = scmp.ne.s32.totalorder %s98, %s100
    %p107 = scmp.eq.s32.totalorder %s27, 1
    %p108 = por %p106, %p107
    %p109 = scmp.ne.s32.totalorder %s100, %s101
    %p110 = scmp.eq.s32.totalorder %s27, 0
    %p111 = por %p109, %p110
    %p112 = scmp.ne.s32.totalorder %s100, %s101
    %p113 = scmp.eq.s32.totalorder %s28, 1
    %p114 = por %p112, %p113
    %p116 = scmp.ne.s32.totalorder %s101, %s115
    %p117 = scmp.eq.s32.totalorder %s28, 0
    %p118 = por %p116, %p117
    %s120 = sadd.s32 %s119, 1
    %p123 = scmp.eq.s32.totalorder %s22, 1
    %p124 = scmp.ne.s32.totalorder %s119, %s121
    %p125 = scmp.eq.s32.totalorder %s22, 0
    %p126 = por %p124, %p125
    %p127 = scmp.ne.s32.totalorder %s119, %s121
    %p128 = scmp.eq.s32.totalorder %s27, 1
    %p129 = por %p127, %p128
    %p130 = scmp.ne.s32.totalorder %s121, %s122
    %p131 = scmp.eq.s32.totalorder %s27, 0
    %p132 = por %p130, %p131
    %p133 = scmp.ne.s32.totalorder %s121, %s122
    %p134 = scmp.eq.s32.totalorder %s28, 1
    %p135 = por %p133, %p134
    %p137 = scmp.ne.s32.totalorder %s122, %s136
    %p138 = scmp.eq.s32.totalorder %s28, 0
    %p139 = por %p137, %p138
    %s141 = sadd.s32 %s140, 1
    %p144 = scmp.eq.s32.totalorder %s22, 1
    %p145 = scmp.ne.s32.totalorder %s140, %s142
    %p146 = scmp.eq.s32.totalorder %s22, 0
    %p147 = por %p145, %p146
    %p148 = scmp.ne.s32.totalorder %s140, %s142
    %p149 = scmp.eq.s32.totalorder %s27, 1
    %p150 = por %p148, %p149
    %p151 = scmp.ne.s32.totalorder %s142, %s143
    %p152 = scmp.eq.s32.totalorder %s27, 0
    %p153 = por %p151, %p152
    %p154 = scmp.ne.s32.totalorder %s142, %s143
    %p155 = scmp.eq.s32.totalorder %s28, 1
    %p156 = por %p154, %p155
    %p158 = scmp.ne.s32.totalorder %s143, %s157
    %p159 = scmp.eq.s32.totalorder %s28, 0
    %p160 = por %p158, %p159
    %s162 = sadd.s32 %s161, 1
    %p165 = scmp.eq.s32.totalorder %s22, 1
    %p166 = scmp.ne.s32.totalorder %s161, %s163
    %p167 = scmp.eq.s32.totalorder %s22, 0
    %p168 = por %p166, %p167
    %p169 = scmp.ne.s32.totalorder %s161, %s163
    %p170 = scmp.eq.s32.totalorder %s27, 1
    %p171 = por %p169, %p170
    %p172 = scmp.ne.s32.totalorder %s163, %s164
    %p173 = scmp.eq.s32.totalorder %s27, 0
    %p174 = por %p172, %p173
    %p175 = scmp.ne.s32.totalorder %s163, %s164
    %p176 = scmp.eq.s32.totalorder %s28, 1
    %p177 = por %p175, %p176
    %p179 = scmp.ne.s32.totalorder %s164, %s178
    %p180 = scmp.eq.s32.totalorder %s28, 0
    %p181 = por %p179, %p180
    %s183 = sadd.s32 %s182, 1
    %p186 = scmp.eq.s32.totalorder %s22, 1
    %p187 = scmp.ne.s32.totalorder %s182, %s184
    %p188 = scmp.eq.s32.totalorder %s22, 0
    %p189 = por %p187, %p188
    %p190 = scmp.ne.s32.totalorder %s182, %s184
    %p191 = scmp.eq.s32.totalorder %s27, 1
    %p192 = por %p190, %p191
    %p193 = scmp.ne.s32.totalorder %s184, %s185
    %p194 = scmp.eq.s32.totalorder %s27, 0
    %p195 = por %p193, %p194
    %p196 = scmp.ne.s32.totalorder %s184, %s185
    %p197 = scmp.eq.s32.totalorder %s28, 1
    %p198 = por %p196, %p197
    %p200 = scmp.ne.s32.totalorder %s185, %s199
    %p201 = scmp.eq.s32.totalorder %s28, 0
    %p202 = por %p200, %p201
    %s204 = sadd.s32 %s203, 1
    %p207 = scmp.eq.s32.totalorder %s22, 1
    %p208 = scmp.ne.s32.totalorder %s203, %s205
    %p209 = scmp.eq.s32.totalorder %s22, 0
    %p210 = por %p208, %p209
    %p211 = scmp.ne.s32.totalorder %s203, %s205
    %p212 = scmp.eq.s32.totalorder %s27, 1
    %p213 = por %p211, %p212
    %p214 = scmp.ne.s32.totalorder %s205, %s206
    %p215 = scmp.eq.s32.totalorder %s27, 0
    %p216 = por %p214, %p215
    %p217 = scmp.ne.s32.totalorder %s205, %s206
    %p218 = scmp.eq.s32.totalorder %s28, 1
    %p219 = por %p217, %p218
    %p221 = scmp.ne.s32.totalorder %s206, %s220
    %p222 = scmp.eq.s32.totalorder %s28, 0
    %p223 = por %p221, %p222
    %s225 = sadd.s32 %s224, 1
    %p228 = scmp.eq.s32.totalorder %s22, 1
    %p229 = scmp.ne.s32.totalorder %s224, %s226
    %p230 = scmp.eq.s32.totalorder %s22, 0
    %p231 = por %p229, %p230
    %p232 = scmp.ne.s32.totalorder %s224, %s226
    %p233 = scmp.eq.s32.totalorder %s27, 1
    %p234 = por %p232, %p233
    %p235 = scmp.ne.s32.totalorder %s226, %s227
    %p236 = scmp.eq.s32.totalorder %s27, 0
    %p237 = por %p235, %p236
    %p238 = scmp.ne.s32.totalorder %s226, %s227
    %p239 = scmp.eq.s32.totalorder %s28, 1
    %p240 = por %p238, %p239
    %p242 = scmp.ne.s32.totalorder %s227, %s241
    %p243 = scmp.eq.s32.totalorder %s28, 0
    %p244 = por %p242, %p243
    %s246 = sadd.s32 %s245, 1
    %p249 = scmp.eq.s32.totalorder %s22, 1
    %p250 = scmp.ne.s32.totalorder %s245, %s247
    %p251 = scmp.eq.s32.totalorder %s22, 0
    %p252 = por %p250, %p251
    %p253 = scmp.ne.s32.totalorder %s245, %s247
    %p254 = scmp.eq.s32.totalorder %s27, 1
    %p255 = por %p253, %p254
    %p256 = scmp.ne.s32.totalorder %s247, %s248
    %p257 = scmp.eq.s32.totalorder %s27, 0
    %p258 = por %p256, %p257
    %p259 = scmp.ne.s32.totalorder %s247, %s248
    %p260 = scmp.eq.s32.totalorder %s28, 1
    %p261 = por %p259, %p260
    %p263 = scmp.ne.s32.totalorder %s248, %s262
    %p264 = scmp.eq.s32.totalorder %s28, 0
    %p265 = por %p263, %p264
    %s267 = sadd.s32 %s266, 1
    %p270 = scmp.eq.s32.totalorder %s22, 1
    %p271 = scmp.ne.s32.totalorder %s266, %s268
    %p272 = scmp.eq.s32.totalorder %s22, 0
    %p273 = por %p271, %p272
    %p274 = scmp.ne.s32.totalorder %s266, %s268
    %p275 = scmp.eq.s32.totalorder %s27, 1
    %p276 = por %p274, %p275
    %p277 = scmp.ne.s32.totalorder %s268, %s269
    %p278 = scmp.eq.s32.totalorder %s27, 0
    %p279 = por %p277, %p278
    %p280 = scmp.ne.s32.totalorder %s268, %s269
    %p281 = scmp.eq.s32.totalorder %s28, 1
    %p282 = por %p280, %p281
    %p284 = scmp.ne.s32.totalorder %s269, %s283
    %p285 = scmp.eq.s32.totalorder %s28, 0
    %p286 = por %p284, %p285
    %s288 = sadd.s32 %s287, 1
    %p291 = scmp.eq.s32.totalorder %s22, 1
    %p292 = scmp.ne.s32.totalorder %s287, %s289
    %p293 = scmp.eq.s32.totalorder %s22, 0
    %p294 = por %p292, %p293
    %p295 = scmp.ne.s32.totalorder %s287, %s289
    %p296 = scmp.eq.s32.totalorder %s27, 1
    %p297 = por %p295, %p296
    %p298 = scmp.ne.s32.totalorder %s289, %s290
    %p299 = scmp.eq.s32.totalorder %s27, 0
    %p300 = por %p298, %p299
    %p301 = scmp.ne.s32.totalorder %s289, %s290
    %p302 = scmp.eq.s32.totalorder %s28, 1
    %p303 = por %p301, %p302
    %p305 = scmp.ne.s32.totalorder %s290, %s304
    %p306 = scmp.eq.s32.totalorder %s28, 0
    %p307 = por %p305, %p306
    %s308 = ssub.s32 %s22, %s29
    %p309 = scmp.eq.s32.totalorder %s308, 0
    %s311 = sadd.s32 %s310, 1
    %s312 = scalar_select %p309, %s310, %s311
    %p315 = pneg %p309
    %p316 = scmp.eq.s32.totalorder %s22, 1
    %p317 = por %p315, %p316
    %p318 = scmp.ne.s32.totalorder %s310, %s313
    %p319 = scmp.eq.s32.totalorder %s22, 0
    %p320 = por %p318, %p319
    %p321 = scmp.ne.s32.totalorder %s310, %s313
    %p322 = scmp.eq.s32.totalorder %s27, 1
    %p323 = por %p321, %p322
    %p324 = scmp.ne.s32.totalorder %s313, %s314
    %p325 = scmp.eq.s32.totalorder %s27, 0
    %p326 = por %p324, %p325
    %p327 = scmp.ne.s32.totalorder %s313, %s314
    %p328 = scmp.eq.s32.totalorder %s28, 1
    %p329 = por %p327, %p328
    %p331 = scmp.ne.s32.totalorder %s314, %s330
    %p332 = scmp.eq.s32.totalorder %s28, 0
    %p333 = por %p331, %p332
    %s334 = ssub.s32 %s22, %s29
    %p335 = scmp.eq.s32.totalorder %s334, 0
    %s337 = sadd.s32 %s336, 1
    %s338 = scalar_select %p335, %s336, %s337
    %p341 = pneg %p335
    %p342 = scmp.eq.s32.totalorder %s22, 1
    %p343 = por %p341, %p342
    %p344 = scmp.ne.s32.totalorder %s336, %s339
    %p345 = scmp.eq.s32.totalorder %s22, 0
    %p346 = por %p344, %p345
    %p347 = scmp.ne.s32.totalorder %s336, %s339
    %p348 = scmp.eq.s32.totalorder %s27, 1
    %p349 = por %p347, %p348
    %p350 = scmp.ne.s32.totalorder %s339, %s340
    %p351 = scmp.eq.s32.totalorder %s27, 0
    %p352 = por %p350, %p351
    %p353 = scmp.ne.s32.totalorder %s339, %s340
    %p354 = scmp.eq.s32.totalorder %s28, 1
    %p355 = por %p353, %p354
    %p357 = scmp.ne.s32.totalorder %s340, %s356
    %p358 = scmp.eq.s32.totalorder %s28, 0
    %p359 = por %p357, %p358
    %s360 = ssub.s32 %s22, %s29
    %p361 = scmp.eq.s32.totalorder %s360, 0
    %s363 = sadd.s32 %s362, 1
    %s364 = scalar_select %p361, %s362, %s363
    %p367 = pneg %p361
    %p368 = scmp.eq.s32.totalorder %s22, 1
    %p369 = por %p367, %p368
    %p370 = scmp.ne.s32.totalorder %s362, %s365
    %p371 = scmp.eq.s32.totalorder %s22, 0
    %p372 = por %p370, %p371
    %p373 = scmp.ne.s32.totalorder %s362, %s365
    %p374 = scmp.eq.s32.totalorder %s27, 1
    %p375 = por %p373, %p374
    %p376 = scmp.ne.s32.totalorder %s365, %s366
    %p377 = scmp.eq.s32.totalorder %s27, 0
    %p378 = por %p376, %p377
    %p379 = scmp.ne.s32.totalorder %s365, %s366
    %p380 = scmp.eq.s32.totalorder %s28, 1
    %p381 = por %p379, %p380
    %p383 = scmp.ne.s32.totalorder %s366, %s382
    %p384 = scmp.eq.s32.totalorder %s28, 0
    %p385 = por %p383, %p384
    %p386 = scmp.le.s32.totalorder 1, %s22
    %p387 = scmp.lt.s32.totalorder %s22, 3
    %p388 = pnand %p386, %p387
    %p389 = pneg %p388
    // Predicated region
    $region9: #{mscsam_forward.4} parent=5 // pred_check
      _
    $region10: #{mscsam_forward.4} parent=5 // pred_check_branch
      %391 = sbr.rel (%p388) target = $region12
    $region11: #{mscsam_forward.4} parent=5 // pred_region
      %s392 = ssub.s32 %s22, 1
      // Predicated region
      $region13: #{mscsam_forward.4} parent=11 // pred_check
        %p393 = pneg %p69
      $region14: #{mscsam_forward.4} parent=11 // pred_check_branch
        %395 = sbr.rel (%p393) target = $region16
      $region15: #{mscsam_forward.4} parent=11 // pred_region
        _
      $region16: #{mscsam_forward.4} parent=11 // pred_fallthru
        _
      // Predicated region
      $region17: #{mscsam_forward.4} parent=11 // pred_check
        %p396 = pneg %p90
      $region18: #{mscsam_forward.4} parent=11 // pred_check_branch
        %398 = sbr.rel (%p396) target = $region20
      $region19: #{mscsam_forward.4} parent=11 // pred_region
        _
      $region20: #{mscsam_forward.4} parent=11 // pred_fallthru
        _
      // Predicated region
      $region21: #{mscsam_forward.4} parent=11 // pred_check
        %p399 = pneg %p111
      $region22: #{mscsam_forward.4} parent=11 // pred_check_branch
        %401 = sbr.rel (%p399) target = $region24
      $region23: #{mscsam_forward.4} parent=11 // pred_region
        _
      $region24: #{mscsam_forward.4} parent=11 // pred_fallthru
        _
      // Predicated region
      $region25: #{mscsam_forward.4} parent=11 // pred_check
        %p402 = pneg %p132
      $region26: #{mscsam_forward.4} parent=11 // pred_check_branch
        %404 = sbr.rel (%p402) target = $region28
      $region27: #{mscsam_forward.4} parent=11 // pred_region
        _
      $region28: #{mscsam_forward.4} parent=11 // pred_fallthru
        _
      // Predicated region
      $region29: #{mscsam_forward.4} parent=11 // pred_check
        %p405 = pneg %p153
      $region30: #{mscsam_forward.4} parent=11 // pred_check_branch
        %407 = sbr.rel (%p405) target = $region32
      $region31: #{mscsam_forward.4} parent=11 // pred_region
        _
      $region32: #{mscsam_forward.4} parent=11 // pred_fallthru
        _
      // Predicated region
      $region33: #{mscsam_forward.4} parent=11 // pred_check
        %p408 = pneg %p174
      $region34: #{mscsam_forward.4} parent=11 // pred_check_branch
        %410 = sbr.rel (%p408) target = $region36
      $region35: #{mscsam_forward.4} parent=11 // pred_region
        _
      $region36: #{mscsam_forward.4} parent=11 // pred_fallthru
        _
      // Predicated region
      $region37: #{mscsam_forward.4} parent=11 // pred_check
        %p411 = pneg %p195
      $region38: #{mscsam_forward.4} parent=11 // pred_check_branch
        %413 = sbr.rel (%p411) target = $region40
      $region39: #{mscsam_forward.4} parent=11 // pred_region
        _
      $region40: #{mscsam_forward.4} parent=11 // pred_fallthru
        _
      // Predicated region
      $region41: #{mscsam_forward.4} parent=11 // pred_check
        %p414 = pneg %p216
      $region42: #{mscsam_forward.4} parent=11 // pred_check_branch
        %416 = sbr.rel (%p414) target = $region44
      $region43: #{mscsam_forward.4} parent=11 // pred_region
        _
      $region44: #{mscsam_forward.4} parent=11 // pred_fallthru
        _
      // Predicated region
      $region45: #{mscsam_forward.4} parent=11 // pred_check
        %p417 = pneg %p237
      $region46: #{mscsam_forward.4} parent=11 // pred_check_branch
        %419 = sbr.rel (%p417) target = $region48
      $region47: #{mscsam_forward.4} parent=11 // pred_region
        _
      $region48: #{mscsam_forward.4} parent=11 // pred_fallthru
        _
      // Predicated region
      $region49: #{mscsam_forward.4} parent=11 // pred_check
        %p420 = pneg %p258
      $region50: #{mscsam_forward.4} parent=11 // pred_check_branch
        %422 = sbr.rel (%p420) target = $region52
      $region51: #{mscsam_forward.4} parent=11 // pred_region
        _
      $region52: #{mscsam_forward.4} parent=11 // pred_fallthru
        _
      // Predicated region
      $region53: #{mscsam_forward.4} parent=11 // pred_check
        %p423 = pneg %p279
      $region54: #{mscsam_forward.4} parent=11 // pred_check_branch
        %425 = sbr.rel (%p423) target = $region56
      $region55: #{mscsam_forward.4} parent=11 // pred_region
        _
      $region56: #{mscsam_forward.4} parent=11 // pred_fallthru
        _
      // Predicated region
      $region57: #{mscsam_forward.4} parent=11 // pred_check
        %p426 = pneg %p300
      $region58: #{mscsam_forward.4} parent=11 // pred_check_branch
        %428 = sbr.rel (%p426) target = $region60
      $region59: #{mscsam_forward.4} parent=11 // pred_region
        _
      $region60: #{mscsam_forward.4} parent=11 // pred_fallthru
        _
    $region12: #{mscsam_forward.4} parent=5 // pred_fallthru
      _
    %p429 = scmp.lt.s32.totalorder %s22, 2
    // Predicated region
    $region61: #{mscsam_forward.4} parent=5 // pred_check
      %p430 = pneg %p429
    $region62: #{mscsam_forward.4} parent=5 // pred_check_branch
      %432 = sbr.rel (%p430) target = $region64
    $region63: #{mscsam_forward.4} parent=5 // pred_region
      // Predicated region
      $region65: #{mscsam_forward.4} parent=63 // pred_check
        %p433 = pneg %p42
      $region66: #{mscsam_forward.4} parent=63 // pred_check_branch
        %435 = sbr.rel (%p433) target = $region68
      $region67: #{mscsam_forward.4} parent=63 // pred_region
        %p436 = scmp.lt.s32.totalorder %s22, 1
        %s437 = scalar_select %p436, %s22, 1
        %s438 = smul.addr %s437, 2
        %s439 = smul.addr %s438, 8
        %s440 = scalar_lea.vmem %s0, %s439
      $region68: #{mscsam_forward.4} parent=63 // pred_fallthru
        _
    $region64: #{mscsam_forward.4} parent=5 // pred_fallthru
      _
    %p441 = scmp.le.s32.totalorder 1, %s22
    %p442 = scmp.lt.s32.totalorder %s22, 3
    %p443 = pnand %p441, %p442
    %p444 = pneg %p443
    // Predicated region
    $region69: #{mscsam_forward.4} parent=5 // pred_check
      _
    $region70: #{mscsam_forward.4} parent=5 // pred_check_branch
      %446 = sbr.rel (%p443) target = $region72
    $region71: #{mscsam_forward.4} parent=5 // pred_region
      %s447 = ssub.s32 %s22, 1
      %p448 = scmp.lt.s32.totalorder %s27, 1
      %s449 = scalar_select %p448, %s27, 1
      %s450 = smul.addr %s449, 2
      %s451 = smul.addr %s450, 8
      %s452 = scalar_lea.vmem %s0, %s451
      %p453 = pneg %p48
      %p454 = pneg %p45
      %p455 = pneg %p69
      %p456 = pneg %p66
      %p457 = pneg %p90
      %p458 = pneg %p87
      %p459 = pneg %p111
      %p460 = pneg %p108
      %p461 = pneg %p132
      %p462 = pneg %p129
      %p463 = pneg %p153
      %p464 = pneg %p150
      %p465 = pneg %p174
      %p466 = pneg %p171
      %p467 = pneg %p195
      %p468 = pneg %p192
      %p469 = pneg %p216
      %p470 = pneg %p213
      %p471 = pneg %p237
      %p472 = pneg %p234
      %p473 = pneg %p258
      %p474 = pneg %p255
      %p475 = pneg %p279
      %p476 = pneg %p276
      %p477 = pneg %p300
      %p478 = pneg %p297
      %p479 = pneg %p326
      %p480 = pneg %p323
      %p481 = scmp.lt.s32.totalorder %s27, 1
      %s482 = scalar_select %p481, %s27, 1
      %s483 = smul.addr %s482, 2
      %s484 = smul.addr %s483, 8
      %s485 = scalar_lea.vmem %s13, %s484
      %p486 = pneg %p352
      %p487 = pneg %p349
      %p488 = scmp.lt.s32.totalorder %s27, 1
      %s489 = scalar_select %p488, %s27, 1
      %s490 = scalar_lea.vmem %s14, %s489
      %p491 = pneg %p378
      %p492 = pneg %p375
      %p493 = scmp.lt.s32.totalorder %s27, 1
      %s494 = scalar_select %p493, %s27, 1
      %s495 = scalar_lea.vmem %s15, %s494
      %p496 = scmp.lt.s32.totalorder %s27, 1
      %s497 = scalar_select %p496, %s27, 1
      %s498 = smul.addr %s497, 2
      %s499 = smul.addr %s498, 8
      %s500 = scalar_lea.vmem %s0, %s499
      %p501 = scmp.lt.s32.totalorder %s27, 1
      %s502 = scalar_select %p501, %s27, 1
      %s503 = smul.addr %s502, 2
      %s504 = smul.addr %s503, 8
      %s505 = scalar_lea.vmem %s13, %s504
      %p506 = scmp.lt.s32.totalorder %s27, 1
      %s507 = scalar_select %p506, %s27, 1
      %s508 = scalar_lea.vmem %s14, %s507
      %p509 = scmp.lt.s32.totalorder %s27, 1
      %s510 = scalar_select %p509, %s27, 1
      %s511 = scalar_lea.vmem %s15, %s510
      %vm513 = vcmask 256000
      %514 = vst.msk [vmem:[#allocation2] sm:$0x7] %vm513, 0.0
      %515 = vst.msk [vmem:[#allocation2 + $0x13] sm:$0x7] %vm513, 0.0
      %vm516 = vcmask 1040384
      %vm517 = vsmask.f32 256
      %vm518 = vmand %vm516, %vm517
      %v519 = vld [vmem:[#allocation3] sm:$0x1]
      %v520 = vsel %vm518, 0, %v519
      %521 = vst [vmem:[#allocation3] sm:$0x1] %v520
      %vm522 = vsmask.f32 7938
      %vm523 = vmand %vm516, %vm522
      %v524 = vld [vmem:[#allocation3 + $0x8] sm:$0x1]
      %v525 = vsel %vm523, 0, %v524
      %526 = vst [vmem:[#allocation3 + $0x8] sm:$0x1] %v525
      %v527 = vld [vmem:[%s500] sm:$0xff]
      %v528 = vld [vmem:[%s500 + $0x8] sm:$0xff]
      %v529 = vld [vmem:[%s1] sm:$0x1]
      %v531 = vperm.slane %v529, 0
      %v533 = vmul.f32 %v527, %v531
      %v534 = vmul.f32 %v528, %v531
      %v535 = vld [vmem:[%s2] sm:$0x1]
      %v537 = vperm.slane %v535, 0
      %v539 = vadd.f32 %v533, %v537
      %v540 = vadd.f32 %v534, %v537
      %v541 = vmax.f32 %v539, 0.0
      %v542 = vmax.f32 %v540, 0.0
      %v543 = vadd.f32 %v541, %v542
      %v544 = vrot.slane %v543, 4
      %v545 = vadd.f32 %v543, %v544
      %v546 = vrot.slane %v545, 2
      %v547 = vadd.f32 %v545, %v546
      %v548 = vrot.slane %v547, 1
      %v549 = vadd.f32 %v547, %v548
      %v550 = vmax.f32 %v541, %v542
      %v551 = vrot.slane %v550, 4
      %v552 = vmax.f32 %v550, %v551
      %v553 = vrot.slane %v552, 2
      %v554 = vmax.f32 %v552, %v553
      %v555 = vrot.slane %v554, 1
      %v556 = vmax.f32 %v554, %v555
      %v557 = vld [vmem:[%s6] sm:$0xff]
      %v558 = vld [vmem:[%s6 + $0x8] sm:$0xff]
      %v559 = vld [vmem:[%s6 + $0x10] sm:$0xff]
      %v560 = vld [vmem:[%s6 + $0x18] sm:$0xff]
      %v561 = vld [vmem:[%s6 + $0x20] sm:$0xff]
      %v562 = vld [vmem:[%s6 + $0x28] sm:$0xff]
      %v563 = vld [vmem:[%s6 + $0x30] sm:$0xff]
      %v564 = vld [vmem:[%s6 + $0x38] sm:$0xff]
      %v565 = vld [vmem:[%s6 + $0x40] sm:$0xff]
      %v566 = vld [vmem:[%s6 + $0x48] sm:$0xff]
      %v567 = vld [vmem:[%s6 + $0x50] sm:$0xff]
      %v568 = vld [vmem:[%s6 + $0x58] sm:$0xff]
      %v569 = vld [vmem:[%s6 + $0x60] sm:$0xff]
      %v570 = vld [vmem:[%s6 + $0x68] sm:$0xff]
      %v571 = vld [vmem:[%s6 + $0x70] sm:$0xff]
      %v572 = vld [vmem:[%s6 + $0x78] sm:$0xff]
      %573 = vmatpush.msra.mxu0 %v572
      %574 = vmatpush.msra.mxu0 %v571
      %575 = vmatpush.msra.mxu0 %v570
      %576 = vmatpush.msra.mxu0 %v569
      %577 = vmatpush.msra.mxu0 %v568
      %578 = vmatpush.msra.mxu0 %v567
      %579 = vmatpush.msra.mxu0 %v566
      %580 = vmatpush.msra.mxu0 %v565
      %581 = vmatpush.msra.mxu0 %v564
      %582 = vmatpush.msra.mxu0 %v563
      %583 = vmatpush.msra.mxu0 %v562
      %584 = vmatpush.msra.mxu0 %v561
      %585 = vmatpush.msra.mxu0 %v560
      %586 = vmatpush.msra.mxu0 %v559
      %587 = vmatpush.msra.mxu0 %v558
      %588 = vmatpush.msra.mxu0 %v557
      %589 = vmatmul.f32.gmra.mxu0 %v549
      %v590 = vpop.f32.mrf.mxu0
      %v591 = vadd.f32 0.0, %v590
      %592 = vdwg.mxu0
      %v593 = vmul.f32 %v591, 0.00390625
      %594 = vrot.lane.b32.xlu0 %v556, 120
      %v595 = vpop.permute.xlu0 %594
      %v596 = vmax.f32 %v556, %v595
      %597 = vrot.lane.b32.xlu0 %v596, 112
      %v598 = vpop.permute.xlu0 %597
      %v599 = vmax.f32 %v596, %v598
      %600 = vrot.lane.b32.xlu0 %v599, 96
      %v601 = vpop.permute.xlu0 %600
      %v602 = vmax.f32 %v599, %v601
      %603 = vrot.lane.b32.xlu0 %v602, 64
      %v604 = vpop.permute.xlu0 %603
      %v605 = vmax.f32 %v602, %v604
      %v607 = vrot.slane %v605, 7
      %vm609 = vcmask 1040384
      %v610 = vsel %vm609, %v593, %v607
      %v611 = vld [vmem:[%s3] sm:$0xff]
      %vm612 = vcmask 64512
      %v614 = vsel %vm612, %v610, 0
      %616 = vmatpush.msra.mxu0 0.0
      %617 = vmatpush.msra.mxu0 0.0
      %618 = vmatpush.msra.mxu0 0.0
      %619 = vmatpush.msra.mxu0 0.0
      %620 = vmatpush.msra.mxu0 0.0
      %621 = vmatpush.msra.mxu0 0.0
      %622 = vmatpush.msra.mxu0 0.0
      %623 = vmatpush.msra.mxu0 0.0
      %624 = vmatpush.msra.mxu0 0.0
      %625 = vmatpush.msra.mxu0 0.0
      %626 = vmatpush.msra.mxu0 0.0
      %627 = vmatpush.msra.mxu0 0.0
      %628 = vmatpush.msra.mxu0 0.0
      %629 = vmatpush.msra.mxu0 0.0
      %630 = vmatpush.msra.mxu0 0.0
      %631 = vmatpush.msra.mxu0 %v611
      %632 = vmatmul.f32.gmra.mxu0 %v614
      %v633 = vpop.f32.mrf.mxu0
      %v634 = vadd.f32 0.0, %v633
      %635 = vdwg.mxu0
      %vm636 = vcmp.gt.f32.partialorder %v634, 0.0
      %v637 = vmul.f32 %v634, 0.01
      %v638 = vsel %vm636, %v634, %v637
      %v639 = vld [vmem:[%s4] sm:$0xff]
      %v640 = vld [vmem:[%s4 + $0x8] sm:$0xff]
      %v641 = vld [vmem:[%s4 + $0x10] sm:$0xff]
      %v642 = vld [vmem:[%s4 + $0x18] sm:$0xff]
      %v643 = vld [vmem:[%s4 + $0x20] sm:$0xff]
      %v644 = vld [vmem:[%s4 + $0x28] sm:$0xff]
      %v645 = vld [vmem:[%s4 + $0x30] sm:$0xff]
      %v646 = vld [vmem:[%s4 + $0x38] sm:$0xff]
      %vm647 = vcmask 523264
      %v649 = vsel %vm647, %v638, 0
      %651 = vmatpush.msra.mxu0 0.0
      %652 = vmatpush.msra.mxu0 0.0
      %653 = vmatpush.msra.mxu0 0.0
      %654 = vmatpush.msra.mxu0 0.0
      %655 = vmatpush.msra.mxu0 0.0
      %656 = vmatpush.msra.mxu0 0.0
      %657 = vmatpush.msra.mxu0 0.0
      %658 = vmatpush.msra.mxu0 0.0
      %659 = vmatpush.msra.mxu0 %v646
      %660 = vmatpush.msra.mxu0 %v645
      %661 = vmatpush.msra.mxu0 %v644
      %662 = vmatpush.msra.mxu0 %v643
      %663 = vmatpush.msra.mxu0 %v642
      %664 = vmatpush.msra.mxu0 %v641
      %665 = vmatpush.msra.mxu0 %v640
      %666 = vmatpush.msra.mxu0 %v639
      %667 = vmatmul.f32.gmra.mxu0 %v649
      %v668 = vpop.f32.mrf.mxu0
      %v669 = vadd.f32 0.0, %v668
      %670 = vdwg.mxu0
      %v672 = vrot.slane %v669, 1
      %v674 = vadd.f32 %v669, %v672
      %v675 = vxor.u32 %v674, 2147483648
      %v676 = vmul.f32 %v675, 1.442695
      %v677 = vpow.pop %v676
      %v678 = vadd.f32 %v677, 1.0
      %v679 = vrcp.pop %v678
      %v680 = vmul.f32 %v678, %v679
      %v681 = vsub.f32 1.0, %v680
      %v682 = vmul.f32 %v679, %v681
      %v683 = vadd.f32 %v679, %v682
      %vm684 = vweird.f32 %v678
      %vm685 = vweird.f32 %v679
      %vm686 = vmor %vm684, %vm685
      %v687 = vsel %vm686, %v679, %v683
      %v688 = vand.u32 2147483647, %v678
      %vm689 = vcmp.eq.f32.partialorder %v688, 8.507059e+37
      %v690 = vand.u32 %v678, 2147483648
      %v691 = vor.u32 1.1754944e-38, %v690
      %v692 = vsel %vm689, %v691, %v687
      %v693 = vmul.f32 1.0, %v692
      %v694 = vld [vmem:[%s5] sm:$0xff]
      %v696 = vsel %vm612, %v693, 0
      %698 = vmatpush.msra.mxu0 0.0
      %699 = vmatpush.msra.mxu0 0.0
      %700 = vmatpush.msra.mxu0 0.0
      %701 = vmatpush.msra.mxu0 0.0
      %702 = vmatpush.msra.mxu0 0.0
      %703 = vmatpush.msra.mxu0 0.0
      %704 = vmatpush.msra.mxu0 0.0
      %705 = vmatpush.msra.mxu0 0.0
      %706 = vmatpush.msra.mxu0 0.0
      %707 = vmatpush.msra.mxu0 0.0
      %708 = vmatpush.msra.mxu0 0.0
      %709 = vmatpush.msra.mxu0 0.0
      %710 = vmatpush.msra.mxu0 0.0
      %711 = vmatpush.msra.mxu0 0.0
      %712 = vmatpush.msra.mxu0 0.0
      %713 = vmatpush.msra.mxu0 %v694
      %714 = vmatmul.f32.gmra.mxu0 %v696
      %v715 = vpop.f32.mrf.mxu0
      %v716 = vadd.f32 0.0, %v715
      %717 = vdwg.mxu0
      %v718 = vld [vmem:[%s7] sm:$0xff]
      %v719 = vld [vmem:[%s7 + $0x8] sm:$0xff]
      %v720 = vld [vmem:[%s7 + $0x10] sm:$0xff]
      %v721 = vld [vmem:[%s7 + $0x18] sm:$0xff]
      %v722 = vld [vmem:[%s7 + $0x20] sm:$0xff]
      %v723 = vld [vmem:[%s7 + $0x28] sm:$0xff]
      %v724 = vld [vmem:[%s7 + $0x30] sm:$0xff]
      %v725 = vld [vmem:[%s7 + $0x38] sm:$0xff]
      %v726 = vld [vmem:[%s7 + $0x40] sm:$0xff]
      %v727 = vld [vmem:[%s7 + $0x48] sm:$0xff]
      %v728 = vld [vmem:[%s7 + $0x50] sm:$0xff]
      %v729 = vld [vmem:[%s7 + $0x58] sm:$0xff]
      %v730 = vld [vmem:[%s7 + $0x60] sm:$0xff]
      %v731 = vld [vmem:[%s7 + $0x68] sm:$0xff]
      %v732 = vld [vmem:[%s7 + $0x70] sm:$0xff]
      %v733 = vld [vmem:[%s7 + $0x78] sm:$0xff]
      %734 = vmatpush.msra.mxu0 %v733
      %735 = vmatpush.msra.mxu0 %v732
      %736 = vmatpush.msra.mxu0 %v731
      %737 = vmatpush.msra.mxu0 %v730
      %738 = vmatpush.msra.mxu0 %v729
      %739 = vmatpush.msra.mxu0 %v728
      %740 = vmatpush.msra.mxu0 %v727
      %741 = vmatpush.msra.mxu0 %v726
      %742 = vmatpush.msra.mxu0 %v725
      %743 = vmatpush.msra.mxu0 %v724
      %744 = vmatpush.msra.mxu0 %v723
      %745 = vmatpush.msra.mxu0 %v722
      %746 = vmatpush.msra.mxu0 %v721
      %747 = vmatpush.msra.mxu0 %v720
      %748 = vmatpush.msra.mxu0 %v719
      %749 = vmatpush.msra.mxu0 %v718
      %750 = vmatmul.f32.gmra.mxu0 %v541
      %v751 = vpop.f32.mrf.mxu0
      %v752 = vadd.f32 0.0, %v751
      %753 = vmatmul.f32.gmra.mxu0 %v542
      %v754 = vpop.f32.mrf.mxu0
      %v755 = vadd.f32 0.0, %v754
      %756 = vdwg.mxu0
      %757 = vrot.lane.b32.xlu0 %v541, 127
      %v758 = vpop.permute.xlu0 %757
      %759 = vrot.lane.b32.xlu0 %v542, 127
      %v760 = vpop.permute.xlu0 %759
      %v761 = vmax.f32 %v541, %v758
      %v762 = vmax.f32 %v542, %v760
      %763 = vrot.lane.b32.xlu0 %v761, 126
      %v764 = vpop.permute.xlu0 %763
      %765 = vrot.lane.b32.xlu0 %v762, 126
      %v766 = vpop.permute.xlu0 %765
      %v767 = vmax.f32 %v761, %v764
      %v768 = vmax.f32 %v762, %v766
      %769 = vrot.lane.b32.xlu0 %v767, 124
      %v770 = vpop.permute.xlu0 %769
      %771 = vrot.lane.b32.xlu0 %v768, 124
      %v772 = vpop.permute.xlu0 %771
      %v773 = vmax.f32 %v767, %v770
      %v774 = vmax.f32 %v768, %v772
      %v775 = vld [vmem:[%s8] sm:$0xff]
      %v776 = vld [vmem:[%s8 + $0x8] sm:$0xff]
      %v777 = vld [vmem:[%s8 + $0x10] sm:$0xff]
      %v778 = vld [vmem:[%s8 + $0x18] sm:$0xff]
      %v779 = vld [vmem:[%s8 + $0x20] sm:$0xff]
      %v780 = vld [vmem:[%s8 + $0x28] sm:$0xff]
      %v781 = vld [vmem:[%s8 + $0x30] sm:$0xff]
      %v782 = vld [vmem:[%s8 + $0x38] sm:$0xff]
      %v783 = vld [vmem:[%s8 + $0x40] sm:$0xff]
      %v784 = vld [vmem:[%s8 + $0x48] sm:$0xff]
      %v785 = vld [vmem:[%s8 + $0x50] sm:$0xff]
      %v786 = vld [vmem:[%s8 + $0x58] sm:$0xff]
      %v787 = vld [vmem:[%s8 + $0x60] sm:$0xff]
      %v788 = vld [vmem:[%s8 + $0x68] sm:$0xff]
      %v789 = vld [vmem:[%s8 + $0x70] sm:$0xff]
      %v790 = vld [vmem:[%s8 + $0x78] sm:$0xff]
      %791 = vmatpush.msra.mxu0 %v790
      %792 = vmatpush.msra.mxu0 %v789
      %793 = vmatpush.msra.mxu0 %v788
      %794 = vmatpush.msra.mxu0 %v787
      %795 = vmatpush.msra.mxu0 %v786
      %796 = vmatpush.msra.mxu0 %v785
      %797 = vmatpush.msra.mxu0 %v784
      %798 = vmatpush.msra.mxu0 %v783
      %799 = vmatpush.msra.mxu0 %v782
      %800 = vmatpush.msra.mxu0 %v781
      %801 = vmatpush.msra.mxu0 %v780
      %802 = vmatpush.msra.mxu0 %v779
      %803 = vmatpush.msra.mxu0 %v778
      %804 = vmatpush.msra.mxu0 %v777
      %805 = vmatpush.msra.mxu0 %v776
      %806 = vmatpush.msra.mxu0 %v775
      %807 = vmatmul.f32.gmra.mxu0 %v773
      %v808 = vpop.f32.mrf.mxu0
      %v809 = vadd.f32 0.0, %v808
      %810 = vmatmul.f32.gmra.mxu0 %v774
      %v811 = vpop.f32.mrf.mxu0
      %v812 = vadd.f32 0.0, %v811
      %813 = vdwg.mxu0
      %816 = vrot.lane.b32.xlu0 %v809, 16
      %v817 = vpop.permute.xlu0 %816
      %818 = vrot.lane.b32.xlu0 %v812, 16
      %v819 = vpop.permute.xlu0 %818
      %vm822 = vcmask 130048
      %v823 = vsel %vm822, %v752, %v817
      %v824 = vsel %vm822, %v755, %v819
      %vm825 = vcmask 261120
      %826 = vst.msk [vmem:[#allocation2 + $0x3] sm:$0xff] %vm825, %v823
      %827 = vst.msk [vmem:[#allocation2 + $0xb] sm:$0xff] %vm825, %v824
      %v828 = vld [vmem:[#allocation2] sm:$0xff]
      %v829 = vld [vmem:[#allocation2 + $0x8] sm:$0xff]
      %v830 = vld [vmem:[#allocation2 + $0x10] sm:$0x3f]
      %vm834 = vcmask 1046528
      %v835 = vrot.slane %v828, 1
      %v836 = vrot.slane %v829, 1
      %v837 = vsel %vm834, %v835, %v836
      %v838 = vrot.slane %v830, 1
      %v839 = vsel %vm834, %v836, %v838
      %840 = vrot.lane.b32.xlu0 %v837, 32
      %v841 = vpop.permute.xlu0 %840
      %842 = vrot.lane.b32.xlu0 %v839, 32
      %v843 = vpop.permute.xlu0 %842
      %vm846 = vcmask 1045504
      %v847 = vrot.slane %v828, 2
      %v848 = vrot.slane %v829, 2
      %v849 = vsel %vm846, %v847, %v848
      %v850 = vrot.slane %v830, 2
      %v851 = vsel %vm846, %v848, %v850
      %852 = vrot.lane.b32.xlu0 %v849, 64
      %v853 = vpop.permute.xlu0 %852
      %854 = vrot.lane.b32.xlu0 %v851, 64
      %v855 = vpop.permute.xlu0 %854
      %vm858 = vcmask 1044480
      %v859 = vrot.slane %v828, 3
      %v860 = vrot.slane %v829, 3
      %v861 = vsel %vm858, %v859, %v860
      %v862 = vrot.slane %v830, 3
      %v863 = vsel %vm858, %v860, %v862
      %864 = vrot.lane.b32.xlu0 %v861, 96
      %v865 = vpop.permute.xlu0 %864
      %866 = vrot.lane.b32.xlu0 %v863, 96
      %v867 = vpop.permute.xlu0 %866
      %vm870 = vcmask 1043456
      %v871 = vrot.slane %v828, 4
      %v872 = vrot.slane %v829, 4
      %v873 = vsel %vm870, %v871, %v872
      %v874 = vrot.slane %v830, 4
      %v875 = vsel %vm870, %v872, %v874
      %vm878 = vcmask 1042432
      %v879 = vrot.slane %v828, 5
      %v880 = vrot.slane %v829, 5
      %v881 = vsel %vm878, %v879, %v880
      %v882 = vrot.slane %v830, 5
      %v883 = vsel %vm878, %v880, %v882
      %884 = vrot.lane.b32.xlu0 %v881, 32
      %v885 = vpop.permute.xlu0 %884
      %886 = vrot.lane.b32.xlu0 %v883, 32
      %v887 = vpop.permute.xlu0 %886
      %vm890 = vcmask 1041408
      %v891 = vrot.slane %v828, 6
      %v892 = vrot.slane %v829, 6
      %v893 = vsel %vm890, %v891, %v892
      %v894 = vrot.slane %v830, 6
      %v895 = vsel %vm890, %v892, %v894
      %896 = vrot.lane.b32.xlu0 %v893, 64
      %v897 = vpop.permute.xlu0 %896
      %898 = vrot.lane.b32.xlu0 %v895, 64
      %v899 = vpop.permute.xlu0 %898
      %v902 = vsel %vm825, %v828, %v841
      %v903 = vsel %vm825, %v829, %v843
      %v904 = vsel %vm647, %v902, %v853
      %v905 = vsel %vm647, %v903, %v855
      %vm906 = vcmask 785408
      %v907 = vsel %vm906, %v904, %v865
      %v908 = vsel %vm906, %v905, %v867
      %v909 = vsel %vm825, %v873, %v885
      %v910 = vsel %vm825, %v875, %v887
      %v911 = vsel %vm647, %v909, %v897
      %v912 = vsel %vm647, %v910, %v899
      %v913 = vld [vmem:[%s10] sm:$0xff]
      %v914 = vld [vmem:[%s10 + $0x8] sm:$0xff]
      %v915 = vld [vmem:[%s10 + $0x10] sm:$0xff]
      %v916 = vld [vmem:[%s10 + $0x18] sm:$0xff]
      %v917 = vld [vmem:[%s10 + $0x20] sm:$0xff]
      %v918 = vld [vmem:[%s10 + $0x28] sm:$0xff]
      %v919 = vld [vmem:[%s10 + $0x30] sm:$0xff]
      %v920 = vld [vmem:[%s10 + $0x38] sm:$0xff]
      %v921 = vld [vmem:[%s10 + $0x40] sm:$0xff]
      %v922 = vld [vmem:[%s10 + $0x48] sm:$0xff]
      %v923 = vld [vmem:[%s10 + $0x50] sm:$0xff]
      %v924 = vld [vmem:[%s10 + $0x58] sm:$0xff]
      %v925 = vld [vmem:[%s10 + $0x60] sm:$0xff]
      %v926 = vld [vmem:[%s10 + $0x68] sm:$0xff]
      %v927 = vld [vmem:[%s10 + $0x70] sm:$0xff]
      %v928 = vld [vmem:[%s10 + $0x78] sm:$0xff]
      %v929 = vld [vmem:[%s10 + $0x80] sm:$0xff]
      %v930 = vld [vmem:[%s10 + $0x88] sm:$0xff]
      %v931 = vld [vmem:[%s10 + $0x90] sm:$0xff]
      %v932 = vld [vmem:[%s10 + $0x98] sm:$0xff]
      %v933 = vld [vmem:[%s10 + $0xa0] sm:$0xff]
      %v934 = vld [vmem:[%s10 + $0xa8] sm:$0xff]
      %v935 = vld [vmem:[%s10 + $0xb0] sm:$0xff]
      %v936 = vld [vmem:[%s10 + $0xb8] sm:$0xff]
      %v937 = vld [vmem:[%s10 + $0xc0] sm:$0xff]
      %v938 = vld [vmem:[%s10 + $0xc8] sm:$0xff]
      %v939 = vld [vmem:[%s10 + $0xd0] sm:$0xff]
      %v940 = vld [vmem:[%s10 + $0xd8] sm:$0xff]
      %v942 = vsel %vm906, %v911, 0
      %v945 = vsel %vm906, %v912, 0
      %947 = vmatpush.msra.mxu0 %v928
      %948 = vmatpush.msra.mxu0 %v927
      %949 = vmatpush.msra.mxu0 %v926
      %950 = vmatpush.msra.mxu0 %v925
      %951 = vmatpush.msra.mxu0 %v924
      %952 = vmatpush.msra.mxu0 %v923
      %953 = vmatpush.msra.mxu0 %v922
      %954 = vmatpush.msra.mxu0 %v921
      %955 = vmatpush.msra.mxu0 %v920
      %956 = vmatpush.msra.mxu0 %v919
      %957 = vmatpush.msra.mxu0 %v918
      %958 = vmatpush.msra.mxu0 %v917
      %959 = vmatpush.msra.mxu0 %v916
      %960 = vmatpush.msra.mxu0 %v915
      %961 = vmatpush.msra.mxu0 %v914
      %962 = vmatpush.msra.mxu0 %v913
      %963 = vmatmul.f32.gmra.mxu0 %v907
      %v964 = vpop.f32.mrf.mxu0
      %v965 = vadd.f32 0.0, %v964
      %966 = vmatmul.f32.gmra.mxu0 %v908
      %v967 = vpop.f32.mrf.mxu0
      %v968 = vadd.f32 0.0, %v967
      %969 = vdwg.mxu0
      %970 = vmatpush.msra.mxu0 0.0
      %971 = vmatpush.msra.mxu0 0.0
      %972 = vmatpush.msra.mxu0 0.0
      %973 = vmatpush.msra.mxu0 0.0
      %974 = vmatpush.msra.mxu0 %v940
      %975 = vmatpush.msra.mxu0 %v939
      %976 = vmatpush.msra.mxu0 %v938
      %977 = vmatpush.msra.mxu0 %v937
      %978 = vmatpush.msra.mxu0 %v936
      %979 = vmatpush.msra.mxu0 %v935
      %980 = vmatpush.msra.mxu0 %v934
      %981 = vmatpush.msra.mxu0 %v933
      %982 = vmatpush.msra.mxu0 %v932
      %983 = vmatpush.msra.mxu0 %v931
      %984 = vmatpush.msra.mxu0 %v930
      %985 = vmatpush.msra.mxu0 %v929
      %986 = vmatmul.f32.gmra.mxu0 %v942
      %v987 = vpop.f32.mrf.mxu0
      %v988 = vadd.f32 %v965, %v987
      %989 = vmatmul.f32.gmra.mxu0 %v945
      %v990 = vpop.f32.mrf.mxu0
      %v991 = vadd.f32 %v968, %v990
      %992 = vdwg.mxu0
      %v993 = vxor.u32 %v988, 2147483648
      %v994 = vxor.u32 %v991, 2147483648
      %v995 = vmul.f32 %v993, 1.442695
      %v996 = vpow.pop %v995
      %v997 = vmul.f32 %v994, 1.442695
      %v998 = vpow.pop %v997
      %v999 = vadd.f32 %v996, 1.0
      %v1000 = vadd.f32 %v998, 1.0
      %v1001 = vrcp.pop %v999
      %v1002 = vmul.f32 %v999, %v1001
      %v1003 = vsub.f32 1.0, %v1002
      %v1004 = vmul.f32 %v1001, %v1003
      %v1005 = vadd.f32 %v1001, %v1004
      %vm1006 = vweird.f32 %v999
      %vm1007 = vweird.f32 %v1001
      %vm1008 = vmor %vm1006, %vm1007
      %v1009 = vsel %vm1008, %v1001, %v1005
      %v1010 = vand.u32 2147483647, %v999
      %vm1011 = vcmp.eq.f32.partialorder %v1010, 8.507059e+37
      %v1012 = vand.u32 %v999, 2147483648
      %v1013 = vor.u32 1.1754944e-38, %v1012
      %v1014 = vsel %vm1011, %v1013, %v1009
      %v1015 = vmul.f32 1.0, %v1014
      %v1016 = vrcp.pop %v1000
      %v1017 = vmul.f32 %v1000, %v1016
      %v1018 = vsub.f32 1.0, %v1017
      %v1019 = vmul.f32 %v1016, %v1018
      %v1020 = vadd.f32 %v1016, %v1019
      %vm1021 = vweird.f32 %v1000
      %vm1022 = vweird.f32 %v1016
      %vm1023 = vmor %vm1021, %vm1022
      %v1024 = vsel %vm1023, %v1016, %v1020
      %v1025 = vand.u32 2147483647, %v1000
      %vm1026 = vcmp.eq.f32.partialorder %v1025, 8.507059e+37
      %v1027 = vand.u32 %v1000, 2147483648
      %v1028 = vor.u32 1.1754944e-38, %v1027
      %v1029 = vsel %vm1026, %v1028, %v1024
      %v1030 = vmul.f32 1.0, %v1029
      %v1031 = vld [vmem:[%s9] sm:$0xff]
      %v1032 = vld [vmem:[%s9 + $0x8] sm:$0xff]
      %v1034 = vsel %vm822, %v1015, 0
      %v1037 = vsel %vm822, %v1030, 0
      %1039 = vmatpush.msra.mxu0 0.0
      %1040 = vmatpush.msra.mxu0 0.0
      %1041 = vmatpush.msra.mxu0 0.0
      %1042 = vmatpush.msra.mxu0 0.0
      %1043 = vmatpush.msra.mxu0 0.0
      %1044 = vmatpush.msra.mxu0 0.0
      %1045 = vmatpush.msra.mxu0 0.0
      %1046 = vmatpush.msra.mxu0 0.0
      %1047 = vmatpush.msra.mxu0 0.0
      %1048 = vmatpush.msra.mxu0 0.0
      %1049 = vmatpush.msra.mxu0 0.0
      %1050 = vmatpush.msra.mxu0 0.0
      %1051 = vmatpush.msra.mxu0 0.0
      %1052 = vmatpush.msra.mxu0 0.0
      %1053 = vmatpush.msra.mxu0 %v1032
      %1054 = vmatpush.msra.mxu0 %v1031
      %1055 = vmatmul.f32.gmra.mxu0 %v1034
      %v1056 = vpop.f32.mrf.mxu0
      %v1057 = vadd.f32 0.0, %v1056
      %1058 = vmatmul.f32.gmra.mxu0 %v1037
      %v1059 = vpop.f32.mrf.mxu0
      %v1060 = vadd.f32 0.0, %v1059
      %1061 = vdwg.mxu0
      %v1062 = vadd.f32 %v716, 1.0
      %v1063 = vperm.slane %v1062, 0
      %v1064 = vadd.f32 %v1063, %v1057
      %v1065 = vadd.f32 %v1063, %v1060
      %v1066 = vmul.f32 %v541, %v1064
      %v1067 = vmul.f32 %v542, %v1065
      %v1068 = vpack.c.bf16 %v1066, %v1066
      %v1069 = vpack.c.bf16 %v1067, %v1067
      %vm1070 = vsmask.f32 4368
      %vm1071 = vmor %vm517, %vm1070
      %v1073 = vshrl.u32 %v1068, 16
      %v1075 = vrot.slane %v1073, 7
      %v1076 = vshll.u32 %v1068, 16
      %v1078 = vor.u32 %v1075, %v1076
      %v1079 = vrot.slane %v1075, 4
      %v1081 = vshrl.u32 %v1069, 16
      %v1083 = vrot.slane %v1081, 7
      %v1084 = vshll.u32 %v1069, 16
      %v1086 = vor.u32 %v1083, %v1084
      %v1087 = vsel %vm1071, %v1079, %v1086
      %v1088 = vrot.slane %v1083, 4
      %vm1092 = vcmask 1043456
      %vm1093 = vmand %vm1092, %vm522
      %v1094 = vld [vmem:[#allocation3] sm:$0xf]
      %v1095 = vsel %vm1093, %v1078, %v1094
      %1096 = vst [vmem:[#allocation3] sm:$0xf] %v1095
      %1097 = vst [vmem:[#allocation3 + $0x4] sm:$0xf] %v1087
      %v1098 = vld [vmem:[#allocation3 + $0x8] sm:$0x1]
      %v1099 = vsel %vm518, %v1088, %v1098
      %1100 = vst [vmem:[#allocation3 + $0x8] sm:$0x1] %v1099
      %v1101 = vld [vmem:[#allocation3] sm:$0xf]
      %v1102 = vld [vmem:[#allocation3 + $0x4] sm:$0xf]
      %v1103 = vld [vmem:[#allocation3 + $0x8] sm:$0x1]
      %v1106 = vunpack.c.l.b16 %v1101
      %v1107 = vunpack.c.l.b16 %v1102
      %v1108 = vpack.c.b16 %v1107, %v1106
      %v1111 = vunpack.c.l.b16 %v1103
      %v1112 = vpack.c.b16 %v1111, %v1111
      %vm1113 = vsmask.f32 7424
      %v1115 = vshrl.u32 %v1108, 16
      %v1117 = vshll.u32 %v1108, 16
      %v1119 = vrot.slane %v1117, 1
      %v1120 = vor.u32 %v1115, %v1119
      %v1122 = vshll.u32 %v1112, 16
      %v1124 = vrot.slane %v1122, 1
      %v1125 = vsel %vm1113, %v1120, %v1124
      %vm1127 = vcmask 1046528
      %v1128 = vrot.slane %v1108, 1
      %v1129 = vrot.slane %v1112, 1
      %v1130 = vsel %vm1127, %v1128, %v1129
      %v1132 = vld [vmem:[%s11] sm:$0xf]
      %v1133 = vld [vmem:[%s11 + $0x4] sm:$0xf]
      %v1134 = vld [vmem:[%s11 + $0x8] sm:$0xf]
      %v1135 = vld [vmem:[%s11 + $0xc] sm:$0xf]
      %v1136 = vld [vmem:[%s11 + $0x10] sm:$0xf]
      %v1137 = vld [vmem:[%s11 + $0x14] sm:$0xf]
      %v1138 = vld [vmem:[%s11 + $0x18] sm:$0xf]
      %v1139 = vld [vmem:[%s11 + $0x1c] sm:$0xf]
      %v1140 = vld [vmem:[%s11 + $0x20] sm:$0xf]
      %v1141 = vld [vmem:[%s11 + $0x24] sm:$0xf]
      %v1142 = vld [vmem:[%s11 + $0x28] sm:$0xf]
      %v1143 = vld [vmem:[%s11 + $0x2c] sm:$0xf]
      %v1144 = vld [vmem:[%s11 + $0x30] sm:$0xf]
      %v1145 = vld [vmem:[%s11 + $0x34] sm:$0xf]
      %v1146 = vld [vmem:[%s11 + $0x38] sm:$0xf]
      %v1147 = vld [vmem:[%s11 + $0x3c] sm:$0xf]
      %v1148 = vld [vmem:[%s11 + $0x40] sm:$0xf]
      %v1149 = vld [vmem:[%s11 + $0x44] sm:$0xf]
      %v1150 = vld [vmem:[%s11 + $0x48] sm:$0xf]
      %v1151 = vld [vmem:[%s11 + $0x4c] sm:$0xf]
      %v1152 = vld [vmem:[%s11 + $0x50] sm:$0xf]
      %v1153 = vld [vmem:[%s11 + $0x54] sm:$0xf]
      %v1154 = vld [vmem:[%s11 + $0x58] sm:$0xf]
      %v1155 = vld [vmem:[%s11 + $0x5c] sm:$0xf]
      %v1156 = vld [vmem:[%s11 + $0x60] sm:$0xf]
      %v1157 = vld [vmem:[%s11 + $0x64] sm:$0xf]
      %v1158 = vld [vmem:[%s11 + $0x68] sm:$0xf]
      %v1159 = vld [vmem:[%s11 + $0x6c] sm:$0xf]
      %v1160 = vld [vmem:[%s11 + $0x70] sm:$0xf]
      %v1161 = vld [vmem:[%s11 + $0x74] sm:$0xf]
      %v1162 = vld [vmem:[%s11 + $0x78] sm:$0xf]
      %v1163 = vld [vmem:[%s11 + $0x7c] sm:$0xf]
      %v1164 = vld [vmem:[%s11 + $0x80] sm:$0xf]
      %v1165 = vld [vmem:[%s11 + $0x84] sm:$0xf]
      %v1166 = vld [vmem:[%s11 + $0x88] sm:$0xf]
      %v1167 = vld [vmem:[%s11 + $0x8c] sm:$0xf]
      %v1168 = vld [vmem:[%s11 + $0x90] sm:$0xf]
      %v1169 = vld [vmem:[%s11 + $0x94] sm:$0xf]
      %v1170 = vld [vmem:[%s11 + $0x98] sm:$0xf]
      %v1171 = vld [vmem:[%s11 + $0x9c] sm:$0xf]
      %v1172 = vld [vmem:[%s11 + $0xa0] sm:$0xf]
      %v1173 = vld [vmem:[%s11 + $0xa4] sm:$0xf]
      %v1174 = vld [vmem:[%s11 + $0xa8] sm:$0xf]
      %v1175 = vld [vmem:[%s11 + $0xac] sm:$0xf]
      %v1176 = vld [vmem:[%s11 + $0xb0] sm:$0xf]
      %v1177 = vld [vmem:[%s11 + $0xb4] sm:$0xf]
      %v1178 = vld [vmem:[%s11 + $0xb8] sm:$0xf]
      %v1179 = vld [vmem:[%s11 + $0xbc] sm:$0xf]
      %v1180 = vld [vmem:[%s12] sm:$0x1]
      %v1182 = vperm.slane %v1180, 0
      %v1232 = vunpack.c.l.b16 %v1132
      %v1233 = vunpack.c.l.b16 %v1133
      %v1234 = vunpack.c.l.b16 %v1134
      %v1235 = vunpack.c.l.b16 %v1135
      %v1236 = vunpack.c.l.b16 %v1136
      %v1237 = vunpack.c.l.b16 %v1137
      %v1238 = vunpack.c.l.b16 %v1138
      %v1239 = vunpack.c.l.b16 %v1139
      %v1240 = vunpack.c.l.b16 %v1140
      %v1241 = vunpack.c.l.b16 %v1141
      %v1242 = vunpack.c.l.b16 %v1142
      %v1243 = vunpack.c.l.b16 %v1143
      %v1244 = vunpack.c.l.b16 %v1144
      %v1245 = vunpack.c.l.b16 %v1145
      %v1246 = vunpack.c.l.b16 %v1146
      %v1247 = vunpack.c.l.b16 %v1147
      %v1248 = vunpack.c.l.b16 %v1148
      %v1249 = vunpack.c.l.b16 %v1149
      %v1250 = vunpack.c.l.b16 %v1150
      %v1251 = vunpack.c.l.b16 %v1151
      %v1252 = vunpack.c.l.b16 %v1152
      %v1253 = vunpack.c.l.b16 %v1153
      %v1254 = vunpack.c.l.b16 %v1154
      %v1255 = vunpack.c.l.b16 %v1155
      %v1256 = vunpack.c.l.b16 %v1156
      %v1257 = vunpack.c.l.b16 %v1157
      %v1258 = vunpack.c.l.b16 %v1158
      %v1259 = vunpack.c.l.b16 %v1159
      %v1260 = vunpack.c.l.b16 %v1160
      %v1261 = vunpack.c.l.b16 %v1161
      %v1262 = vunpack.c.l.b16 %v1162
      %v1263 = vunpack.c.l.b16 %v1163
      %v1264 = vunpack.c.l.b16 %v1164
      %v1265 = vunpack.c.l.b16 %v1165
      %v1266 = vunpack.c.l.b16 %v1166
      %v1267 = vunpack.c.l.b16 %v1167
      %v1268 = vunpack.c.l.b16 %v1168
      %v1269 = vunpack.c.l.b16 %v1169
      %v1270 = vunpack.c.l.b16 %v1170
      %v1271 = vunpack.c.l.b16 %v1171
      %v1272 = vunpack.c.l.b16 %v1172
      %v1273 = vunpack.c.l.b16 %v1173
      %v1274 = vunpack.c.l.b16 %v1174
      %v1275 = vunpack.c.l.b16 %v1175
      %v1276 = vunpack.c.l.b16 %v1176
      %v1277 = vunpack.c.l.b16 %v1177
      %v1278 = vunpack.c.l.b16 %v1178
      %v1279 = vunpack.c.l.b16 %v1179
      %v1280 = vpack.c.b16 %v1233, %v1232
      %v1281 = vpack.c.b16 %v1235, %v1234
      %v1282 = vpack.c.b16 %v1237, %v1236
      %v1283 = vpack.c.b16 %v1239, %v1238
      %v1284 = vpack.c.b16 %v1241, %v1240
      %v1285 = vpack.c.b16 %v1243, %v1242
      %v1286 = vpack.c.b16 %v1245, %v1244
      %v1287 = vpack.c.b16 %v1247, %v1246
      %v1288 = vpack.c.b16 %v1249, %v1248
      %v1289 = vpack.c.b16 %v1251, %v1250
      %v1290 = vpack.c.b16 %v1253, %v1252
      %v1291 = vpack.c.b16 %v1255, %v1254
      %v1292 = vpack.c.b16 %v1257, %v1256
      %v1293 = vpack.c.b16 %v1259, %v1258
      %v1294 = vpack.c.b16 %v1261, %v1260
      %v1295 = vpack.c.b16 %v1263, %v1262
      %v1296 = vpack.c.b16 %v1265, %v1264
      %v1297 = vpack.c.b16 %v1267, %v1266
      %v1298 = vpack.c.b16 %v1269, %v1268
      %v1299 = vpack.c.b16 %v1271, %v1270
      %v1300 = vpack.c.b16 %v1273, %v1272
      %v1301 = vpack.c.b16 %v1275, %v1274
      %v1302 = vpack.c.b16 %v1277, %v1276
      %v1303 = vpack.c.b16 %v1279, %v1278
      %1328 = vmatpush.bf16.msra.mxu0 %v1287
      %1329 = vmatpush.bf16.msra.mxu0 %v1286
      %1330 = vmatpush.bf16.msra.mxu0 %v1285
      %1331 = vmatpush.bf16.msra.mxu0 %v1284
      %1332 = vmatpush.bf16.msra.mxu0 %v1283
      %1333 = vmatpush.bf16.msra.mxu0 %v1282
      %1334 = vmatpush.bf16.msra.mxu0 %v1281
      %1335 = vmatpush.bf16.msra.mxu0 %v1280
      %1336 = vmatmul.bf16.gmra.mxu0 %v1108
      %v1337 = vpop.f32.mrf.mxu0
      %v1338 = vadd.f32 %v1182, %v1337
      %v1339 = vpop.f32.mrf.mxu0
      %v1340 = vadd.f32 %v1182, %v1339
      %1341 = vdwg.mxu0
      %1342 = vmatpush.bf16.msra.mxu0 %v1295
      %1343 = vmatpush.bf16.msra.mxu0 %v1294
      %1344 = vmatpush.bf16.msra.mxu0 %v1293
      %1345 = vmatpush.bf16.msra.mxu0 %v1292
      %1346 = vmatpush.bf16.msra.mxu0 %v1291
      %1347 = vmatpush.bf16.msra.mxu0 %v1290
      %1348 = vmatpush.bf16.msra.mxu0 %v1289
      %1349 = vmatpush.bf16.msra.mxu0 %v1288
      %1350 = vmatmul.bf16.gmra.mxu0 %v1125
      %v1351 = vpop.f32.mrf.mxu0
      %v1352 = vadd.f32 %v1338, %v1351
      %v1353 = vpop.f32.mrf.mxu0
      %v1354 = vadd.f32 %v1340, %v1353
      %1355 = vdwg.mxu0
      %1356 = vmatpush.bf16.msra.mxu0 %v1303
      %1357 = vmatpush.bf16.msra.mxu0 %v1302
      %1358 = vmatpush.bf16.msra.mxu0 %v1301
      %1359 = vmatpush.bf16.msra.mxu0 %v1300
      %1360 = vmatpush.bf16.msra.mxu0 %v1299
      %1361 = vmatpush.bf16.msra.mxu0 %v1298
      %1362 = vmatpush.bf16.msra.mxu0 %v1297
      %1363 = vmatpush.bf16.msra.mxu0 %v1296
      %1364 = vmatmul.bf16.gmra.mxu0 %v1130
      %v1365 = vpop.f32.mrf.mxu0
      %v1366 = vadd.f32 %v1352, %v1365
      %v1367 = vpop.f32.mrf.mxu0
      %v1368 = vadd.f32 %v1354, %v1367
      %1369 = vdwg.mxu0
      %1370 = vst [vmem:[%s505] sm:$0xff] %v1366
      %1371 = vst [vmem:[%s505 + $0x8] sm:$0xff] %v1368
      %v1372 = vadd.f32 %v1366, %v1368
      %v1373 = vrot.slane %v1372, 4
      %v1374 = vadd.f32 %v1372, %v1373
      %v1375 = vrot.slane %v1374, 2
      %v1376 = vadd.f32 %v1374, %v1375
      %v1377 = vrot.slane %v1376, 1
      %v1378 = vadd.f32 %v1376, %v1377
      %1379 = vst [vmem:[%s508] sm:$0x1] %v1378
      %v1380 = vmul.f32 %v1366, %v1366
      %v1381 = vmul.f32 %v1368, %v1368
      %v1382 = vadd.f32 %v1380, %v1381
      %v1383 = vrot.slane %v1382, 4
      %v1384 = vadd.f32 %v1382, %v1383
      %v1385 = vrot.slane %v1384, 2
      %v1386 = vadd.f32 %v1384, %v1385
      %v1387 = vrot.slane %v1386, 1
      %v1388 = vadd.f32 %v1386, %v1387
      %1389 = vst [vmem:[%s511] sm:$0x1] %v1388
      %p1390 = scmp.lt.s32.totalorder %s27, 1
      %s1391 = scalar_select %p1390, %s27, 1
      %s1392 = smul.addr %s1391, 2
      %s1393 = smul.addr %s1392, 8
      %s1394 = scalar_lea.vmem %s13, %s1393
      %p1395 = scmp.lt.s32.totalorder %s27, 1
      %s1396 = scalar_select %p1395, %s27, 1
      %s1397 = scalar_lea.vmem %s14, %s1396
      %p1398 = scmp.lt.s32.totalorder %s27, 1
      %s1399 = scalar_select %p1398, %s27, 1
      %s1400 = scalar_lea.vmem %s15, %s1399
      // Predicated region
      $region73: #{mscsam_forward.4} parent=71 // pred_check
        %p1401 = pneg %p323
      $region74: #{mscsam_forward.4} parent=71 // pred_check_branch
        %1403 = sbr.rel (%p1401) target = $region76
      $region75: #{mscsam_forward.4} parent=71 // pred_region
        _
      $region76: #{mscsam_forward.4} parent=71 // pred_fallthru
        _
      // Predicated region
      $region77: #{mscsam_forward.4} parent=71 // pred_check
        %p1404 = pneg %p349
      $region78: #{mscsam_forward.4} parent=71 // pred_check_branch
        %1406 = sbr.rel (%p1404) target = $region80
      $region79: #{mscsam_forward.4} parent=71 // pred_region
        _
      $region80: #{mscsam_forward.4} parent=71 // pred_fallthru
        _
      // Predicated region
      $region81: #{mscsam_forward.4} parent=71 // pred_check
        %p1407 = pneg %p375
      $region82: #{mscsam_forward.4} parent=71 // pred_check_branch
        %1409 = sbr.rel (%p1407) target = $region84
      $region83: #{mscsam_forward.4} parent=71 // pred_region
        _
      $region84: #{mscsam_forward.4} parent=71 // pred_fallthru
        _
    $region72: #{mscsam_forward.4} parent=5 // pred_fallthru
      _
    %p1410 = scmp.le.s32.totalorder 2, %s22
    // Predicated region
    $region85: #{mscsam_forward.4} parent=5 // pred_check
      %p1411 = pneg %p1410
    $region86: #{mscsam_forward.4} parent=5 // pred_check_branch
      %1413 = sbr.rel (%p1411) target = $region88
    $region87: #{mscsam_forward.4} parent=5 // pred_region
      %s1414 = ssub.s32 %s22, 2
      // Predicated region
      $region89: #{mscsam_forward.4} parent=87 // pred_check
        %p1415 = pneg %p329
      $region90: #{mscsam_forward.4} parent=87 // pred_check_branch
        %1417 = sbr.rel (%p1415) target = $region92
      $region91: #{mscsam_forward.4} parent=87 // pred_region
        %p1418 = scmp.lt.s32.totalorder %s28, 1
        %s1419 = scalar_select %p1418, %s28, 1
        %s1420 = smul.addr %s1419, 2
        %s1421 = smul.addr %s1420, 8
        %s1422 = scalar_lea.vmem %s13, %s1421
      $region92: #{mscsam_forward.4} parent=87 // pred_fallthru
        _
      // Predicated region
      $region93: #{mscsam_forward.4} parent=87 // pred_check
        %p1423 = pneg %p355
      $region94: #{mscsam_forward.4} parent=87 // pred_check_branch
        %1425 = sbr.rel (%p1423) target = $region96
      $region95: #{mscsam_forward.4} parent=87 // pred_region
        %p1426 = scmp.lt.s32.totalorder %s28, 1
        %s1427 = scalar_select %p1426, %s28, 1
        %s1428 = scalar_lea.vmem %s14, %s1427
      $region96: #{mscsam_forward.4} parent=87 // pred_fallthru
        _
      // Predicated region
      $region97: #{mscsam_forward.4} parent=87 // pred_check
        %p1429 = pneg %p381
      $region98: #{mscsam_forward.4} parent=87 // pred_check_branch
        %1431 = sbr.rel (%p1429) target = $region100
      $region99: #{mscsam_forward.4} parent=87 // pred_region
        %p1432 = scmp.lt.s32.totalorder %s28, 1
        %s1433 = scalar_select %p1432, %s28, 1
        %s1434 = scalar_lea.vmem %s15, %s1433
      $region100: #{mscsam_forward.4} parent=87 // pred_fallthru
        _
    $region88: #{mscsam_forward.4} parent=5 // pred_fallthru
      _
  $region6: #{mscsam_forward.4} parent=0 // loop_footer
    %s26 = sadd.s32 1, %s22
  $region7: #{mscsam_forward.4} parent=0 // loop_footer_branch
    %21 = sbr.rel target = $region3
  $region8: #{mscsam_forward.4} parent=0 // loop_exit
    _

</llo_original>
